<compile_context>
chip_gen: v7x
topology: tpu7x:2x2x1
jax: 0.10.0
libtpu: 0.0.40
codegen_flags: <defaults>
</compile_context>

<pallas_src>
import functools

import jax
import jax.numpy as jnp
from jax.experimental import pallas as pl
from jax.experimental.pallas import tpu as pltpu

_IN_EPS = 1e-5          # PyTorch InstanceNorm2d default eps
_LEAKY_SLOPE = 0.2


def _round_up(x, m):
    return ((x + m - 1) // m) * m


# ----------------------------------------------------------------------------
# Pallas kernels
# ----------------------------------------------------------------------------
def _conv_mm_kernel(a_ref, w_ref, b_ref, o_ref, *, act):
    """Single-shot fused conv matmul: out = act(A @ W + b)."""
    y = jnp.dot(a_ref[...], w_ref[...], preferred_element_type=jnp.float32)
    y = y + b_ref[...]
    if act == "leaky_relu":
        y = jnp.maximum(y, _LEAKY_SLOPE * y)
    o_ref[...] = y.astype(o_ref.dtype)


def _conv_mm_in_kernel(a_ref, w_ref, b_ref, g_ref, bt_ref, seg_ref, segt_ref,
                       o_ref, *, act, inv_count, eps):
    """Single-shot conv matmul with InstanceNorm2d fused into the epilogue.

    seg  : (Sp, Mp) f32 {0,1}  - row-membership of each sample's VALID rows
    segt : (Mp, Sp) f32        - its transpose (precomputed: no in-kernel xpose)
    Per-sample mean/var are computed as segment sums via tiny MXU matmuls, so
    padded rows (both K and M padding) are automatically excluded from stats.
    """
    y = jnp.dot(a_ref[...], w_ref[...], preferred_element_type=jnp.float32)
    y = y + b_ref[...]                                       # (Mp, Np)  f32
    seg = seg_ref[...]
    segt = segt_ref[...]
    # per-sample mean over H*W (biased stats, matching PyTorch InstanceNorm2d)
    mean = jnp.dot(seg, y, preferred_element_type=jnp.float32) * inv_count    # (Sp, Np)
    ctr = y - jnp.dot(segt, mean, preferred_element_type=jnp.float32)          # (Mp, Np)
    var = jnp.dot(seg, ctr * ctr, preferred_element_type=jnp.float32) * inv_count
    inv = jax.lax.rsqrt(var + eps)                                              # (Sp, Np)
    y = ctr * jnp.dot(segt, inv, preferred_element_type=jnp.float32)
    y = y * g_ref[...] + bt_ref[...]                          # affine (weight=1, bias=0 init)
    if act == "leaky_relu":
        y = jnp.maximum(y, _LEAKY_SLOPE * y)
    o_ref[...] = y.astype(o_ref.dtype)


# ----------------------------------------------------------------------------
# conv wrapper (im2col matmul, optional fused InstanceNorm)
# ----------------------------------------------------------------------------
def _fused_conv(a, pk, *, act, fuse_in, out_dtype):
    """a: (M, K) im2col patches. Returns (M, N) in out_dtype.

    fuse_in: None, or (gamma_p, beta_p, n_samples, hw) to fuse InstanceNorm2d.
    """
    M, K = a.shape
    N, Kp, Np = pk["N"], pk["Kp"], pk["Np"]

    if fuse_in is None and M >= 128:
        tm = 64                          # two tiles -> both v7x TensorCores busy
        Mp = _round_up(M, tm)
    else:
        tm = _round_up(max(M, 16), 16)   # IN needs every row in one tile
        Mp = tm
    nm = Mp // tm

    a_p = jnp.pad(a.astype(jnp.bfloat16), ((0, Mp - M), (0, Kp - K)))

    if fuse_in is None:
        out = pl.pallas_call(
            functools.partial(_conv_mm_kernel, act=act),
            out_shape=jax.ShapeDtypeStruct((Mp, Np), out_dtype),
            grid_spec=pltpu.PrefetchScalarGridSpec(
                num_scalar_prefetch=0,
                grid=(nm,),
                in_specs=[
                    pl.BlockSpec((tm, Kp), lambda i: (i, 0)),
                    pl.BlockSpec((Kp, Np), lambda i: (0, 0)),
                    pl.BlockSpec((1, Np), lambda i: (0, 0)),
                ],
                out_specs=pl.BlockSpec((tm, Np), lambda i: (i, 0)),
            ),
            compiler_params=pltpu.CompilerParams(
                dimension_semantics=("parallel",)),
        )(a_p, pk["w"], pk["b"])
    else:
        gamma_p, beta_p, n_samp, hw = fuse_in
        sp = _round_up(max(n_samp, 8), 8)           # pad sample axis to sublanes
        rows = jnp.arange(Mp)[None, :]
        samp = jnp.arange(sp)[:, None]
        seg = ((samp < n_samp) & (rows >= samp * hw)
               & (rows < samp * hw + hw)).astype(jnp.float32)    # (sp, Mp)
        segt = seg.T                                             # (Mp, sp)
        out = pl.pallas_call(
            functools.partial(_conv_mm_in_kernel, act=act,
                              inv_count=1.0 / float(hw), eps=_IN_EPS),
            out_shape=jax.ShapeDtypeStruct((Mp, Np), out_dtype),
            grid_spec=pltpu.PrefetchScalarGridSpec(
                num_scalar_prefetch=0,
                grid=(1,),
                in_specs=[
                    pl.BlockSpec((Mp, Kp), lambda i: (0, 0)),
                    pl.BlockSpec((Kp, Np), lambda i: (0, 0)),
                    pl.BlockSpec((1, Np), lambda i: (0, 0)),
                    pl.BlockSpec((1, Np), lambda i: (0, 0)),
                    pl.BlockSpec((1, Np), lambda i: (0, 0)),
                    pl.BlockSpec((sp, Mp), lambda i: (0, 0)),
                    pl.BlockSpec((Mp, sp), lambda i: (0, 0)),
                ],
                out_specs=pl.BlockSpec((Mp, Np), lambda i: (0, 0)),
            ),
            compiler_params=pltpu.CompilerParams(
                dimension_semantics=("arbitrary",)),
        )(a_p, pk["w"], pk["b"], gamma_p, beta_p, seg, segt)

    return out[:M, :N]


# ----------------------------------------------------------------------------
# im2col / avgpool glue (XLA strided slices; no gathers)
# ----------------------------------------------------------------------------
def _im2col(x, k, s, p):
    """NHWC -> (N*Ho*Wo, k*k*C) patches, channel-innermost, matching weights."""
    n, h, w, c = x.shape
    ho = (h + 2 * p - k) // s + 1
    wo = (w + 2 * p - k) // s + 1
    xp = jnp.pad(x, ((0, 0), (p, p), (p, p), (0, 0)))
    cols = []
    for dy in range(k):
        for dx in range(k):
            cols.append(xp[:, dy:dy + s * (ho - 1) + 1:s,
                           dx:dx + s * (wo - 1) + 1:s, :])
    patches = jnp.concatenate(cols, axis=-1)            # (n, ho, wo, k*k*c)
    return patches.reshape(n * ho * wo, k * k * c), (n, ho, wo)


def conv_block(x, pk, *, stride, act, in_params=None, out_dtype=jnp.bfloat16):
    a, (n, ho, wo) = _im2col(x, pk["ksize"], stride, 1)
    if in_params is None:
        fuse_in = None
    else:
        gamma_p, beta_p = in_params
        fuse_in = (gamma_p, beta_p, n, ho * wo)
    y = _fused_conv(a, pk, act=act, fuse_in=fuse_in, out_dtype=out_dtype)
    return y.reshape(n, ho, wo, pk["N"])


def avg_pool3x3_s2(x):
    """nn.AvgPool2d(kernel_size=3, stride=2, padding=0) in NHWC (no padding,
    so count_include_pad is irrelevant)."""
    n, h, w, c = x.shape
    ho = (h - 3) // 2 + 1
    wo = (w - 3) // 2 + 1
    acc = jnp.zeros((n, ho, wo, c), jnp.float32)
    for dy in range(3):
        for dx in range(3):
            acc = acc + x[:, dy:dy + 2 * (ho - 1) + 1:2,
                          dx:dx + 2 * (wo - 1) + 1:2, :]
    return acc * (1.0 / 9.0)


# ----------------------------------------------------------------------------
# parameters (deterministic synthetic init; weights pre-packed ONCE to bf16)
# ----------------------------------------------------------------------------
def _pack_conv(w, b):
    """Fold PyTorch conv weight (Cout,Cin,kh,kw) into bf16 (Kp,Np) matmul layout."""
    cout, cin, kh, kw = w.shape
    K, N = kh * kw * cin, cout
    Kp, Np = _round_up(K, 128), _round_up(N, 128)
    w_mat = jnp.transpose(w, (2, 3, 1, 0)).reshape(K, N)      # (dy,dx,cin) x cout
    w_p = jnp.zeros((Kp, Np), jnp.bfloat16).at[:K, :N].set(w_mat.astype(jnp.bfloat16))
    b_p = jnp.zeros((1, Np), jnp.float32).at[0, :N].set(b.astype(jnp.float32))
    return dict(w=w_p, b=b_p, K=K, N=N, Kp=Kp, Np=Np, ksize=kh)


def _pack_affine(c):
    """InstanceNorm2d(affine=True) default init: weight=1, bias=0, padded to Np."""
    Np = _round_up(c, 128)
    gamma = jnp.zeros((1, Np), jnp.float32).at[0, :c].set(1.0)
    beta = jnp.zeros((1, Np), jnp.float32)
    return gamma, beta


def _conv_init(kw, kb, cin, cout, k):
    fan_in = cin * k * k
    w = jax.random.normal(kw, (cout, cin, k, k), jnp.float32) * jnp.sqrt(2.0 / fan_in)
    b = jax.random.normal(kb, (cout,), jnp.float32) * 0.05
    return w, b


def init_params(key):
    ks = jax.random.split(key, 8)
    p = {}
    p["c1"] = _pack_conv(*_conv_init(ks[0], ks[1], 100, 32, 4))
    p["c2"] = _pack_conv(*_conv_init(ks[2], ks[3], 32, 64, 4))
    p["in2"] = _pack_affine(64)
    p["c3"] = _pack_conv(*_conv_init(ks[4], ks[5], 64, 128, 4))
    p["in3"] = _pack_affine(128)
    p["c4"] = _pack_conv(*_conv_init(ks[6], ks[7], 128, 1, 4))
    return p


# ----------------------------------------------------------------------------
# full forward pass (public API: NCHW in, NCHW out)
# ----------------------------------------------------------------------------
def simple_discriminator_forward(params, x_nchw):
    x = jnp.transpose(x_nchw, (0, 2, 3, 1)).astype(jnp.float32)    # NCHW -> NHWC
    x = avg_pool3x3_s2(x).astype(jnp.bfloat16)
    # ConvBlock(100,32,k4,s2,p1, norm=False, 'leaky_relu')
    x = conv_block(x, params["c1"], stride=2, act="leaky_relu")
    # ConvBlock(32,64,k4,s2,p1, norm=True, 'leaky-relu') -> conv + IN, NO activation
    x = conv_block(x, params["c2"], stride=2, act=None, in_params=params["in2"])
    # ConvBlock(64,128,k4,s1,p1, norm=True, 'leaky-relu') -> conv + IN, NO activation
    x = conv_block(x, params["c3"], stride=1, act=None, in_params=params["in3"])
    # ConvBlock(128,1,k4,s1,p1, norm=False, None)
    x = conv_block(x, params["c4"], stride=1, act=None, out_dtype=jnp.float32)
    return jnp.transpose(x, (0, 3, 1, 2))                          # back to NCHW


if __name__ == "__main__":
    key = jax.random.PRNGKey(0)
    k_params, k_x = jax.random.split(key)

    params = init_params(k_params)

    batch, in_ch, H, W = 2, 100, 33, 33          # 100 input channels fixed by the module
    x = jax.random.normal(k_x, (batch, in_ch, H, W), jnp.float32)

    # params closed over (static packing metadata must not be traced by jit)
    fwd = jax.jit(functools.partial(simple_discriminator_forward, params))
    out = jax.block_until_ready(fwd(x))

    # spatial: 33 -avgpool-> 16 -s2 conv-> 8 -s2 conv-> 4 -s1 conv-> 3 -s1 conv-> 2
    assert out.shape == (batch, 1, 2, 2), out.shape
    assert bool(jnp.isfinite(out).all())
    print("KERNEL_OK")
</pallas_src>

<mosaic_0001>
module attributes {stable_mosaic.version = 11 : i64} {
  func.func @_conv_mm_kernel(%arg0: i32, %arg1: memref<64x1664xbf16, #tpu.memory_space<vmem>>, %arg2: memref<1664x128xbf16, #tpu.memory_space<vmem>>, %arg3: memref<1x128xf32, #tpu.memory_space<vmem>>, %arg4: memref<64x128xbf16, #tpu.memory_space<vmem>>) attributes {dimension_semantics = [#tpu.dimension_semantics<parallel>], iteration_bounds = array<i64: 2>, scalar_prefetch = 0 : i64, scratch_operands = 0 : i64, tpu.core_type = #tpu.core_type<tc>, window_params = [{transform_indices = @transform_0, window_bounds = array<i64: 64, 1664>}, {pipeline_mode = #tpu.pipeline_mode<synchronous>, transform_indices = @transform_1, window_bounds = array<i64: 1664, 128>}, {pipeline_mode = #tpu.pipeline_mode<synchronous>, transform_indices = @transform_2, window_bounds = array<i64: 1, 128>}, {transform_indices = @transform_3, window_bounds = array<i64: 64, 128>}]} {
    %c0 = arith.constant 0 : index
    %c0_0 = arith.constant 0 : index
    %0 = vector.load %arg1[%c0, %c0_0] : memref<64x1664xbf16, #tpu.memory_space<vmem>>, vector<64x1664xbf16>
    %c0_1 = arith.constant 0 : index
    %c0_2 = arith.constant 0 : index
    %1 = vector.load %arg2[%c0_1, %c0_2] : memref<1664x128xbf16, #tpu.memory_space<vmem>>, vector<1664x128xbf16>
    %cst = arith.constant dense<0.000000e+00> : vector<64x128xf32>
    %2 = tpu.matmul %0, %1, %cst {dimension_numbers = #tpu.dot_dimension_numbers<[1], [0], [0], [1], [0, 0, 1, 1], [], []>} : vector<64x1664xbf16>, vector<1664x128xbf16>, vector<64x128xf32> -> vector<64x128xf32>
    %c0_3 = arith.constant 0 : index
    %c0_4 = arith.constant 0 : index
    %3 = vector.load %arg3[%c0_3, %c0_4] : memref<1x128xf32, #tpu.memory_space<vmem>>, vector<1x128xf32>
    %4 = vector.broadcast %3 : vector<1x128xf32> to vector<64x128xf32>
    %5 = arith.addf %2, %4 : vector<64x128xf32>
    %cst_5 = arith.constant 2.000000e-01 : f32
    %6 = vector.broadcast %cst_5 : f32 to vector<64x128xf32>
    %7 = arith.mulf %6, %5 : vector<64x128xf32>
    %8 = arith.maximumf %5, %7 : vector<64x128xf32>
    %9 = arith.truncf %8 : vector<64x128xf32> to vector<64x128xbf16>
    %c0_6 = arith.constant 0 : index
    %c0_7 = arith.constant 0 : index
    %10 = vector.load %arg4[%c0_6, %c0_7] : memref<64x128xbf16, #tpu.memory_space<vmem>>, vector<64x128xbf16>
    tpu.vector_store %arg4[%c0_6, %c0_7], %9 {strides = array<i32>} : memref<64x128xbf16, #tpu.memory_space<vmem>>, vector<64x128xbf16>,
    return
  }
  func.func @transform_0(%arg0: i32) -> (i32, i32) {
    %c0_i32 = arith.constant 0 : i32
    %c0_i32_0 = arith.constant 0 : i32
    return %arg0, %c0_i32 : i32, i32
  }
  func.func @transform_1(%arg0: i32) -> (i32, i32) {
    %c0_i32 = arith.constant 0 : i32
    %c0_i32_0 = arith.constant 0 : i32
    %c0_i32_1 = arith.constant 0 : i32
    return %c0_i32, %c0_i32_0 : i32, i32
  }
  func.func @transform_2(%arg0: i32) -> (i32, i32) {
    %c0_i32 = arith.constant 0 : i32
    %c0_i32_0 = arith.constant 0 : i32
    %c0_i32_1 = arith.constant 0 : i32
    return %c0_i32, %c0_i32_0 : i32, i32
  }
  func.func @transform_3(%arg0: i32) -> (i32, i32) {
    %c0_i32 = arith.constant 0 : i32
    %c0_i32_0 = arith.constant 0 : i32
    return %arg0, %c0_i32 : i32, i32
  }
}

module attributes {stable_mosaic.version = 11 : i64} {
  func.func @_conv_mm_in_kernel(%arg0: i32, %arg1: memref<32x512xbf16, #tpu.memory_space<vmem>>, %arg2: memref<512x128xbf16, #tpu.memory_space<vmem>>, %arg3: memref<1x128xf32, #tpu.memory_space<vmem>>, %arg4: memref<1x128xf32, #tpu.memory_space<vmem>>, %arg5: memref<1x128xf32, #tpu.memory_space<vmem>>, %arg6: memref<8x32xf32, #tpu.memory_space<vmem>>, %arg7: memref<32x8xf32, #tpu.memory_space<vmem>>, %arg8: memref<32x128xbf16, #tpu.memory_space<vmem>>) attributes {dimension_semantics = [#tpu.dimension_semantics<arbitrary>], iteration_bounds = array<i64: 1>, scalar_prefetch = 0 : i64, scratch_operands = 0 : i64, tpu.core_type = #tpu.core_type<tc>, window_params = [{pipeline_mode = #tpu.pipeline_mode<synchronous>, transform_indices = @transform_0, window_bounds = array<i64: 32, 512>}, {pipeline_mode = #tpu.pipeline_mode<synchronous>, transform_indices = @transform_1, window_bounds = array<i64: 512, 128>}, {pipeline_mode = #tpu.pipeline_mode<synchronous>, transform_indices = @transform_2, window_bounds = array<i64: 1, 128>}, {pipeline_mode = #tpu.pipeline_mode<synchronous>, transform_indices = @transform_3, window_bounds = array<i64: 1, 128>}, {pipeline_mode = #tpu.pipeline_mode<synchronous>, transform_indices = @transform_4, window_bounds = array<i64: 1, 128>}, {pipeline_mode = #tpu.pipeline_mode<synchronous>, transform_indices = @transform_5, window_bounds = array<i64: 8, 32>}, {pipeline_mode = #tpu.pipeline_mode<synchronous>, transform_indices = @transform_6, window_bounds = array<i64: 32, 8>}, {pipeline_mode = #tpu.pipeline_mode<synchronous>, transform_indices = @transform_7, window_bounds = array<i64: 32, 128>}]} {
    %c0 = arith.constant 0 : index
    %c0_0 = arith.constant 0 : index
    %0 = vector.load %arg1[%c0, %c0_0] : memref<32x512xbf16, #tpu.memory_space<vmem>>, vector<32x512xbf16>
    %c0_1 = arith.constant 0 : index
    %c0_2 = arith.constant 0 : index
    %1 = vector.load %arg2[%c0_1, %c0_2] : memref<512x128xbf16, #tpu.memory_space<vmem>>, vector<512x128xbf16>
    %cst = arith.constant dense<0.000000e+00> : vector<32x128xf32>
    %2 = tpu.matmul %0, %1, %cst {dimension_numbers = #tpu.dot_dimension_numbers<[1], [0], [0], [1], [0, 0, 1, 1], [], []>} : vector<32x512xbf16>, vector<512x128xbf16>, vector<32x128xf32> -> vector<32x128xf32>
    %c0_3 = arith.constant 0 : index
    %c0_4 = arith.constant 0 : index
    %3 = vector.load %arg3[%c0_3, %c0_4] : memref<1x128xf32, #tpu.memory_space<vmem>>, vector<1x128xf32>
    %4 = vector.broadcast %3 : vector<1x128xf32> to vector<32x128xf32>
    %5 = arith.addf %2, %4 : vector<32x128xf32>
    %c0_5 = arith.constant 0 : index
    %c0_6 = arith.constant 0 : index
    %6 = vector.load %arg6[%c0_5, %c0_6] : memref<8x32xf32, #tpu.memory_space<vmem>>, vector<8x32xf32>
    %c0_7 = arith.constant 0 : index
    %c0_8 = arith.constant 0 : index
    %7 = vector.load %arg7[%c0_7, %c0_8] : memref<32x8xf32, #tpu.memory_space<vmem>>, vector<32x8xf32>
    %cst_9 = arith.constant dense<0.000000e+00> : vector<8x128xf32>
    %8 = tpu.matmul %6, %5, %cst_9 {dimension_numbers = #tpu.dot_dimension_numbers<[1], [0], [0], [1], [0, 0, 1, 1], [], []>} : vector<8x32xf32>, vector<32x128xf32>, vector<8x128xf32> -> vector<8x128xf32>
    %cst_10 = arith.constant 6.250000e-02 : f32
    %9 = vector.broadcast %cst_10 : f32 to vector<8x128xf32>
    %10 = arith.mulf %8, %9 : vector<8x128xf32>
    %cst_11 = arith.constant dense<0.000000e+00> : vector<32x128xf32>
    %11 = tpu.matmul %7, %10, %cst_11 {dimension_numbers = #tpu.dot_dimension_numbers<[1], [0], [0], [1], [0, 0, 1, 1], [], []>} : vector<32x8xf32>, vector<8x128xf32>, vector<32x128xf32> -> vector<32x128xf32>
    %12 = arith.subf %5, %11 : vector<32x128xf32>
    %13 = arith.mulf %12, %12 : vector<32x128xf32>
    %cst_12 = arith.constant dense<0.000000e+00> : vector<8x128xf32>
    %14 = tpu.matmul %6, %13, %cst_12 {dimension_numbers = #tpu.dot_dimension_numbers<[1], [0], [0], [1], [0, 0, 1, 1], [], []>} : vector<8x32xf32>, vector<32x128xf32>, vector<8x128xf32> -> vector<8x128xf32>
    %cst_13 = arith.constant 6.250000e-02 : f32
    %15 = vector.broadcast %cst_13 : f32 to vector<8x128xf32>
    %16 = arith.mulf %14, %15 : vector<8x128xf32>
    %cst_14 = arith.constant 9.99999974E-6 : f32
    %17 = vector.broadcast %cst_14 : f32 to vector<8x128xf32>
    %18 = arith.addf %16, %17 : vector<8x128xf32>
    %19 = math.rsqrt %18 : vector<8x128xf32>
    %cst_15 = arith.constant dense<0.000000e+00> : vector<32x128xf32>
    %20 = tpu.matmul %7, %19, %cst_15 {dimension_numbers = #tpu.dot_dimension_numbers<[1], [0], [0], [1], [0, 0, 1, 1], [], []>} : vector<32x8xf32>, vector<8x128xf32>, vector<32x128xf32> -> vector<32x128xf32>
    %21 = arith.mulf %12, %20 : vector<32x128xf32>
    %c0_16 = arith.constant 0 : index
    %c0_17 = arith.constant 0 : index
    %22 = vector.load %arg4[%c0_16, %c0_17] : memref<1x128xf32, #tpu.memory_space<vmem>>, vector<1x128xf32>
    %23 = vector.broadcast %22 : vector<1x128xf32> to vector<32x128xf32>
    %24 = arith.mulf %21, %23 : vector<32x128xf32>
    %c0_18 = arith.constant 0 : index
    %c0_19 = arith.constant 0 : index
    %25 = vector.load %arg5[%c0_18, %c0_19] : memref<1x128xf32, #tpu.memory_space<vmem>>, vector<1x128xf32>
    %26 = vector.broadcast %25 : vector<1x128xf32> to vector<32x128xf32>
    %27 = arith.addf %24, %26 : vector<32x128xf32>
    %28 = arith.truncf %27 : vector<32x128xf32> to vector<32x128xbf16>
    %c0_20 = arith.constant 0 : index
    %c0_21 = arith.constant 0 : index
    %29 = vector.load %arg8[%c0_20, %c0_21] : memref<32x128xbf16, #tpu.memory_space<vmem>>, vector<32x128xbf16>
    tpu.vector_store %arg8[%c0_20, %c0_21], %28 {strides = array<i32>} : memref<32x128xbf16, #tpu.memory_space<vmem>>, vector<32x128xbf16>,
    return
  }
  func.func @transform_0(%arg0: i32) -> (i32, i32) {
    %c0_i32 = arith.constant 0 : i32
    %c0_i32_0 = arith.constant 0 : i32
    %c0_i32_1 = arith.constant 0 : i32
    return %c0_i32, %c0_i32_0 : i32, i32
  }
  func.func @transform_1(%arg0: i32) -> (i32, i32) {
    %c0_i32 = arith.constant 0 : i32
    %c0_i32_0 = arith.constant 0 : i32
    %c0_i32_1 = arith.constant 0 : i32
    return %c0_i32, %c0_i32_0 : i32, i32
  }
  func.func @transform_2(%arg0: i32) -> (i32, i32) {
    %c0_i32 = arith.constant 0 : i32
    %c0_i32_0 = arith.constant 0 : i32
    %c0_i32_1 = arith.constant 0 : i32
    return %c0_i32, %c0_i32_0 : i32, i32
  }
  func.func @transform_3(%arg0: i32) -> (i32, i32) {
    %c0_i32 = arith.constant 0 : i32
    %c0_i32_0 = arith.constant 0 : i32
    %c0_i32_1 = arith.constant 0 : i32
    return %c0_i32, %c0_i32_0 : i32, i32
  }
  func.func @transform_4(%arg0: i32) -> (i32, i32) {
    %c0_i32 = arith.constant 0 : i32
    %c0_i32_0 = arith.constant 0 : i32
    %c0_i32_1 = arith.constant 0 : i32
    return %c0_i32, %c0_i32_0 : i32, i32
  }
  func.func @transform_5(%arg0: i32) -> (i32, i32) {
    %c0_i32 = arith.constant 0 : i32
    %c0_i32_0 = arith.constant 0 : i32
    %c0_i32_1 = arith.constant 0 : i32
    return %c0_i32, %c0_i32_0 : i32, i32
  }
  func.func @transform_6(%arg0: i32) -> (i32, i32) {
    %c0_i32 = arith.constant 0 : i32
    %c0_i32_0 = arith.constant 0 : i32
    %c0_i32_1 = arith.constant 0 : i32
    return %c0_i32, %c0_i32_0 : i32, i32
  }
  func.func @transform_7(%arg0: i32) -> (i32, i32) {
    %c0_i32 = arith.constant 0 : i32
    %c0_i32_0 = arith.constant 0 : i32
    %c0_i32_1 = arith.constant 0 : i32
    return %c0_i32, %c0_i32_0 : i32, i32
  }
}

module attributes {stable_mosaic.version = 11 : i64} {
  func.func @_conv_mm_in_kernel(%arg0: i32, %arg1: memref<32x1024xbf16, #tpu.memory_space<vmem>>, %arg2: memref<1024x128xbf16, #tpu.memory_space<vmem>>, %arg3: memref<1x128xf32, #tpu.memory_space<vmem>>, %arg4: memref<1x128xf32, #tpu.memory_space<vmem>>, %arg5: memref<1x128xf32, #tpu.memory_space<vmem>>, %arg6: memref<8x32xf32, #tpu.memory_space<vmem>>, %arg7: memref<32x8xf32, #tpu.memory_space<vmem>>, %arg8: memref<32x128xbf16, #tpu.memory_space<vmem>>) attributes {dimension_semantics = [#tpu.dimension_semantics<arbitrary>], iteration_bounds = array<i64: 1>, scalar_prefetch = 0 : i64, scratch_operands = 0 : i64, tpu.core_type = #tpu.core_type<tc>, window_params = [{pipeline_mode = #tpu.pipeline_mode<synchronous>, transform_indices = @transform_0, window_bounds = array<i64: 32, 1024>}, {pipeline_mode = #tpu.pipeline_mode<synchronous>, transform_indices = @transform_1, window_bounds = array<i64: 1024, 128>}, {pipeline_mode = #tpu.pipeline_mode<synchronous>, transform_indices = @transform_2, window_bounds = array<i64: 1, 128>}, {pipeline_mode = #tpu.pipeline_mode<synchronous>, transform_indices = @transform_3, window_bounds = array<i64: 1, 128>}, {pipeline_mode = #tpu.pipeline_mode<synchronous>, transform_indices = @transform_4, window_bounds = array<i64: 1, 128>}, {pipeline_mode = #tpu.pipeline_mode<synchronous>, transform_indices = @transform_5, window_bounds = array<i64: 8, 32>}, {pipeline_mode = #tpu.pipeline_mode<synchronous>, transform_indices = @transform_6, window_bounds = array<i64: 32, 8>}, {pipeline_mode = #tpu.pipeline_mode<synchronous>, transform_indices = @transform_7, window_bounds = array<i64: 32, 128>}]} {
    %c0 = arith.constant 0 : index
    %c0_0 = arith.constant 0 : index
    %0 = vector.load %arg1[%c0, %c0_0] : memref<32x1024xbf16, #tpu.memory_space<vmem>>, vector<32x1024xbf16>
    %c0_1 = arith.constant 0 : index
    %c0_2 = arith.constant 0 : index
    %1 = vector.load %arg2[%c0_1, %c0_2] : memref<1024x128xbf16, #tpu.memory_space<vmem>>, vector<1024x128xbf16>
    %cst = arith.constant dense<0.000000e+00> : vector<32x128xf32>
    %2 = tpu.matmul %0, %1, %cst {dimension_numbers = #tpu.dot_dimension_numbers<[1], [0], [0], [1], [0, 0, 1, 1], [], []>} : vector<32x1024xbf16>, vector<1024x128xbf16>, vector<32x128xf32> -> vector<32x128xf32>
    %c0_3 = arith.constant 0 : index
    %c0_4 = arith.constant 0 : index
    %3 = vector.load %arg3[%c0_3, %c0_4] : memref<1x128xf32, #tpu.memory_space<vmem>>, vector<1x128xf32>
    %4 = vector.broadcast %3 : vector<1x128xf32> to vector<32x128xf32>
    %5 = arith.addf %2, %4 : vector<32x128xf32>
    %c0_5 = arith.constant 0 : index
    %c0_6 = arith.constant 0 : index
    %6 = vector.load %arg6[%c0_5, %c0_6] : memref<8x32xf32, #tpu.memory_space<vmem>>, vector<8x32xf32>
    %c0_7 = arith.constant 0 : index
    %c0_8 = arith.constant 0 : index
    %7 = vector.load %arg7[%c0_7, %c0_8] : memref<32x8xf32, #tpu.memory_space<vmem>>, vector<32x8xf32>
    %cst_9 = arith.constant dense<0.000000e+00> : vector<8x128xf32>
    %8 = tpu.matmul %6, %5, %cst_9 {dimension_numbers = #tpu.dot_dimension_numbers<[1], [0], [0], [1], [0, 0, 1, 1], [], []>} : vector<8x32xf32>, vector<32x128xf32>, vector<8x128xf32> -> vector<8x128xf32>
    %cst_10 = arith.constant 0.111111112 : f32
    %9 = vector.broadcast %cst_10 : f32 to vector<8x128xf32>
    %10 = arith.mulf %8, %9 : vector<8x128xf32>
    %cst_11 = arith.constant dense<0.000000e+00> : vector<32x128xf32>
    %11 = tpu.matmul %7, %10, %cst_11 {dimension_numbers = #tpu.dot_dimension_numbers<[1], [0], [0], [1], [0, 0, 1, 1], [], []>} : vector<32x8xf32>, vector<8x128xf32>, vector<32x128xf32> -> vector<32x128xf32>
    %12 = arith.subf %5, %11 : vector<32x128xf32>
    %13 = arith.mulf %12, %12 : vector<32x128xf32>
    %cst_12 = arith.constant dense<0.000000e+00> : vector<8x128xf32>
    %14 = tpu.matmul %6, %13, %cst_12 {dimension_numbers = #tpu.dot_dimension_numbers<[1], [0], [0], [1], [0, 0, 1, 1], [], []>} : vector<8x32xf32>, vector<32x128xf32>, vector<8x128xf32> -> vector<8x128xf32>
    %cst_13 = arith.constant 0.111111112 : f32
    %15 = vector.broadcast %cst_13 : f32 to vector<8x128xf32>
    %16 = arith.mulf %14, %15 : vector<8x128xf32>
    %cst_14 = arith.constant 9.99999974E-6 : f32
    %17 = vector.broadcast %cst_14 : f32 to vector<8x128xf32>
    %18 = arith.addf %16, %17 : vector<8x128xf32>
    %19 = math.rsqrt %18 : vector<8x128xf32>
    %cst_15 = arith.constant dense<0.000000e+00> : vector<32x128xf32>
    %20 = tpu.matmul %7, %19, %cst_15 {dimension_numbers = #tpu.dot_dimension_numbers<[1], [0], [0], [1], [0, 0, 1, 1], [], []>} : vector<32x8xf32>, vector<8x128xf32>, vector<32x128xf32> -> vector<32x128xf32>
    %21 = arith.mulf %12, %20 : vector<32x128xf32>
    %c0_16 = arith.constant 0 : index
    %c0_17 = arith.constant 0 : index
    %22 = vector.load %arg4[%c0_16, %c0_17] : memref<1x128xf32, #tpu.memory_space<vmem>>, vector<1x128xf32>
    %23 = vector.broadcast %22 : vector<1x128xf32> to vector<32x128xf32>
    %24 = arith.mulf %21, %23 : vector<32x128xf32>
    %c0_18 = arith.constant 0 : index
    %c0_19 = arith.constant 0 : index
    %25 = vector.load %arg5[%c0_18, %c0_19] : memref<1x128xf32, #tpu.memory_space<vmem>>, vector<1x128xf32>
    %26 = vector.broadcast %25 : vector<1x128xf32> to vector<32x128xf32>
    %27 = arith.addf %24, %26 : vector<32x128xf32>
    %28 = arith.truncf %27 : vector<32x128xf32> to vector<32x128xbf16>
    %c0_20 = arith.constant 0 : index
    %c0_21 = arith.constant 0 : index
    %29 = vector.load %arg8[%c0_20, %c0_21] : memref<32x128xbf16, #tpu.memory_space<vmem>>, vector<32x128xbf16>
    tpu.vector_store %arg8[%c0_20, %c0_21], %28 {strides = array<i32>} : memref<32x128xbf16, #tpu.memory_space<vmem>>, vector<32x128xbf16>,
    return
  }
  func.func @transform_0(%arg0: i32) -> (i32, i32) {
    %c0_i32 = arith.constant 0 : i32
    %c0_i32_0 = arith.constant 0 : i32
    %c0_i32_1 = arith.constant 0 : i32
    return %c0_i32, %c0_i32_0 : i32, i32
  }
  func.func @transform_1(%arg0: i32) -> (i32, i32) {
    %c0_i32 = arith.constant 0 : i32
    %c0_i32_0 = arith.constant 0 : i32
    %c0_i32_1 = arith.constant 0 : i32
    return %c0_i32, %c0_i32_0 : i32, i32
  }
  func.func @transform_2(%arg0: i32) -> (i32, i32) {
    %c0_i32 = arith.constant 0 : i32
    %c0_i32_0 = arith.constant 0 : i32
    %c0_i32_1 = arith.constant 0 : i32
    return %c0_i32, %c0_i32_0 : i32, i32
  }
  func.func @transform_3(%arg0: i32) -> (i32, i32) {
    %c0_i32 = arith.constant 0 : i32
    %c0_i32_0 = arith.constant 0 : i32
    %c0_i32_1 = arith.constant 0 : i32
    return %c0_i32, %c0_i32_0 : i32, i32
  }
  func.func @transform_4(%arg0: i32) -> (i32, i32) {
    %c0_i32 = arith.constant 0 : i32
    %c0_i32_0 = arith.constant 0 : i32
    %c0_i32_1 = arith.constant 0 : i32
    return %c0_i32, %c0_i32_0 : i32, i32
  }
  func.func @transform_5(%arg0: i32) -> (i32, i32) {
    %c0_i32 = arith.constant 0 : i32
    %c0_i32_0 = arith.constant 0 : i32
    %c0_i32_1 = arith.constant 0 : i32
    return %c0_i32, %c0_i32_0 : i32, i32
  }
  func.func @transform_6(%arg0: i32) -> (i32, i32) {
    %c0_i32 = arith.constant 0 : i32
    %c0_i32_0 = arith.constant 0 : i32
    %c0_i32_1 = arith.constant 0 : i32
    return %c0_i32, %c0_i32_0 : i32, i32
  }
  func.func @transform_7(%arg0: i32) -> (i32, i32) {
    %c0_i32 = arith.constant 0 : i32
    %c0_i32_0 = arith.constant 0 : i32
    %c0_i32_1 = arith.constant 0 : i32
    return %c0_i32, %c0_i32_0 : i32, i32
  }
}

module attributes {stable_mosaic.version = 11 : i64} {
  func.func @_conv_mm_kernel(%arg0: i32, %arg1: memref<16x2048xbf16, #tpu.memory_space<vmem>>, %arg2: memref<2048x128xbf16, #tpu.memory_space<vmem>>, %arg3: memref<1x128xf32, #tpu.memory_space<vmem>>, %arg4: memref<16x128xf32, #tpu.memory_space<vmem>>) attributes {dimension_semantics = [#tpu.dimension_semantics<parallel>], iteration_bounds = array<i64: 1>, scalar_prefetch = 0 : i64, scratch_operands = 0 : i64, tpu.core_type = #tpu.core_type<tc>, window_params = [{transform_indices = @transform_0, window_bounds = array<i64: 16, 2048>}, {pipeline_mode = #tpu.pipeline_mode<synchronous>, transform_indices = @transform_1, window_bounds = array<i64: 2048, 128>}, {pipeline_mode = #tpu.pipeline_mode<synchronous>, transform_indices = @transform_2, window_bounds = array<i64: 1, 128>}, {transform_indices = @transform_3, window_bounds = array<i64: 16, 128>}]} {
    %c0 = arith.constant 0 : index
    %c0_0 = arith.constant 0 : index
    %0 = vector.load %arg1[%c0, %c0_0] : memref<16x2048xbf16, #tpu.memory_space<vmem>>, vector<16x2048xbf16>
    %c0_1 = arith.constant 0 : index
    %c0_2 = arith.constant 0 : index
    %1 = vector.load %arg2[%c0_1, %c0_2] : memref<2048x128xbf16, #tpu.memory_space<vmem>>, vector<2048x128xbf16>
    %cst = arith.constant dense<0.000000e+00> : vector<16x128xf32>
    %2 = tpu.matmul %0, %1, %cst {dimension_numbers = #tpu.dot_dimension_numbers<[1], [0], [0], [1], [0, 0, 1, 1], [], []>} : vector<16x2048xbf16>, vector<2048x128xbf16>, vector<16x128xf32> -> vector<16x128xf32>
    %c0_3 = arith.constant 0 : index
    %c0_4 = arith.constant 0 : index
    %3 = vector.load %arg3[%c0_3, %c0_4] : memref<1x128xf32, #tpu.memory_space<vmem>>, vector<1x128xf32>
    %4 = vector.broadcast %3 : vector<1x128xf32> to vector<16x128xf32>
    %5 = arith.addf %2, %4 : vector<16x128xf32>
    %c0_5 = arith.constant 0 : index
    %c0_6 = arith.constant 0 : index
    %6 = vector.load %arg4[%c0_5, %c0_6] : memref<16x128xf32, #tpu.memory_space<vmem>>, vector<16x128xf32>
    tpu.vector_store %arg4[%c0_5, %c0_6], %5 {strides = array<i32>} : memref<16x128xf32, #tpu.memory_space<vmem>>, vector<16x128xf32>,
    return
  }
  func.func @transform_0(%arg0: i32) -> (i32, i32) {
    %c0_i32 = arith.constant 0 : i32
    %c0_i32_0 = arith.constant 0 : i32
    return %arg0, %c0_i32 : i32, i32
  }
  func.func @transform_1(%arg0: i32) -> (i32, i32) {
    %c0_i32 = arith.constant 0 : i32
    %c0_i32_0 = arith.constant 0 : i32
    %c0_i32_1 = arith.constant 0 : i32
    return %c0_i32, %c0_i32_0 : i32, i32
  }
  func.func @transform_2(%arg0: i32) -> (i32, i32) {
    %c0_i32 = arith.constant 0 : i32
    %c0_i32_0 = arith.constant 0 : i32
    %c0_i32_1 = arith.constant 0 : i32
    return %c0_i32, %c0_i32_0 : i32, i32
  }
  func.func @transform_3(%arg0: i32) -> (i32, i32) {
    %c0_i32 = arith.constant 0 : i32
    %c0_i32_0 = arith.constant 0 : i32
    return %arg0, %c0_i32 : i32, i32
  }
}

</mosaic_0001>

<llo_original>
// kernel: simple_discriminator_forward.4
$region0: #{simple_discriminator_forward.4}
  #allocation0 [shape = 'u32[]', space=smem, size = 0x4, offset = 0x4, fixed_abs, tag = 'smem constant byte address 0x4 - core index']
  #allocation1 [shape = 'u32[144,128]{1,0:T(1,128)}', space=vmem, size = 0x12000, scoped, tag = 'internal scratch']
  %s0 = inlined_call_operand.vmem [shape: bf16[128,1664], index: 0, kind: input, shape index: {}]
  %s1 = inlined_call_operand.vmem [shape: bf16[1664,128], index: 1, kind: input, shape index: {}]
  %s2 = inlined_call_operand.vmem [shape: f32[1,128], index: 2, kind: input, shape index: {}]
  %s3 = inlined_call_operand.vmem [shape: bf16[128,128], index: 3, kind: output, shape index: {}]
  %s4 = sld [smem:[#allocation0]]
  $region45: #{simple_discriminator_forward.4} parent=0
    _
  %s6 = ssub.s32 1, %s4
  %s7 = scalar_select 0, %s6, %s4
  loop: start=0, step=1, limit=4
  $region2: #{simple_discriminator_forward.4} parent=0 // loop_pre_header
    _
  $region3: #{simple_discriminator_forward.4} parent=0 // loop_header
    %s9 = sphi 0, %s13
    %p10 = scmp.ge.s32.totalorder %s9, 4
    %s19 = sphi 0, %s21
    %s22 = sphi 0, %s19
    %s23 = sphi 0, %s22
    %s39 = sphi 0, %s23
    %s43 = sphi 0, %s43
    %s45 = sphi 0, %s43
    %s46 = sphi 0, %s45
    %s60 = sphi 0, %s46
    %s64 = sphi 0, %s64
    %s66 = sphi 0, %s64
    %s67 = sphi 0, %s66
    %s81 = sphi 0, %s67
    %s87 = sphi 0, %s89
    %s90 = sphi 0, %s87
    %s91 = sphi 0, %s90
    %s107 = sphi 0, %s91
  $region4: #{simple_discriminator_forward.4} parent=0 // loop_header_branch
    %12 = sbr.rel (%p10) target = $region8
  $region5: #{simple_discriminator_forward.4} parent=0 // loop_body
    %s14 = ssub.s32 %s9, 1
    %s15 = ssub.s32 %s9, 2
    %s16 = sadd.s32 %s9, 1
    %s17 = ssub.s32 %s9, %s16
    %p18 = scmp.eq.s32.totalorder %s17, 0
    %s20 = sadd.s32 %s19, 1
    %s21 = scalar_select %p18, %s19, %s20
    %p24 = pneg %p18
    %p25 = scmp.eq.s32.totalorder %s9, 1
    %p26 = por %p24, %p25
    %p27 = scmp.ne.s32.totalorder %s19, %s22
    %p28 = scmp.eq.s32.totalorder %s9, 0
    %p29 = por %p27, %p28
    %p30 = scmp.ne.s32.totalorder %s19, %s22
    %p31 = scmp.eq.s32.totalorder %s14, 1
    %p32 = por %p30, %p31
    %p33 = scmp.ne.s32.totalorder %s22, %s23
    %p34 = scmp.eq.s32.totalorder %s14, 0
    %p35 = por %p33, %p34
    %p36 = scmp.ne.s32.totalorder %s22, %s23
    %p37 = scmp.eq.s32.totalorder %s15, 1
    %p38 = por %p36, %p37
    %p40 = scmp.ne.s32.totalorder %s23, %s39
    %p41 = scmp.eq.s32.totalorder %s15, 0
    %p42 = por %p40, %p41
    %s44 = sadd.s32 %s43, 1
    %p47 = scmp.eq.s32.totalorder %s9, 1
    %p48 = scmp.ne.s32.totalorder %s43, %s45
    %p49 = scmp.eq.s32.totalorder %s9, 0
    %p50 = por %p48, %p49
    %p51 = scmp.ne.s32.totalorder %s43, %s45
    %p52 = scmp.eq.s32.totalorder %s14, 1
    %p53 = por %p51, %p52
    %p54 = scmp.ne.s32.totalorder %s45, %s46
    %p55 = scmp.eq.s32.totalorder %s14, 0
    %p56 = por %p54, %p55
    %p57 = scmp.ne.s32.totalorder %s45, %s46
    %p58 = scmp.eq.s32.totalorder %s15, 1
    %p59 = por %p57, %p58
    %p61 = scmp.ne.s32.totalorder %s46, %s60
    %p62 = scmp.eq.s32.totalorder %s15, 0
    %p63 = por %p61, %p62
    %s65 = sadd.s32 %s64, 1
    %p68 = scmp.eq.s32.totalorder %s9, 1
    %p69 = scmp.ne.s32.totalorder %s64, %s66
    %p70 = scmp.eq.s32.totalorder %s9, 0
    %p71 = por %p69, %p70
    %p72 = scmp.ne.s32.totalorder %s64, %s66
    %p73 = scmp.eq.s32.totalorder %s14, 1
    %p74 = por %p72, %p73
    %p75 = scmp.ne.s32.totalorder %s66, %s67
    %p76 = scmp.eq.s32.totalorder %s14, 0
    %p77 = por %p75, %p76
    %p78 = scmp.ne.s32.totalorder %s66, %s67
    %p79 = scmp.eq.s32.totalorder %s15, 1
    %p80 = por %p78, %p79
    %p82 = scmp.ne.s32.totalorder %s67, %s81
    %p83 = scmp.eq.s32.totalorder %s15, 0
    %p84 = por %p82, %p83
    %s85 = ssub.s32 %s9, %s16
    %p86 = scmp.eq.s32.totalorder %s85, 0
    %s88 = sadd.s32 %s87, 1
    %s89 = scalar_select %p86, %s87, %s88
    %p92 = pneg %p86
    %p93 = scmp.eq.s32.totalorder %s9, 1
    %p94 = por %p92, %p93
    %p95 = scmp.ne.s32.totalorder %s87, %s90
    %p96 = scmp.eq.s32.totalorder %s9, 0
    %p97 = por %p95, %p96
    %p98 = scmp.ne.s32.totalorder %s87, %s90
    %p99 = scmp.eq.s32.totalorder %s14, 1
    %p100 = por %p98, %p99
    %p101 = scmp.ne.s32.totalorder %s90, %s91
    %p102 = scmp.eq.s32.totalorder %s14, 0
    %p103 = por %p101, %p102
    %p104 = scmp.ne.s32.totalorder %s90, %s91
    %p105 = scmp.eq.s32.totalorder %s15, 1
    %p106 = por %p104, %p105
    %p108 = scmp.ne.s32.totalorder %s91, %s107
    %p109 = scmp.eq.s32.totalorder %s15, 0
    %p110 = por %p108, %p109
    %p111 = scmp.le.s32.totalorder 1, %s9
    %p112 = scmp.lt.s32.totalorder %s9, 3
    %p113 = pnand %p111, %p112
    %p114 = pneg %p113
    // Predicated region
    $region9: #{simple_discriminator_forward.4} parent=5 // pred_check
      _
    $region10: #{simple_discriminator_forward.4} parent=5 // pred_check_branch
      %116 = sbr.rel (%p113) target = $region12
    $region11: #{simple_discriminator_forward.4} parent=5 // pred_region
      %s117 = ssub.s32 %s9, 1
      // Predicated region
      $region13: #{simple_discriminator_forward.4} parent=11 // pred_check
        %p118 = pneg %p56
      $region14: #{simple_discriminator_forward.4} parent=11 // pred_check_branch
        %120 = sbr.rel (%p118) target = $region16
      $region15: #{simple_discriminator_forward.4} parent=11 // pred_region
        _
      $region16: #{simple_discriminator_forward.4} parent=11 // pred_fallthru
        _
      // Predicated region
      $region17: #{simple_discriminator_forward.4} parent=11 // pred_check
        %p121 = pneg %p77
      $region18: #{simple_discriminator_forward.4} parent=11 // pred_check_branch
        %123 = sbr.rel (%p121) target = $region20
      $region19: #{simple_discriminator_forward.4} parent=11 // pred_region
        _
      $region20: #{simple_discriminator_forward.4} parent=11 // pred_fallthru
        _
    $region12: #{simple_discriminator_forward.4} parent=5 // pred_fallthru
      _
    %p124 = scmp.lt.s32.totalorder %s9, 2
    // Predicated region
    $region21: #{simple_discriminator_forward.4} parent=5 // pred_check
      %p125 = pneg %p124
    $region22: #{simple_discriminator_forward.4} parent=5 // pred_check_branch
      %127 = sbr.rel (%p125) target = $region24
    $region23: #{simple_discriminator_forward.4} parent=5 // pred_region
      // Predicated region
      $region25: #{simple_discriminator_forward.4} parent=23 // pred_check
        %p128 = pneg %p29
      $region26: #{simple_discriminator_forward.4} parent=23 // pred_check_branch
        %130 = sbr.rel (%p128) target = $region28
      $region27: #{simple_discriminator_forward.4} parent=23 // pred_region
        %s131 = smul.u32 8, %s9
        %p132 = scmp.lt.s32.totalorder %s131, 15
        %s133 = scalar_select %p132, %s131, 15
        %s134 = smul.addr %s133, 13
        %s135 = smul.addr %s134, 4
        %s136 = scalar_lea.vmem %s0, %s135
        %s137 = smul.u32 8, %s9
      $region28: #{simple_discriminator_forward.4} parent=23 // pred_fallthru
        _
    $region24: #{simple_discriminator_forward.4} parent=5 // pred_fallthru
      _
    %p138 = scmp.le.s32.totalorder 1, %s9
    %p139 = scmp.lt.s32.totalorder %s9, 3
    %p140 = pnand %p138, %p139
    %p141 = pneg %p140
    // Predicated region
    $region29: #{simple_discriminator_forward.4} parent=5 // pred_check
      _
    $region30: #{simple_discriminator_forward.4} parent=5 // pred_check_branch
      %143 = sbr.rel (%p140) target = $region32
    $region31: #{simple_discriminator_forward.4} parent=5 // pred_region
      %s144 = ssub.s32 %s9, 1
      %s145 = smul.u32 8, %s14
      %p146 = scmp.lt.s32.totalorder %s145, 15
      %s147 = scalar_select %p146, %s145, 15
      %s148 = smul.addr %s147, 13
      %s149 = smul.addr %s148, 4
      %s150 = scalar_lea.vmem %s0, %s149
      %p151 = pneg %p35
      %p152 = pneg %p32
      %p153 = pneg %p56
      %p154 = pneg %p53
      %p155 = pneg %p77
      %p156 = pneg %p74
      %p157 = pneg %p103
      %p158 = pneg %p100
      %s159 = smul.u32 8, %s14
      %p160 = scmp.lt.s32.totalorder %s159, 15
      %s161 = scalar_select %p160, %s159, 15
      %s162 = smul.addr %s161, 4
      %s163 = scalar_lea.vmem %s3, %s162
      %s164 = smul.u32 8, %s14
      %p165 = scmp.lt.s32.totalorder %s164, 15
      %s166 = scalar_select %p165, %s164, 15
      %s167 = smul.addr %s166, 13
      %s168 = smul.addr %s167, 4
      %s169 = scalar_lea.vmem %s0, %s168
      %s170 = smul.u32 8, %s14
      %s171 = smul.u32 8, %s14
      %p172 = scmp.lt.s32.totalorder %s171, 15
      %s173 = scalar_select %p172, %s171, 15
      %s174 = smul.addr %s173, 4
      %s175 = scalar_lea.vmem %s3, %s174
      %s176 = smul.u32 8, %s14
      %v178 = vld [vmem:[%s169] sm:$0xff]
      %v179 = vld [vmem:[%s169 + $0x8] sm:$0xff]
      %v180 = vld [vmem:[%s169 + $0x10] sm:$0xff]
      %v181 = vld [vmem:[%s169 + $0x18] sm:$0xff]
      %v182 = vld [vmem:[%s169 + $0x20] sm:$0xff]
      %v183 = vld [vmem:[%s169 + $0x28] sm:$0xff]
      %v184 = vld [vmem:[%s169 + $0x30] sm:$0xf]
      %v185 = vld [vmem:[%s169 + $0x34] sm:$0xff]
      %v186 = vld [vmem:[%s169 + $0x3c] sm:$0xff]
      %v187 = vld [vmem:[%s169 + $0x44] sm:$0xff]
      %v188 = vld [vmem:[%s169 + $0x4c] sm:$0xff]
      %v189 = vld [vmem:[%s169 + $0x54] sm:$0xff]
      %v190 = vld [vmem:[%s169 + $0x5c] sm:$0xff]
      %v191 = vld [vmem:[%s169 + $0x64] sm:$0xf]
      %v192 = vld [vmem:[%s169 + $0x68] sm:$0xff]
      %v193 = vld [vmem:[%s169 + $0x70] sm:$0xff]
      %v194 = vld [vmem:[%s169 + $0x78] sm:$0xff]
      %v195 = vld [vmem:[%s169 + $0x80] sm:$0xff]
      %v196 = vld [vmem:[%s169 + $0x88] sm:$0xff]
      %v197 = vld [vmem:[%s169 + $0x90] sm:$0xff]
      %v198 = vld [vmem:[%s169 + $0x98] sm:$0xf]
      %v199 = vld [vmem:[%s169 + $0x9c] sm:$0xff]
      %v200 = vld [vmem:[%s169 + $0xa4] sm:$0xff]
      %v201 = vld [vmem:[%s169 + $0xac] sm:$0xff]
      %v202 = vld [vmem:[%s169 + $0xb4] sm:$0xff]
      %v203 = vld [vmem:[%s169 + $0xbc] sm:$0xff]
      %v204 = vld [vmem:[%s169 + $0xc4] sm:$0xff]
      %v205 = vld [vmem:[%s169 + $0xcc] sm:$0xf]
      %v206 = vld [vmem:[%s169 + $0xd0] sm:$0xff]
      %v207 = vld [vmem:[%s169 + $0xd8] sm:$0xff]
      %v208 = vld [vmem:[%s169 + $0xe0] sm:$0xff]
      %v209 = vld [vmem:[%s169 + $0xe8] sm:$0xff]
      %v210 = vld [vmem:[%s169 + $0xf0] sm:$0xff]
      %v211 = vld [vmem:[%s169 + $0xf8] sm:$0xff]
      %v212 = vld [vmem:[%s169 + $0x100] sm:$0xf]
      %v213 = vld [vmem:[%s169 + $0x104] sm:$0xff]
      %v214 = vld [vmem:[%s169 + $0x10c] sm:$0xff]
      %v215 = vld [vmem:[%s169 + $0x114] sm:$0xff]
      %v216 = vld [vmem:[%s169 + $0x11c] sm:$0xff]
      %v217 = vld [vmem:[%s169 + $0x124] sm:$0xff]
      %v218 = vld [vmem:[%s169 + $0x12c] sm:$0xff]
      %v219 = vld [vmem:[%s169 + $0x134] sm:$0xf]
      %v220 = vld [vmem:[%s169 + $0x138] sm:$0xff]
      %v221 = vld [vmem:[%s169 + $0x140] sm:$0xff]
      %v222 = vld [vmem:[%s169 + $0x148] sm:$0xff]
      %v223 = vld [vmem:[%s169 + $0x150] sm:$0xff]
      %v224 = vld [vmem:[%s169 + $0x158] sm:$0xff]
      %v225 = vld [vmem:[%s169 + $0x160] sm:$0xff]
      %v226 = vld [vmem:[%s169 + $0x168] sm:$0xf]
      %v227 = vld [vmem:[%s169 + $0x16c] sm:$0xff]
      %v228 = vld [vmem:[%s169 + $0x174] sm:$0xff]
      %v229 = vld [vmem:[%s169 + $0x17c] sm:$0xff]
      %v230 = vld [vmem:[%s169 + $0x184] sm:$0xff]
      %v231 = vld [vmem:[%s169 + $0x18c] sm:$0xff]
      %v232 = vld [vmem:[%s169 + $0x194] sm:$0xff]
      %v233 = vld [vmem:[%s169 + $0x19c] sm:$0xf]
      %v234 = vld [vmem:[%s1] sm:$0xf]
      %v235 = vld [vmem:[%s1 + $0x4] sm:$0xf]
      %v236 = vld [vmem:[%s1 + $0x8] sm:$0xf]
      %v237 = vld [vmem:[%s1 + $0xc] sm:$0xf]
      %v238 = vld [vmem:[%s1 + $0x10] sm:$0xf]
      %v239 = vld [vmem:[%s1 + $0x14] sm:$0xf]
      %v240 = vld [vmem:[%s1 + $0x18] sm:$0xf]
      %v241 = vld [vmem:[%s1 + $0x1c] sm:$0xf]
      %v242 = vld [vmem:[%s1 + $0x20] sm:$0xf]
      %v243 = vld [vmem:[%s1 + $0x24] sm:$0xf]
      %v244 = vld [vmem:[%s1 + $0x28] sm:$0xf]
      %v245 = vld [vmem:[%s1 + $0x2c] sm:$0xf]
      %v246 = vld [vmem:[%s1 + $0x30] sm:$0xf]
      %v247 = vld [vmem:[%s1 + $0x34] sm:$0xf]
      %v248 = vld [vmem:[%s1 + $0x38] sm:$0xf]
      %v249 = vld [vmem:[%s1 + $0x3c] sm:$0xf]
      %v250 = vld [vmem:[%s1 + $0x40] sm:$0xf]
      %v251 = vld [vmem:[%s1 + $0x44] sm:$0xf]
      %v252 = vld [vmem:[%s1 + $0x48] sm:$0xf]
      %v253 = vld [vmem:[%s1 + $0x4c] sm:$0xf]
      %v254 = vld [vmem:[%s1 + $0x50] sm:$0xf]
      %v255 = vld [vmem:[%s1 + $0x54] sm:$0xf]
      %v256 = vld [vmem:[%s1 + $0x58] sm:$0xf]
      %v257 = vld [vmem:[%s1 + $0x5c] sm:$0xf]
      %v258 = vld [vmem:[%s1 + $0x60] sm:$0xf]
      %v259 = vld [vmem:[%s1 + $0x64] sm:$0xf]
      %v260 = vld [vmem:[%s1 + $0x68] sm:$0xf]
      %v261 = vld [vmem:[%s1 + $0x6c] sm:$0xf]
      %v262 = vld [vmem:[%s1 + $0x70] sm:$0xf]
      %v263 = vld [vmem:[%s1 + $0x74] sm:$0xf]
      %v264 = vld [vmem:[%s1 + $0x78] sm:$0xf]
      %v265 = vld [vmem:[%s1 + $0x7c] sm:$0xf]
      %v266 = vld [vmem:[%s1 + $0x80] sm:$0xf]
      %v267 = vld [vmem:[%s1 + $0x84] sm:$0xf]
      %v268 = vld [vmem:[%s1 + $0x88] sm:$0xf]
      %v269 = vld [vmem:[%s1 + $0x8c] sm:$0xf]
      %v270 = vld [vmem:[%s1 + $0x90] sm:$0xf]
      %v271 = vld [vmem:[%s1 + $0x94] sm:$0xf]
      %v272 = vld [vmem:[%s1 + $0x98] sm:$0xf]
      %v273 = vld [vmem:[%s1 + $0x9c] sm:$0xf]
      %v274 = vld [vmem:[%s1 + $0xa0] sm:$0xf]
      %v275 = vld [vmem:[%s1 + $0xa4] sm:$0xf]
      %v276 = vld [vmem:[%s1 + $0xa8] sm:$0xf]
      %v277 = vld [vmem:[%s1 + $0xac] sm:$0xf]
      %v278 = vld [vmem:[%s1 + $0xb0] sm:$0xf]
      %v279 = vld [vmem:[%s1 + $0xb4] sm:$0xf]
      %v280 = vld [vmem:[%s1 + $0xb8] sm:$0xf]
      %v281 = vld [vmem:[%s1 + $0xbc] sm:$0xf]
      %v282 = vld [vmem:[%s1 + $0xc0] sm:$0xf]
      %v283 = vld [vmem:[%s1 + $0xc4] sm:$0xf]
      %v284 = vld [vmem:[%s1 + $0xc8] sm:$0xf]
      %v285 = vld [vmem:[%s1 + $0xcc] sm:$0xf]
      %v286 = vld [vmem:[%s1 + $0xd0] sm:$0xf]
      %v287 = vld [vmem:[%s1 + $0xd4] sm:$0xf]
      %v288 = vld [vmem:[%s1 + $0xd8] sm:$0xf]
      %v289 = vld [vmem:[%s1 + $0xdc] sm:$0xf]
      %v290 = vld [vmem:[%s1 + $0xe0] sm:$0xf]
      %v291 = vld [vmem:[%s1 + $0xe4] sm:$0xf]
      %v292 = vld [vmem:[%s1 + $0xe8] sm:$0xf]
      %v293 = vld [vmem:[%s1 + $0xec] sm:$0xf]
      %v294 = vld [vmem:[%s1 + $0xf0] sm:$0xf]
      %v295 = vld [vmem:[%s1 + $0xf4] sm:$0xf]
      %v296 = vld [vmem:[%s1 + $0xf8] sm:$0xf]
      %v297 = vld [vmem:[%s1 + $0xfc] sm:$0xf]
      %v298 = vld [vmem:[%s1 + $0x100] sm:$0xf]
      %v299 = vld [vmem:[%s1 + $0x104] sm:$0xf]
      %v300 = vld [vmem:[%s1 + $0x108] sm:$0xf]
      %v301 = vld [vmem:[%s1 + $0x10c] sm:$0xf]
      %v302 = vld [vmem:[%s1 + $0x110] sm:$0xf]
      %v303 = vld [vmem:[%s1 + $0x114] sm:$0xf]
      %v304 = vld [vmem:[%s1 + $0x118] sm:$0xf]
      %v305 = vld [vmem:[%s1 + $0x11c] sm:$0xf]
      %v306 = vld [vmem:[%s1 + $0x120] sm:$0xf]
      %v307 = vld [vmem:[%s1 + $0x124] sm:$0xf]
      %v308 = vld [vmem:[%s1 + $0x128] sm:$0xf]
      %v309 = vld [vmem:[%s1 + $0x12c] sm:$0xf]
      %v310 = vld [vmem:[%s1 + $0x130] sm:$0xf]
      %v311 = vld [vmem:[%s1 + $0x134] sm:$0xf]
      %v312 = vld [vmem:[%s1 + $0x138] sm:$0xf]
      %v313 = vld [vmem:[%s1 + $0x13c] sm:$0xf]
      %v314 = vld [vmem:[%s1 + $0x140] sm:$0xf]
      %v315 = vld [vmem:[%s1 + $0x144] sm:$0xf]
      %v316 = vld [vmem:[%s1 + $0x148] sm:$0xf]
      %v317 = vld [vmem:[%s1 + $0x14c] sm:$0xf]
      %v318 = vld [vmem:[%s1 + $0x150] sm:$0xf]
      %v319 = vld [vmem:[%s1 + $0x154] sm:$0xf]
      %v320 = vld [vmem:[%s1 + $0x158] sm:$0xf]
      %v321 = vld [vmem:[%s1 + $0x15c] sm:$0xf]
      %v322 = vld [vmem:[%s1 + $0x160] sm:$0xf]
      %v323 = vld [vmem:[%s1 + $0x164] sm:$0xf]
      %v324 = vld [vmem:[%s1 + $0x168] sm:$0xf]
      %v325 = vld [vmem:[%s1 + $0x16c] sm:$0xf]
      %v326 = vld [vmem:[%s1 + $0x170] sm:$0xf]
      %v327 = vld [vmem:[%s1 + $0x174] sm:$0xf]
      %v328 = vld [vmem:[%s1 + $0x178] sm:$0xf]
      %v329 = vld [vmem:[%s1 + $0x17c] sm:$0xf]
      %v330 = vld [vmem:[%s1 + $0x180] sm:$0xf]
      %v331 = vld [vmem:[%s1 + $0x184] sm:$0xf]
      %v332 = vld [vmem:[%s1 + $0x188] sm:$0xf]
      %v333 = vld [vmem:[%s1 + $0x18c] sm:$0xf]
      %v334 = vld [vmem:[%s1 + $0x190] sm:$0xf]
      %v335 = vld [vmem:[%s1 + $0x194] sm:$0xf]
      %v336 = vld [vmem:[%s1 + $0x198] sm:$0xf]
      %v337 = vld [vmem:[%s1 + $0x19c] sm:$0xf]
      %v338 = vld [vmem:[%s1 + $0x1a0] sm:$0xf]
      %v339 = vld [vmem:[%s1 + $0x1a4] sm:$0xf]
      %v340 = vld [vmem:[%s1 + $0x1a8] sm:$0xf]
      %v341 = vld [vmem:[%s1 + $0x1ac] sm:$0xf]
      %v342 = vld [vmem:[%s1 + $0x1b0] sm:$0xf]
      %v343 = vld [vmem:[%s1 + $0x1b4] sm:$0xf]
      %v344 = vld [vmem:[%s1 + $0x1b8] sm:$0xf]
      %v345 = vld [vmem:[%s1 + $0x1bc] sm:$0xf]
      %v346 = vld [vmem:[%s1 + $0x1c0] sm:$0xf]
      %v347 = vld [vmem:[%s1 + $0x1c4] sm:$0xf]
      %v348 = vld [vmem:[%s1 + $0x1c8] sm:$0xf]
      %v349 = vld [vmem:[%s1 + $0x1cc] sm:$0xf]
      %v350 = vld [vmem:[%s1 + $0x1d0] sm:$0xf]
      %v351 = vld [vmem:[%s1 + $0x1d4] sm:$0xf]
      %v352 = vld [vmem:[%s1 + $0x1d8] sm:$0xf]
      %v353 = vld [vmem:[%s1 + $0x1dc] sm:$0xf]
      %v354 = vld [vmem:[%s1 + $0x1e0] sm:$0xf]
      %v355 = vld [vmem:[%s1 + $0x1e4] sm:$0xf]
      %v356 = vld [vmem:[%s1 + $0x1e8] sm:$0xf]
      %v357 = vld [vmem:[%s1 + $0x1ec] sm:$0xf]
      %v358 = vld [vmem:[%s1 + $0x1f0] sm:$0xf]
      %v359 = vld [vmem:[%s1 + $0x1f4] sm:$0xf]
      %v360 = vld [vmem:[%s1 + $0x1f8] sm:$0xf]
      %v361 = vld [vmem:[%s1 + $0x1fc] sm:$0xf]
      %v362 = vld [vmem:[%s1 + $0x200] sm:$0xf]
      %v363 = vld [vmem:[%s1 + $0x204] sm:$0xf]
      %v364 = vld [vmem:[%s1 + $0x208] sm:$0xf]
      %v365 = vld [vmem:[%s1 + $0x20c] sm:$0xf]
      %v366 = vld [vmem:[%s1 + $0x210] sm:$0xf]
      %v367 = vld [vmem:[%s1 + $0x214] sm:$0xf]
      %v368 = vld [vmem:[%s1 + $0x218] sm:$0xf]
      %v369 = vld [vmem:[%s1 + $0x21c] sm:$0xf]
      %v370 = vld [vmem:[%s1 + $0x220] sm:$0xf]
      %v371 = vld [vmem:[%s1 + $0x224] sm:$0xf]
      %v372 = vld [vmem:[%s1 + $0x228] sm:$0xf]
      %v373 = vld [vmem:[%s1 + $0x22c] sm:$0xf]
      %v374 = vld [vmem:[%s1 + $0x230] sm:$0xf]
      %v375 = vld [vmem:[%s1 + $0x234] sm:$0xf]
      %v376 = vld [vmem:[%s1 + $0x238] sm:$0xf]
      %v377 = vld [vmem:[%s1 + $0x23c] sm:$0xf]
      %v378 = vld [vmem:[%s1 + $0x240] sm:$0xf]
      %v379 = vld [vmem:[%s1 + $0x244] sm:$0xf]
      %v380 = vld [vmem:[%s1 + $0x248] sm:$0xf]
      %v381 = vld [vmem:[%s1 + $0x24c] sm:$0xf]
      %v382 = vld [vmem:[%s1 + $0x250] sm:$0xf]
      %v383 = vld [vmem:[%s1 + $0x254] sm:$0xf]
      %v384 = vld [vmem:[%s1 + $0x258] sm:$0xf]
      %v385 = vld [vmem:[%s1 + $0x25c] sm:$0xf]
      %v386 = vld [vmem:[%s1 + $0x260] sm:$0xf]
      %v387 = vld [vmem:[%s1 + $0x264] sm:$0xf]
      %v388 = vld [vmem:[%s1 + $0x268] sm:$0xf]
      %v389 = vld [vmem:[%s1 + $0x26c] sm:$0xf]
      %v390 = vld [vmem:[%s1 + $0x270] sm:$0xf]
      %v391 = vld [vmem:[%s1 + $0x274] sm:$0xf]
      %v392 = vld [vmem:[%s1 + $0x278] sm:$0xf]
      %v393 = vld [vmem:[%s1 + $0x27c] sm:$0xf]
      %v394 = vld [vmem:[%s1 + $0x280] sm:$0xf]
      %v395 = vld [vmem:[%s1 + $0x284] sm:$0xf]
      %v396 = vld [vmem:[%s1 + $0x288] sm:$0xf]
      %v397 = vld [vmem:[%s1 + $0x28c] sm:$0xf]
      %v398 = vld [vmem:[%s1 + $0x290] sm:$0xf]
      %v399 = vld [vmem:[%s1 + $0x294] sm:$0xf]
      %v400 = vld [vmem:[%s1 + $0x298] sm:$0xf]
      %v401 = vld [vmem:[%s1 + $0x29c] sm:$0xf]
      %v402 = vld [vmem:[%s1 + $0x2a0] sm:$0xf]
      %v403 = vld [vmem:[%s1 + $0x2a4] sm:$0xf]
      %v404 = vld [vmem:[%s1 + $0x2a8] sm:$0xf]
      %v405 = vld [vmem:[%s1 + $0x2ac] sm:$0xf]
      %v406 = vld [vmem:[%s1 + $0x2b0] sm:$0xf]
      %v407 = vld [vmem:[%s1 + $0x2b4] sm:$0xf]
      %v408 = vld [vmem:[%s1 + $0x2b8] sm:$0xf]
      %v409 = vld [vmem:[%s1 + $0x2bc] sm:$0xf]
      %v410 = vld [vmem:[%s1 + $0x2c0] sm:$0xf]
      %v411 = vld [vmem:[%s1 + $0x2c4] sm:$0xf]
      %v412 = vld [vmem:[%s1 + $0x2c8] sm:$0xf]
      %v413 = vld [vmem:[%s1 + $0x2cc] sm:$0xf]
      %v414 = vld [vmem:[%s1 + $0x2d0] sm:$0xf]
      %v415 = vld [vmem:[%s1 + $0x2d4] sm:$0xf]
      %v416 = vld [vmem:[%s1 + $0x2d8] sm:$0xf]
      %v417 = vld [vmem:[%s1 + $0x2dc] sm:$0xf]
      %v418 = vld [vmem:[%s1 + $0x2e0] sm:$0xf]
      %v419 = vld [vmem:[%s1 + $0x2e4] sm:$0xf]
      %v420 = vld [vmem:[%s1 + $0x2e8] sm:$0xf]
      %v421 = vld [vmem:[%s1 + $0x2ec] sm:$0xf]
      %v422 = vld [vmem:[%s1 + $0x2f0] sm:$0xf]
      %v423 = vld [vmem:[%s1 + $0x2f4] sm:$0xf]
      %v424 = vld [vmem:[%s1 + $0x2f8] sm:$0xf]
      %v425 = vld [vmem:[%s1 + $0x2fc] sm:$0xf]
      %v426 = vld [vmem:[%s1 + $0x300] sm:$0xf]
      %v427 = vld [vmem:[%s1 + $0x304] sm:$0xf]
      %v428 = vld [vmem:[%s1 + $0x308] sm:$0xf]
      %v429 = vld [vmem:[%s1 + $0x30c] sm:$0xf]
      %v430 = vld [vmem:[%s1 + $0x310] sm:$0xf]
      %v431 = vld [vmem:[%s1 + $0x314] sm:$0xf]
      %v432 = vld [vmem:[%s1 + $0x318] sm:$0xf]
      %v433 = vld [vmem:[%s1 + $0x31c] sm:$0xf]
      %v434 = vld [vmem:[%s1 + $0x320] sm:$0xf]
      %v435 = vld [vmem:[%s1 + $0x324] sm:$0xf]
      %v436 = vld [vmem:[%s1 + $0x328] sm:$0xf]
      %v437 = vld [vmem:[%s1 + $0x32c] sm:$0xf]
      %v438 = vld [vmem:[%s1 + $0x330] sm:$0xf]
      %v439 = vld [vmem:[%s1 + $0x334] sm:$0xf]
      %v440 = vld [vmem:[%s1 + $0x338] sm:$0xf]
      %v441 = vld [vmem:[%s1 + $0x33c] sm:$0xf]
      %v442 = vld [vmem:[%s2] sm:$0x1]
      %v444 = vlaneseq
      %v445 = vshrl.u32 %v444, 7
      %v446 = vsub.s32 0, %v445
      %v447 = vrot.slane %v442, %v446
      %v505 = vunpack.c.l.b16 %v178
      %v506 = vunpack.c.h.b16 %v178
      %v507 = vunpack.c.l.b16 %v179
      %v508 = vunpack.c.h.b16 %v179
      %v509 = vunpack.c.l.b16 %v180
      %v510 = vunpack.c.h.b16 %v180
      %v511 = vunpack.c.l.b16 %v181
      %v512 = vunpack.c.h.b16 %v181
      %v513 = vunpack.c.l.b16 %v182
      %v514 = vunpack.c.h.b16 %v182
      %v515 = vunpack.c.l.b16 %v183
      %v516 = vunpack.c.h.b16 %v183
      %v517 = vunpack.c.l.b16 %v184
      %v518 = vunpack.c.l.b16 %v185
      %v519 = vunpack.c.h.b16 %v185
      %v520 = vunpack.c.l.b16 %v186
      %v521 = vunpack.c.h.b16 %v186
      %v522 = vunpack.c.l.b16 %v187
      %v523 = vunpack.c.h.b16 %v187
      %v524 = vunpack.c.l.b16 %v188
      %v525 = vunpack.c.h.b16 %v188
      %v526 = vunpack.c.l.b16 %v189
      %v527 = vunpack.c.h.b16 %v189
      %v528 = vunpack.c.l.b16 %v190
      %v529 = vunpack.c.h.b16 %v190
      %v530 = vunpack.c.l.b16 %v191
      %v531 = vunpack.c.l.b16 %v192
      %v532 = vunpack.c.h.b16 %v192
      %v533 = vunpack.c.l.b16 %v193
      %v534 = vunpack.c.h.b16 %v193
      %v535 = vunpack.c.l.b16 %v194
      %v536 = vunpack.c.h.b16 %v194
      %v537 = vunpack.c.l.b16 %v195
      %v538 = vunpack.c.h.b16 %v195
      %v539 = vunpack.c.l.b16 %v196
      %v540 = vunpack.c.h.b16 %v196
      %v541 = vunpack.c.l.b16 %v197
      %v542 = vunpack.c.h.b16 %v197
      %v543 = vunpack.c.l.b16 %v198
      %v544 = vunpack.c.l.b16 %v199
      %v545 = vunpack.c.h.b16 %v199
      %v546 = vunpack.c.l.b16 %v200
      %v547 = vunpack.c.h.b16 %v200
      %v548 = vunpack.c.l.b16 %v201
      %v549 = vunpack.c.h.b16 %v201
      %v550 = vunpack.c.l.b16 %v202
      %v551 = vunpack.c.h.b16 %v202
      %v552 = vunpack.c.l.b16 %v203
      %v553 = vunpack.c.h.b16 %v203
      %v554 = vunpack.c.l.b16 %v204
      %v555 = vunpack.c.h.b16 %v204
      %v556 = vunpack.c.l.b16 %v205
      %v557 = vunpack.c.l.b16 %v206
      %v558 = vunpack.c.h.b16 %v206
      %v559 = vunpack.c.l.b16 %v207
      %v560 = vunpack.c.h.b16 %v207
      %v561 = vunpack.c.l.b16 %v208
      %v562 = vunpack.c.h.b16 %v208
      %v563 = vunpack.c.l.b16 %v209
      %v564 = vunpack.c.h.b16 %v209
      %v565 = vunpack.c.l.b16 %v210
      %v566 = vunpack.c.h.b16 %v210
      %v567 = vunpack.c.l.b16 %v211
      %v568 = vunpack.c.h.b16 %v211
      %v569 = vunpack.c.l.b16 %v212
      %v570 = vunpack.c.l.b16 %v213
      %v571 = vunpack.c.h.b16 %v213
      %v572 = vunpack.c.l.b16 %v214
      %v573 = vunpack.c.h.b16 %v214
      %v574 = vunpack.c.l.b16 %v215
      %v575 = vunpack.c.h.b16 %v215
      %v576 = vunpack.c.l.b16 %v216
      %v577 = vunpack.c.h.b16 %v216
      %v578 = vunpack.c.l.b16 %v217
      %v579 = vunpack.c.h.b16 %v217
      %v580 = vunpack.c.l.b16 %v218
      %v581 = vunpack.c.h.b16 %v218
      %v582 = vunpack.c.l.b16 %v219
      %v583 = vunpack.c.l.b16 %v220
      %v584 = vunpack.c.h.b16 %v220
      %v585 = vunpack.c.l.b16 %v221
      %v586 = vunpack.c.h.b16 %v221
      %v587 = vunpack.c.l.b16 %v222
      %v588 = vunpack.c.h.b16 %v222
      %v589 = vunpack.c.l.b16 %v223
      %v590 = vunpack.c.h.b16 %v223
      %v591 = vunpack.c.l.b16 %v224
      %v592 = vunpack.c.h.b16 %v224
      %v593 = vunpack.c.l.b16 %v225
      %v594 = vunpack.c.h.b16 %v225
      %v595 = vunpack.c.l.b16 %v226
      %v596 = vunpack.c.l.b16 %v227
      %v597 = vunpack.c.h.b16 %v227
      %v598 = vunpack.c.l.b16 %v228
      %v599 = vunpack.c.h.b16 %v228
      %v600 = vunpack.c.l.b16 %v229
      %v601 = vunpack.c.h.b16 %v229
      %v602 = vunpack.c.l.b16 %v230
      %v603 = vunpack.c.h.b16 %v230
      %v604 = vunpack.c.l.b16 %v231
      %v605 = vunpack.c.h.b16 %v231
      %v606 = vunpack.c.l.b16 %v232
      %v607 = vunpack.c.h.b16 %v232
      %v608 = vunpack.c.l.b16 %v233
      %v609 = vpack.c.b16 %v518, %v505
      %v610 = vpack.c.b16 %v519, %v506
      %v611 = vpack.c.b16 %v520, %v507
      %v612 = vpack.c.b16 %v521, %v508
      %v613 = vpack.c.b16 %v522, %v509
      %v614 = vpack.c.b16 %v523, %v510
      %v615 = vpack.c.b16 %v524, %v511
      %v616 = vpack.c.b16 %v525, %v512
      %v617 = vpack.c.b16 %v526, %v513
      %v618 = vpack.c.b16 %v527, %v514
      %v619 = vpack.c.b16 %v528, %v515
      %v620 = vpack.c.b16 %v529, %v516
      %v621 = vpack.c.b16 %v530, %v517
      %v622 = vpack.c.b16 %v544, %v531
      %v623 = vpack.c.b16 %v545, %v532
      %v624 = vpack.c.b16 %v546, %v533
      %v625 = vpack.c.b16 %v547, %v534
      %v626 = vpack.c.b16 %v548, %v535
      %v627 = vpack.c.b16 %v549, %v536
      %v628 = vpack.c.b16 %v550, %v537
      %v629 = vpack.c.b16 %v551, %v538
      %v630 = vpack.c.b16 %v552, %v539
      %v631 = vpack.c.b16 %v553, %v540
      %v632 = vpack.c.b16 %v554, %v541
      %v633 = vpack.c.b16 %v555, %v542
      %v634 = vpack.c.b16 %v556, %v543
      %v635 = vpack.c.b16 %v570, %v557
      %v636 = vpack.c.b16 %v571, %v558
      %v637 = vpack.c.b16 %v572, %v559
      %v638 = vpack.c.b16 %v573, %v560
      %v639 = vpack.c.b16 %v574, %v561
      %v640 = vpack.c.b16 %v575, %v562
      %v641 = vpack.c.b16 %v576, %v563
      %v642 = vpack.c.b16 %v577, %v564
      %v643 = vpack.c.b16 %v578, %v565
      %v644 = vpack.c.b16 %v579, %v566
      %v645 = vpack.c.b16 %v580, %v567
      %v646 = vpack.c.b16 %v581, %v568
      %v647 = vpack.c.b16 %v582, %v569
      %v648 = vpack.c.b16 %v596, %v583
      %v649 = vpack.c.b16 %v597, %v584
      %v650 = vpack.c.b16 %v598, %v585
      %v651 = vpack.c.b16 %v599, %v586
      %v652 = vpack.c.b16 %v600, %v587
      %v653 = vpack.c.b16 %v601, %v588
      %v654 = vpack.c.b16 %v602, %v589
      %v655 = vpack.c.b16 %v603, %v590
      %v656 = vpack.c.b16 %v604, %v591
      %v657 = vpack.c.b16 %v605, %v592
      %v658 = vpack.c.b16 %v606, %v593
      %v659 = vpack.c.b16 %v607, %v594
      %v660 = vpack.c.b16 %v608, %v595
      %v921 = vunpack.c.l.b16 %v234
      %v922 = vunpack.c.l.b16 %v235
      %v923 = vunpack.c.l.b16 %v236
      %v924 = vunpack.c.l.b16 %v237
      %v925 = vunpack.c.l.b16 %v238
      %v926 = vunpack.c.l.b16 %v239
      %v927 = vunpack.c.l.b16 %v240
      %v928 = vunpack.c.l.b16 %v241
      %v929 = vunpack.c.l.b16 %v242
      %v930 = vunpack.c.l.b16 %v243
      %v931 = vunpack.c.l.b16 %v244
      %v932 = vunpack.c.l.b16 %v245
      %v933 = vunpack.c.l.b16 %v246
      %v934 = vunpack.c.l.b16 %v247
      %v935 = vunpack.c.l.b16 %v248
      %v936 = vunpack.c.l.b16 %v249
      %v937 = vunpack.c.l.b16 %v250
      %v938 = vunpack.c.l.b16 %v251
      %v939 = vunpack.c.l.b16 %v252
      %v940 = vunpack.c.l.b16 %v253
      %v941 = vunpack.c.l.b16 %v254
      %v942 = vunpack.c.l.b16 %v255
      %v943 = vunpack.c.l.b16 %v256
      %v944 = vunpack.c.l.b16 %v257
      %v945 = vunpack.c.l.b16 %v258
      %v946 = vunpack.c.l.b16 %v259
      %v947 = vunpack.c.l.b16 %v260
      %v948 = vunpack.c.l.b16 %v261
      %v949 = vunpack.c.l.b16 %v262
      %v950 = vunpack.c.l.b16 %v263
      %v951 = vunpack.c.l.b16 %v264
      %v952 = vunpack.c.l.b16 %v265
      %v953 = vunpack.c.l.b16 %v266
      %v954 = vunpack.c.l.b16 %v267
      %v955 = vunpack.c.l.b16 %v268
      %v956 = vunpack.c.l.b16 %v269
      %v957 = vunpack.c.l.b16 %v270
      %v958 = vunpack.c.l.b16 %v271
      %v959 = vunpack.c.l.b16 %v272
      %v960 = vunpack.c.l.b16 %v273
      %v961 = vunpack.c.l.b16 %v274
      %v962 = vunpack.c.l.b16 %v275
      %v963 = vunpack.c.l.b16 %v276
      %v964 = vunpack.c.l.b16 %v277
      %v965 = vunpack.c.l.b16 %v278
      %v966 = vunpack.c.l.b16 %v279
      %v967 = vunpack.c.l.b16 %v280
      %v968 = vunpack.c.l.b16 %v281
      %v969 = vunpack.c.l.b16 %v282
      %v970 = vunpack.c.l.b16 %v283
      %v971 = vunpack.c.l.b16 %v284
      %v972 = vunpack.c.l.b16 %v285
      %v973 = vunpack.c.l.b16 %v286
      %v974 = vunpack.c.l.b16 %v287
      %v975 = vunpack.c.l.b16 %v288
      %v976 = vunpack.c.l.b16 %v289
      %v977 = vunpack.c.l.b16 %v290
      %v978 = vunpack.c.l.b16 %v291
      %v979 = vunpack.c.l.b16 %v292
      %v980 = vunpack.c.l.b16 %v293
      %v981 = vunpack.c.l.b16 %v294
      %v982 = vunpack.c.l.b16 %v295
      %v983 = vunpack.c.l.b16 %v296
      %v984 = vunpack.c.l.b16 %v297
      %v985 = vunpack.c.l.b16 %v298
      %v986 = vunpack.c.l.b16 %v299
      %v987 = vunpack.c.l.b16 %v300
      %v988 = vunpack.c.l.b16 %v301
      %v989 = vunpack.c.l.b16 %v302
      %v990 = vunpack.c.l.b16 %v303
      %v991 = vunpack.c.l.b16 %v304
      %v992 = vunpack.c.l.b16 %v305
      %v993 = vunpack.c.l.b16 %v306
      %v994 = vunpack.c.l.b16 %v307
      %v995 = vunpack.c.l.b16 %v308
      %v996 = vunpack.c.l.b16 %v309
      %v997 = vunpack.c.l.b16 %v310
      %v998 = vunpack.c.l.b16 %v311
      %v999 = vunpack.c.l.b16 %v312
      %v1000 = vunpack.c.l.b16 %v313
      %v1001 = vunpack.c.l.b16 %v314
      %v1002 = vunpack.c.l.b16 %v315
      %v1003 = vunpack.c.l.b16 %v316
      %v1004 = vunpack.c.l.b16 %v317
      %v1005 = vunpack.c.l.b16 %v318
      %v1006 = vunpack.c.l.b16 %v319
      %v1007 = vunpack.c.l.b16 %v320
      %v1008 = vunpack.c.l.b16 %v321
      %v1009 = vunpack.c.l.b16 %v322
      %v1010 = vunpack.c.l.b16 %v323
      %v1011 = vunpack.c.l.b16 %v324
      %v1012 = vunpack.c.l.b16 %v325
      %v1013 = vunpack.c.l.b16 %v326
      %v1014 = vunpack.c.l.b16 %v327
      %v1015 = vunpack.c.l.b16 %v328
      %v1016 = vunpack.c.l.b16 %v329
      %v1017 = vunpack.c.l.b16 %v330
      %v1018 = vunpack.c.l.b16 %v331
      %v1019 = vunpack.c.l.b16 %v332
      %v1020 = vunpack.c.l.b16 %v333
      %v1021 = vunpack.c.l.b16 %v334
      %v1022 = vunpack.c.l.b16 %v335
      %v1023 = vunpack.c.l.b16 %v336
      %v1024 = vunpack.c.l.b16 %v337
      %v1025 = vunpack.c.l.b16 %v338
      %v1026 = vunpack.c.l.b16 %v339
      %v1027 = vunpack.c.l.b16 %v340
      %v1028 = vunpack.c.l.b16 %v341
      %v1029 = vunpack.c.l.b16 %v342
      %v1030 = vunpack.c.l.b16 %v343
      %v1031 = vunpack.c.l.b16 %v344
      %v1032 = vunpack.c.l.b16 %v345
      %v1033 = vunpack.c.l.b16 %v346
      %v1034 = vunpack.c.l.b16 %v347
      %v1035 = vunpack.c.l.b16 %v348
      %v1036 = vunpack.c.l.b16 %v349
      %v1037 = vunpack.c.l.b16 %v350
      %v1038 = vunpack.c.l.b16 %v351
      %v1039 = vunpack.c.l.b16 %v352
      %v1040 = vunpack.c.l.b16 %v353
      %v1041 = vunpack.c.l.b16 %v354
      %v1042 = vunpack.c.l.b16 %v355
      %v1043 = vunpack.c.l.b16 %v356
      %v1044 = vunpack.c.l.b16 %v357
      %v1045 = vunpack.c.l.b16 %v358
      %v1046 = vunpack.c.l.b16 %v359
      %v1047 = vunpack.c.l.b16 %v360
      %v1048 = vunpack.c.l.b16 %v361
      %v1049 = vunpack.c.l.b16 %v362
      %v1050 = vunpack.c.l.b16 %v363
      %v1051 = vunpack.c.l.b16 %v364
      %v1052 = vunpack.c.l.b16 %v365
      %v1053 = vunpack.c.l.b16 %v366
      %v1054 = vunpack.c.l.b16 %v367
      %v1055 = vunpack.c.l.b16 %v368
      %v1056 = vunpack.c.l.b16 %v369
      %v1057 = vunpack.c.l.b16 %v370
      %v1058 = vunpack.c.l.b16 %v371
      %v1059 = vunpack.c.l.b16 %v372
      %v1060 = vunpack.c.l.b16 %v373
      %v1061 = vunpack.c.l.b16 %v374
      %v1062 = vunpack.c.l.b16 %v375
      %v1063 = vunpack.c.l.b16 %v376
      %v1064 = vunpack.c.l.b16 %v377
      %v1065 = vunpack.c.l.b16 %v378
      %v1066 = vunpack.c.l.b16 %v379
      %v1067 = vunpack.c.l.b16 %v380
      %v1068 = vunpack.c.l.b16 %v381
      %v1069 = vunpack.c.l.b16 %v382
      %v1070 = vunpack.c.l.b16 %v383
      %v1071 = vunpack.c.l.b16 %v384
      %v1072 = vunpack.c.l.b16 %v385
      %v1073 = vunpack.c.l.b16 %v386
      %v1074 = vunpack.c.l.b16 %v387
      %v1075 = vunpack.c.l.b16 %v388
      %v1076 = vunpack.c.l.b16 %v389
      %v1077 = vunpack.c.l.b16 %v390
      %v1078 = vunpack.c.l.b16 %v391
      %v1079 = vunpack.c.l.b16 %v392
      %v1080 = vunpack.c.l.b16 %v393
      %v1081 = vunpack.c.l.b16 %v394
      %v1082 = vunpack.c.l.b16 %v395
      %v1083 = vunpack.c.l.b16 %v396
      %v1084 = vunpack.c.l.b16 %v397
      %v1085 = vunpack.c.l.b16 %v398
      %v1086 = vunpack.c.l.b16 %v399
      %v1087 = vunpack.c.l.b16 %v400
      %v1088 = vunpack.c.l.b16 %v401
      %v1089 = vunpack.c.l.b16 %v402
      %v1090 = vunpack.c.l.b16 %v403
      %v1091 = vunpack.c.l.b16 %v404
      %v1092 = vunpack.c.l.b16 %v405
      %v1093 = vunpack.c.l.b16 %v406
      %v1094 = vunpack.c.l.b16 %v407
      %v1095 = vunpack.c.l.b16 %v408
      %v1096 = vunpack.c.l.b16 %v409
      %v1097 = vunpack.c.l.b16 %v410
      %v1098 = vunpack.c.l.b16 %v411
      %v1099 = vunpack.c.l.b16 %v412
      %v1100 = vunpack.c.l.b16 %v413
      %v1101 = vunpack.c.l.b16 %v414
      %v1102 = vunpack.c.l.b16 %v415
      %v1103 = vunpack.c.l.b16 %v416
      %v1104 = vunpack.c.l.b16 %v417
      %v1105 = vunpack.c.l.b16 %v418
      %v1106 = vunpack.c.l.b16 %v419
      %v1107 = vunpack.c.l.b16 %v420
      %v1108 = vunpack.c.l.b16 %v421
      %v1109 = vunpack.c.l.b16 %v422
      %v1110 = vunpack.c.l.b16 %v423
      %v1111 = vunpack.c.l.b16 %v424
      %v1112 = vunpack.c.l.b16 %v425
      %v1113 = vunpack.c.l.b16 %v426
      %v1114 = vunpack.c.l.b16 %v427
      %v1115 = vunpack.c.l.b16 %v428
      %v1116 = vunpack.c.l.b16 %v429
      %v1117 = vunpack.c.l.b16 %v430
      %v1118 = vunpack.c.l.b16 %v431
      %v1119 = vunpack.c.l.b16 %v432
      %v1120 = vunpack.c.l.b16 %v433
      %v1121 = vunpack.c.l.b16 %v434
      %v1122 = vunpack.c.l.b16 %v435
      %v1123 = vunpack.c.l.b16 %v436
      %v1124 = vunpack.c.l.b16 %v437
      %v1125 = vunpack.c.l.b16 %v438
      %v1126 = vunpack.c.l.b16 %v439
      %v1127 = vunpack.c.l.b16 %v440
      %v1128 = vunpack.c.l.b16 %v441
      %v1129 = vpack.c.b16 %v922, %v921
      %v1130 = vpack.c.b16 %v924, %v923
      %v1131 = vpack.c.b16 %v926, %v925
      %v1132 = vpack.c.b16 %v928, %v927
      %v1133 = vpack.c.b16 %v930, %v929
      %v1134 = vpack.c.b16 %v932, %v931
      %v1135 = vpack.c.b16 %v934, %v933
      %v1136 = vpack.c.b16 %v936, %v935
      %v1137 = vpack.c.b16 %v938, %v937
      %v1138 = vpack.c.b16 %v940, %v939
      %v1139 = vpack.c.b16 %v942, %v941
      %v1140 = vpack.c.b16 %v944, %v943
      %v1141 = vpack.c.b16 %v946, %v945
      %v1142 = vpack.c.b16 %v948, %v947
      %v1143 = vpack.c.b16 %v950, %v949
      %v1144 = vpack.c.b16 %v952, %v951
      %v1145 = vpack.c.b16 %v954, %v953
      %v1146 = vpack.c.b16 %v956, %v955
      %v1147 = vpack.c.b16 %v958, %v957
      %v1148 = vpack.c.b16 %v960, %v959
      %v1149 = vpack.c.b16 %v962, %v961
      %v1150 = vpack.c.b16 %v964, %v963
      %v1151 = vpack.c.b16 %v966, %v965
      %v1152 = vpack.c.b16 %v968, %v967
      %v1153 = vpack.c.b16 %v970, %v969
      %v1154 = vpack.c.b16 %v972, %v971
      %v1155 = vpack.c.b16 %v974, %v973
      %v1156 = vpack.c.b16 %v976, %v975
      %v1157 = vpack.c.b16 %v978, %v977
      %v1158 = vpack.c.b16 %v980, %v979
      %v1159 = vpack.c.b16 %v982, %v981
      %v1160 = vpack.c.b16 %v984, %v983
      %v1161 = vpack.c.b16 %v986, %v985
      %v1162 = vpack.c.b16 %v988, %v987
      %v1163 = vpack.c.b16 %v990, %v989
      %v1164 = vpack.c.b16 %v992, %v991
      %v1165 = vpack.c.b16 %v994, %v993
      %v1166 = vpack.c.b16 %v996, %v995
      %v1167 = vpack.c.b16 %v998, %v997
      %v1168 = vpack.c.b16 %v1000, %v999
      %v1169 = vpack.c.b16 %v1002, %v1001
      %v1170 = vpack.c.b16 %v1004, %v1003
      %v1171 = vpack.c.b16 %v1006, %v1005
      %v1172 = vpack.c.b16 %v1008, %v1007
      %v1173 = vpack.c.b16 %v1010, %v1009
      %v1174 = vpack.c.b16 %v1012, %v1011
      %v1175 = vpack.c.b16 %v1014, %v1013
      %v1176 = vpack.c.b16 %v1016, %v1015
      %v1177 = vpack.c.b16 %v1018, %v1017
      %v1178 = vpack.c.b16 %v1020, %v1019
      %v1179 = vpack.c.b16 %v1022, %v1021
      %v1180 = vpack.c.b16 %v1024, %v1023
      %v1181 = vpack.c.b16 %v1026, %v1025
      %v1182 = vpack.c.b16 %v1028, %v1027
      %v1183 = vpack.c.b16 %v1030, %v1029
      %v1184 = vpack.c.b16 %v1032, %v1031
      %v1185 = vpack.c.b16 %v1034, %v1033
      %v1186 = vpack.c.b16 %v1036, %v1035
      %v1187 = vpack.c.b16 %v1038, %v1037
      %v1188 = vpack.c.b16 %v1040, %v1039
      %v1189 = vpack.c.b16 %v1042, %v1041
      %v1190 = vpack.c.b16 %v1044, %v1043
      %v1191 = vpack.c.b16 %v1046, %v1045
      %v1192 = vpack.c.b16 %v1048, %v1047
      %v1193 = vpack.c.b16 %v1050, %v1049
      %v1194 = vpack.c.b16 %v1052, %v1051
      %v1195 = vpack.c.b16 %v1054, %v1053
      %v1196 = vpack.c.b16 %v1056, %v1055
      %v1197 = vpack.c.b16 %v1058, %v1057
      %v1198 = vpack.c.b16 %v1060, %v1059
      %v1199 = vpack.c.b16 %v1062, %v1061
      %v1200 = vpack.c.b16 %v1064, %v1063
      %v1201 = vpack.c.b16 %v1066, %v1065
      %v1202 = vpack.c.b16 %v1068, %v1067
      %v1203 = vpack.c.b16 %v1070, %v1069
      %v1204 = vpack.c.b16 %v1072, %v1071
      %v1205 = vpack.c.b16 %v1074, %v1073
      %v1206 = vpack.c.b16 %v1076, %v1075
      %v1207 = vpack.c.b16 %v1078, %v1077
      %v1208 = vpack.c.b16 %v1080, %v1079
      %v1209 = vpack.c.b16 %v1082, %v1081
      %v1210 = vpack.c.b16 %v1084, %v1083
      %v1211 = vpack.c.b16 %v1086, %v1085
      %v1212 = vpack.c.b16 %v1088, %v1087
      %v1213 = vpack.c.b16 %v1090, %v1089
      %v1214 = vpack.c.b16 %v1092, %v1091
      %v1215 = vpack.c.b16 %v1094, %v1093
      %v1216 = vpack.c.b16 %v1096, %v1095
      %v1217 = vpack.c.b16 %v1098, %v1097
      %v1218 = vpack.c.b16 %v1100, %v1099
      %v1219 = vpack.c.b16 %v1102, %v1101
      %v1220 = vpack.c.b16 %v1104, %v1103
      %v1221 = vpack.c.b16 %v1106, %v1105
      %v1222 = vpack.c.b16 %v1108, %v1107
      %v1223 = vpack.c.b16 %v1110, %v1109
      %v1224 = vpack.c.b16 %v1112, %v1111
      %v1225 = vpack.c.b16 %v1114, %v1113
      %v1226 = vpack.c.b16 %v1116, %v1115
      %v1227 = vpack.c.b16 %v1118, %v1117
      %v1228 = vpack.c.b16 %v1120, %v1119
      %v1229 = vpack.c.b16 %v1122, %v1121
      %v1230 = vpack.c.b16 %v1124, %v1123
      %v1231 = vpack.c.b16 %v1126, %v1125
      %v1232 = vpack.c.b16 %v1128, %v1127
      %1337 = vmatprep.subr.bf16.mxu0 0
      %1338 = vmatpush1.bf16.msra.mxu0 %v1129
      %1339 = vmatprep.subr.bf16.mxu0 0
      %1340 = vmatpush1.bf16.msra.mxu0 %v1130
      %1341 = vmatprep.subr.bf16.mxu0 0
      %1342 = vmatpush1.bf16.msra.mxu0 %v1131
      %1343 = vmatprep.subr.bf16.mxu0 0
      %1344 = vmatpush1.bf16.msra.mxu0 %v1132
      %1345 = vmatprep.subr.bf16.mxu0 0
      %1346 = vmatpush1.bf16.msra.mxu0 %v1133
      %1347 = vmatprep.subr.bf16.mxu0 0
      %1348 = vmatpush1.bf16.msra.mxu0 %v1134
      %1349 = vmatprep.subr.bf16.mxu0 0
      %1350 = vmatpush1.bf16.msra.mxu0 %v1135
      %1351 = vmatprep.subr.bf16.mxu0 0
      %1352 = vmatpush1.bf16.msra.mxu0 %v1136
      %1353 = vmatprep.subr.bf16.mxu0 0
      %1354 = vmatpush1.bf16.msra.mxu0 %v1137
      %1355 = vmatprep.subr.bf16.mxu0 0
      %1356 = vmatpush1.bf16.msra.mxu0 %v1138
      %1357 = vmatprep.subr.bf16.mxu0 0
      %1358 = vmatpush1.bf16.msra.mxu0 %v1139
      %1359 = vmatprep.subr.bf16.mxu0 0
      %1360 = vmatpush1.bf16.msra.mxu0 %v1140
      %1361 = vmatprep.subr.bf16.mxu0 0
      %1362 = vmatpush1.bf16.msra.mxu0 %v1141
      %1363 = vmatprep.subr.bf16.mxu0 0
      %1364 = vmatpush1.bf16.msra.mxu0 %v1142
      %1365 = vmatprep.subr.bf16.mxu0 0
      %1366 = vmatpush1.bf16.msra.mxu0 %v1143
      %1367 = vmatprep.subr.bf16.mxu0 0
      %1368 = vmatpush1.bf16.msra.mxu0 %v1144
      %1369 = vmatprep.mubr.bf16.mxu0 %v610
      %1370 = vmatmul.mubr.bf16.gmra.mrb[0].mxu0 %v609
      %v1371 = vpop.f32.mrb[0].mxu0
      %v1372 = vadd.f32 %v447, %v1371
      %v1373 = vpop.f32.mrb[0].mxu0
      %v1374 = vpop.f32.mrb[0].mxu0
      %v1375 = vadd.f32 %v447, %v1374
      %v1376 = vpop.f32.mrb[0].mxu0
      %1377 = vmatprep.mubr.bf16.mxu0 %v623
      %1378 = vmatmul.mubr.bf16.gmra.mrb[0].mxu0 %v622
      %v1379 = vpop.f32.mrb[0].mxu0
      %v1380 = vadd.f32 %v447, %v1379
      %v1381 = vpop.f32.mrb[0].mxu0
      %v1382 = vpop.f32.mrb[0].mxu0
      %v1383 = vadd.f32 %v447, %v1382
      %v1384 = vpop.f32.mrb[0].mxu0
      %1385 = vmatprep.mubr.bf16.mxu0 %v636
      %1386 = vmatmul.mubr.bf16.gmra.mrb[0].mxu0 %v635
      %v1387 = vpop.f32.mrb[0].mxu0
      %v1388 = vadd.f32 %v447, %v1387
      %v1389 = vpop.f32.mrb[0].mxu0
      %v1390 = vpop.f32.mrb[0].mxu0
      %v1391 = vadd.f32 %v447, %v1390
      %v1392 = vpop.f32.mrb[0].mxu0
      %1393 = vmatprep.mubr.bf16.mxu0 %v649
      %1394 = vmatmul.mubr.bf16.gmra.mrb[0].mxu0 %v648
      %v1395 = vpop.f32.mrb[0].mxu0
      %v1396 = vadd.f32 %v447, %v1395
      %v1397 = vpop.f32.mrb[0].mxu0
      %v1398 = vpop.f32.mrb[0].mxu0
      %v1399 = vadd.f32 %v447, %v1398
      %v1400 = vpop.f32.mrb[0].mxu0
      %1401 = vdwg.mxu0
      %1402 = vmatprep.subr.bf16.mxu0 0
      %1403 = vmatpush1.bf16.msra.mxu0 %v1145
      %1404 = vmatprep.subr.bf16.mxu0 0
      %1405 = vmatpush1.bf16.msra.mxu0 %v1146
      %1406 = vmatprep.subr.bf16.mxu0 0
      %1407 = vmatpush1.bf16.msra.mxu0 %v1147
      %1408 = vmatprep.subr.bf16.mxu0 0
      %1409 = vmatpush1.bf16.msra.mxu0 %v1148
      %1410 = vmatprep.subr.bf16.mxu0 0
      %1411 = vmatpush1.bf16.msra.mxu0 %v1149
      %1412 = vmatprep.subr.bf16.mxu0 0
      %1413 = vmatpush1.bf16.msra.mxu0 %v1150
      %1414 = vmatprep.subr.bf16.mxu0 0
      %1415 = vmatpush1.bf16.msra.mxu0 %v1151
      %1416 = vmatprep.subr.bf16.mxu0 0
      %1417 = vmatpush1.bf16.msra.mxu0 %v1152
      %1418 = vmatprep.subr.bf16.mxu0 0
      %1419 = vmatpush1.bf16.msra.mxu0 %v1153
      %1420 = vmatprep.subr.bf16.mxu0 0
      %1421 = vmatpush1.bf16.msra.mxu0 %v1154
      %1422 = vmatprep.subr.bf16.mxu0 0
      %1423 = vmatpush1.bf16.msra.mxu0 %v1155
      %1424 = vmatprep.subr.bf16.mxu0 0
      %1425 = vmatpush1.bf16.msra.mxu0 %v1156
      %1426 = vmatprep.subr.bf16.mxu0 0
      %1427 = vmatpush1.bf16.msra.mxu0 %v1157
      %1428 = vmatprep.subr.bf16.mxu0 0
      %1429 = vmatpush1.bf16.msra.mxu0 %v1158
      %1430 = vmatprep.subr.bf16.mxu0 0
      %1431 = vmatpush1.bf16.msra.mxu0 %v1159
      %1432 = vmatprep.subr.bf16.mxu0 0
      %1433 = vmatpush1.bf16.msra.mxu0 %v1160
      %1434 = vmatprep.mubr.bf16.mxu0 %v612
      %1435 = vmatmul.mubr.bf16.gmra.mrb[0].mxu0 %v611
      %v1436 = vpop.f32.mrb[0].mxu0
      %v1437 = vadd.f32 %v1372, %v1436
      %v1438 = vpop.f32.mrb[0].mxu0
      %v1439 = vpop.f32.mrb[0].mxu0
      %v1440 = vadd.f32 %v1375, %v1439
      %v1441 = vpop.f32.mrb[0].mxu0
      %1442 = vmatprep.mubr.bf16.mxu0 %v625
      %1443 = vmatmul.mubr.bf16.gmra.mrb[0].mxu0 %v624
      %v1444 = vpop.f32.mrb[0].mxu0
      %v1445 = vadd.f32 %v1380, %v1444
      %v1446 = vpop.f32.mrb[0].mxu0
      %v1447 = vpop.f32.mrb[0].mxu0
      %v1448 = vadd.f32 %v1383, %v1447
      %v1449 = vpop.f32.mrb[0].mxu0
      %1450 = vmatprep.mubr.bf16.mxu0 %v638
      %1451 = vmatmul.mubr.bf16.gmra.mrb[0].mxu0 %v637
      %v1452 = vpop.f32.mrb[0].mxu0
      %v1453 = vadd.f32 %v1388, %v1452
      %v1454 = vpop.f32.mrb[0].mxu0
      %v1455 = vpop.f32.mrb[0].mxu0
      %v1456 = vadd.f32 %v1391, %v1455
      %v1457 = vpop.f32.mrb[0].mxu0
      %1458 = vmatprep.mubr.bf16.mxu0 %v651
      %1459 = vmatmul.mubr.bf16.gmra.mrb[0].mxu0 %v650
      %v1460 = vpop.f32.mrb[0].mxu0
      %v1461 = vadd.f32 %v1396, %v1460
      %v1462 = vpop.f32.mrb[0].mxu0
      %v1463 = vpop.f32.mrb[0].mxu0
      %v1464 = vadd.f32 %v1399, %v1463
      %v1465 = vpop.f32.mrb[0].mxu0
      %1466 = vdwg.mxu0
      %1467 = vmatprep.subr.bf16.mxu0 0
      %1468 = vmatpush1.bf16.msra.mxu0 %v1161
      %1469 = vmatprep.subr.bf16.mxu0 0
      %1470 = vmatpush1.bf16.msra.mxu0 %v1162
      %1471 = vmatprep.subr.bf16.mxu0 0
      %1472 = vmatpush1.bf16.msra.mxu0 %v1163
      %1473 = vmatprep.subr.bf16.mxu0 0
      %1474 = vmatpush1.bf16.msra.mxu0 %v1164
      %1475 = vmatprep.subr.bf16.mxu0 0
      %1476 = vmatpush1.bf16.msra.mxu0 %v1165
      %1477 = vmatprep.subr.bf16.mxu0 0
      %1478 = vmatpush1.bf16.msra.mxu0 %v1166
      %1479 = vmatprep.subr.bf16.mxu0 0
      %1480 = vmatpush1.bf16.msra.mxu0 %v1167
      %1481 = vmatprep.subr.bf16.mxu0 0
      %1482 = vmatpush1.bf16.msra.mxu0 %v1168
      %1483 = vmatprep.subr.bf16.mxu0 0
      %1484 = vmatpush1.bf16.msra.mxu0 %v1169
      %1485 = vmatprep.subr.bf16.mxu0 0
      %1486 = vmatpush1.bf16.msra.mxu0 %v1170
      %1487 = vmatprep.subr.bf16.mxu0 0
      %1488 = vmatpush1.bf16.msra.mxu0 %v1171
      %1489 = vmatprep.subr.bf16.mxu0 0
      %1490 = vmatpush1.bf16.msra.mxu0 %v1172
      %1491 = vmatprep.subr.bf16.mxu0 0
      %1492 = vmatpush1.bf16.msra.mxu0 %v1173
      %1493 = vmatprep.subr.bf16.mxu0 0
      %1494 = vmatpush1.bf16.msra.mxu0 %v1174
      %1495 = vmatprep.subr.bf16.mxu0 0
      %1496 = vmatpush1.bf16.msra.mxu0 %v1175
      %1497 = vmatprep.subr.bf16.mxu0 0
      %1498 = vmatpush1.bf16.msra.mxu0 %v1176
      %1499 = vmatprep.mubr.bf16.mxu0 %v614
      %1500 = vmatmul.mubr.bf16.gmra.mrb[0].mxu0 %v613
      %v1501 = vpop.f32.mrb[0].mxu0
      %v1502 = vadd.f32 %v1437, %v1501
      %v1503 = vpop.f32.mrb[0].mxu0
      %v1504 = vpop.f32.mrb[0].mxu0
      %v1505 = vadd.f32 %v1440, %v1504
      %v1506 = vpop.f32.mrb[0].mxu0
      %1507 = vmatprep.mubr.bf16.mxu0 %v627
      %1508 = vmatmul.mubr.bf16.gmra.mrb[0].mxu0 %v626
      %v1509 = vpop.f32.mrb[0].mxu0
      %v1510 = vadd.f32 %v1445, %v1509
      %v1511 = vpop.f32.mrb[0].mxu0
      %v1512 = vpop.f32.mrb[0].mxu0
      %v1513 = vadd.f32 %v1448, %v1512
      %v1514 = vpop.f32.mrb[0].mxu0
      %1515 = vmatprep.mubr.bf16.mxu0 %v640
      %1516 = vmatmul.mubr.bf16.gmra.mrb[0].mxu0 %v639
      %v1517 = vpop.f32.mrb[0].mxu0
      %v1518 = vadd.f32 %v1453, %v1517
      %v1519 = vpop.f32.mrb[0].mxu0
      %v1520 = vpop.f32.mrb[0].mxu0
      %v1521 = vadd.f32 %v1456, %v1520
      %v1522 = vpop.f32.mrb[0].mxu0
      %1523 = vmatprep.mubr.bf16.mxu0 %v653
      %1524 = vmatmul.mubr.bf16.gmra.mrb[0].mxu0 %v652
      %v1525 = vpop.f32.mrb[0].mxu0
      %v1526 = vadd.f32 %v1461, %v1525
      %v1527 = vpop.f32.mrb[0].mxu0
      %v1528 = vpop.f32.mrb[0].mxu0
      %v1529 = vadd.f32 %v1464, %v1528
      %v1530 = vpop.f32.mrb[0].mxu0
      %1531 = vdwg.mxu0
      %1532 = vmatprep.subr.bf16.mxu0 0
      %1533 = vmatpush1.bf16.msra.mxu0 %v1177
      %1534 = vmatprep.subr.bf16.mxu0 0
      %1535 = vmatpush1.bf16.msra.mxu0 %v1178
      %1536 = vmatprep.subr.bf16.mxu0 0
      %1537 = vmatpush1.bf16.msra.mxu0 %v1179
      %1538 = vmatprep.subr.bf16.mxu0 0
      %1539 = vmatpush1.bf16.msra.mxu0 %v1180
      %1540 = vmatprep.subr.bf16.mxu0 0
      %1541 = vmatpush1.bf16.msra.mxu0 %v1181
      %1542 = vmatprep.subr.bf16.mxu0 0
      %1543 = vmatpush1.bf16.msra.mxu0 %v1182
      %1544 = vmatprep.subr.bf16.mxu0 0
      %1545 = vmatpush1.bf16.msra.mxu0 %v1183
      %1546 = vmatprep.subr.bf16.mxu0 0
      %1547 = vmatpush1.bf16.msra.mxu0 %v1184
      %1548 = vmatprep.subr.bf16.mxu0 0
      %1549 = vmatpush1.bf16.msra.mxu0 %v1185
      %1550 = vmatprep.subr.bf16.mxu0 0
      %1551 = vmatpush1.bf16.msra.mxu0 %v1186
      %1552 = vmatprep.subr.bf16.mxu0 0
      %1553 = vmatpush1.bf16.msra.mxu0 %v1187
      %1554 = vmatprep.subr.bf16.mxu0 0
      %1555 = vmatpush1.bf16.msra.mxu0 %v1188
      %1556 = vmatprep.subr.bf16.mxu0 0
      %1557 = vmatpush1.bf16.msra.mxu0 %v1189
      %1558 = vmatprep.subr.bf16.mxu0 0
      %1559 = vmatpush1.bf16.msra.mxu0 %v1190
      %1560 = vmatprep.subr.bf16.mxu0 0
      %1561 = vmatpush1.bf16.msra.mxu0 %v1191
      %1562 = vmatprep.subr.bf16.mxu0 0
      %1563 = vmatpush1.bf16.msra.mxu0 %v1192
      %1564 = vmatprep.mubr.bf16.mxu0 %v616
      %1565 = vmatmul.mubr.bf16.gmra.mrb[0].mxu0 %v615
      %v1566 = vpop.f32.mrb[0].mxu0
      %v1567 = vadd.f32 %v1502, %v1566
      %v1568 = vpop.f32.mrb[0].mxu0
      %v1569 = vpop.f32.mrb[0].mxu0
      %v1570 = vadd.f32 %v1505, %v1569
      %v1571 = vpop.f32.mrb[0].mxu0
      %1572 = vmatprep.mubr.bf16.mxu0 %v629
      %1573 = vmatmul.mubr.bf16.gmra.mrb[0].mxu0 %v628
      %v1574 = vpop.f32.mrb[0].mxu0
      %v1575 = vadd.f32 %v1510, %v1574
      %v1576 = vpop.f32.mrb[0].mxu0
      %v1577 = vpop.f32.mrb[0].mxu0
      %v1578 = vadd.f32 %v1513, %v1577
      %v1579 = vpop.f32.mrb[0].mxu0
      %1580 = vmatprep.mubr.bf16.mxu0 %v642
      %1581 = vmatmul.mubr.bf16.gmra.mrb[0].mxu0 %v641
      %v1582 = vpop.f32.mrb[0].mxu0
      %v1583 = vadd.f32 %v1518, %v1582
      %v1584 = vpop.f32.mrb[0].mxu0
      %v1585 = vpop.f32.mrb[0].mxu0
      %v1586 = vadd.f32 %v1521, %v1585
      %v1587 = vpop.f32.mrb[0].mxu0
      %1588 = vmatprep.mubr.bf16.mxu0 %v655
      %1589 = vmatmul.mubr.bf16.gmra.mrb[0].mxu0 %v654
      %v1590 = vpop.f32.mrb[0].mxu0
      %v1591 = vadd.f32 %v1526, %v1590
      %v1592 = vpop.f32.mrb[0].mxu0
      %v1593 = vpop.f32.mrb[0].mxu0
      %v1594 = vadd.f32 %v1529, %v1593
      %v1595 = vpop.f32.mrb[0].mxu0
      %1596 = vdwg.mxu0
      %1597 = vmatprep.subr.bf16.mxu0 0
      %1598 = vmatpush1.bf16.msra.mxu0 %v1193
      %1599 = vmatprep.subr.bf16.mxu0 0
      %1600 = vmatpush1.bf16.msra.mxu0 %v1194
      %1601 = vmatprep.subr.bf16.mxu0 0
      %1602 = vmatpush1.bf16.msra.mxu0 %v1195
      %1603 = vmatprep.subr.bf16.mxu0 0
      %1604 = vmatpush1.bf16.msra.mxu0 %v1196
      %1605 = vmatprep.subr.bf16.mxu0 0
      %1606 = vmatpush1.bf16.msra.mxu0 %v1197
      %1607 = vmatprep.subr.bf16.mxu0 0
      %1608 = vmatpush1.bf16.msra.mxu0 %v1198
      %1609 = vmatprep.subr.bf16.mxu0 0
      %1610 = vmatpush1.bf16.msra.mxu0 %v1199
      %1611 = vmatprep.subr.bf16.mxu0 0
      %1612 = vmatpush1.bf16.msra.mxu0 %v1200
      %1613 = vmatprep.subr.bf16.mxu0 0
      %1614 = vmatpush1.bf16.msra.mxu0 %v1201
      %1615 = vmatprep.subr.bf16.mxu0 0
      %1616 = vmatpush1.bf16.msra.mxu0 %v1202
      %1617 = vmatprep.subr.bf16.mxu0 0
      %1618 = vmatpush1.bf16.msra.mxu0 %v1203
      %1619 = vmatprep.subr.bf16.mxu0 0
      %1620 = vmatpush1.bf16.msra.mxu0 %v1204
      %1621 = vmatprep.subr.bf16.mxu0 0
      %1622 = vmatpush1.bf16.msra.mxu0 %v1205
      %1623 = vmatprep.subr.bf16.mxu0 0
      %1624 = vmatpush1.bf16.msra.mxu0 %v1206
      %1625 = vmatprep.subr.bf16.mxu0 0
      %1626 = vmatpush1.bf16.msra.mxu0 %v1207
      %1627 = vmatprep.subr.bf16.mxu0 0
      %1628 = vmatpush1.bf16.msra.mxu0 %v1208
      %1629 = vmatprep.mubr.bf16.mxu0 %v618
      %1630 = vmatmul.mubr.bf16.gmra.mrb[0].mxu0 %v617
      %v1631 = vpop.f32.mrb[0].mxu0
      %v1632 = vadd.f32 %v1567, %v1631
      %v1633 = vpop.f32.mrb[0].mxu0
      %v1634 = vpop.f32.mrb[0].mxu0
      %v1635 = vadd.f32 %v1570, %v1634
      %v1636 = vpop.f32.mrb[0].mxu0
      %1637 = vmatprep.mubr.bf16.mxu0 %v631
      %1638 = vmatmul.mubr.bf16.gmra.mrb[0].mxu0 %v630
      %v1639 = vpop.f32.mrb[0].mxu0
      %v1640 = vadd.f32 %v1575, %v1639
      %v1641 = vpop.f32.mrb[0].mxu0
      %v1642 = vpop.f32.mrb[0].mxu0
      %v1643 = vadd.f32 %v1578, %v1642
      %v1644 = vpop.f32.mrb[0].mxu0
      %1645 = vmatprep.mubr.bf16.mxu0 %v644
      %1646 = vmatmul.mubr.bf16.gmra.mrb[0].mxu0 %v643
      %v1647 = vpop.f32.mrb[0].mxu0
      %v1648 = vadd.f32 %v1583, %v1647
      %v1649 = vpop.f32.mrb[0].mxu0
      %v1650 = vpop.f32.mrb[0].mxu0
      %v1651 = vadd.f32 %v1586, %v1650
      %v1652 = vpop.f32.mrb[0].mxu0
      %1653 = vmatprep.mubr.bf16.mxu0 %v657
      %1654 = vmatmul.mubr.bf16.gmra.mrb[0].mxu0 %v656
      %v1655 = vpop.f32.mrb[0].mxu0
      %v1656 = vadd.f32 %v1591, %v1655
      %v1657 = vpop.f32.mrb[0].mxu0
      %v1658 = vpop.f32.mrb[0].mxu0
      %v1659 = vadd.f32 %v1594, %v1658
      %v1660 = vpop.f32.mrb[0].mxu0
      %1661 = vdwg.mxu0
      %1662 = vmatprep.subr.bf16.mxu0 0
      %1663 = vmatpush1.bf16.msra.mxu0 %v1209
      %1664 = vmatprep.subr.bf16.mxu0 0
      %1665 = vmatpush1.bf16.msra.mxu0 %v1210
      %1666 = vmatprep.subr.bf16.mxu0 0
      %1667 = vmatpush1.bf16.msra.mxu0 %v1211
      %1668 = vmatprep.subr.bf16.mxu0 0
      %1669 = vmatpush1.bf16.msra.mxu0 %v1212
      %1670 = vmatprep.subr.bf16.mxu0 0
      %1671 = vmatpush1.bf16.msra.mxu0 %v1213
      %1672 = vmatprep.subr.bf16.mxu0 0
      %1673 = vmatpush1.bf16.msra.mxu0 %v1214
      %1674 = vmatprep.subr.bf16.mxu0 0
      %1675 = vmatpush1.bf16.msra.mxu0 %v1215
      %1676 = vmatprep.subr.bf16.mxu0 0
      %1677 = vmatpush1.bf16.msra.mxu0 %v1216
      %1678 = vmatprep.subr.bf16.mxu0 0
      %1679 = vmatpush1.bf16.msra.mxu0 %v1217
      %1680 = vmatprep.subr.bf16.mxu0 0
      %1681 = vmatpush1.bf16.msra.mxu0 %v1218
      %1682 = vmatprep.subr.bf16.mxu0 0
      %1683 = vmatpush1.bf16.msra.mxu0 %v1219
      %1684 = vmatprep.subr.bf16.mxu0 0
      %1685 = vmatpush1.bf16.msra.mxu0 %v1220
      %1686 = vmatprep.subr.bf16.mxu0 0
      %1687 = vmatpush1.bf16.msra.mxu0 %v1221
      %1688 = vmatprep.subr.bf16.mxu0 0
      %1689 = vmatpush1.bf16.msra.mxu0 %v1222
      %1690 = vmatprep.subr.bf16.mxu0 0
      %1691 = vmatpush1.bf16.msra.mxu0 %v1223
      %1692 = vmatprep.subr.bf16.mxu0 0
      %1693 = vmatpush1.bf16.msra.mxu0 %v1224
      %1694 = vmatprep.mubr.bf16.mxu0 %v620
      %1695 = vmatmul.mubr.bf16.gmra.mrb[0].mxu0 %v619
      %v1696 = vpop.f32.mrb[0].mxu0
      %v1697 = vadd.f32 %v1632, %v1696
      %v1698 = vpop.f32.mrb[0].mxu0
      %v1699 = vpop.f32.mrb[0].mxu0
      %v1700 = vadd.f32 %v1635, %v1699
      %v1701 = vpop.f32.mrb[0].mxu0
      %1702 = vmatprep.mubr.bf16.mxu0 %v633
      %1703 = vmatmul.mubr.bf16.gmra.mrb[0].mxu0 %v632
      %v1704 = vpop.f32.mrb[0].mxu0
      %v1705 = vadd.f32 %v1640, %v1704
      %v1706 = vpop.f32.mrb[0].mxu0
      %v1707 = vpop.f32.mrb[0].mxu0
      %v1708 = vadd.f32 %v1643, %v1707
      %v1709 = vpop.f32.mrb[0].mxu0
      %1710 = vmatprep.mubr.bf16.mxu0 %v646
      %1711 = vmatmul.mubr.bf16.gmra.mrb[0].mxu0 %v645
      %v1712 = vpop.f32.mrb[0].mxu0
      %v1713 = vadd.f32 %v1648, %v1712
      %v1714 = vpop.f32.mrb[0].mxu0
      %v1715 = vpop.f32.mrb[0].mxu0
      %v1716 = vadd.f32 %v1651, %v1715
      %v1717 = vpop.f32.mrb[0].mxu0
      %1718 = vmatprep.mubr.bf16.mxu0 %v659
      %1719 = vmatmul.mubr.bf16.gmra.mrb[0].mxu0 %v658
      %v1720 = vpop.f32.mrb[0].mxu0
      %v1721 = vadd.f32 %v1656, %v1720
      %v1722 = vpop.f32.mrb[0].mxu0
      %v1723 = vpop.f32.mrb[0].mxu0
      %v1724 = vadd.f32 %v1659, %v1723
      %v1725 = vpop.f32.mrb[0].mxu0
      %1726 = vdwg.mxu0
      %1727 = vmatprep.subr.bf16.mxu0 0
      %1728 = vmatpush1.bf16.msra.mxu0 %v1225
      %1729 = vmatprep.subr.bf16.mxu0 0
      %1730 = vmatpush1.bf16.msra.mxu0 %v1226
      %1731 = vmatprep.subr.bf16.mxu0 0
      %1732 = vmatpush1.bf16.msra.mxu0 %v1227
      %1733 = vmatprep.subr.bf16.mxu0 0
      %1734 = vmatpush1.bf16.msra.mxu0 %v1228
      %1735 = vmatprep.subr.bf16.mxu0 0
      %1736 = vmatpush1.bf16.msra.mxu0 %v1229
      %1737 = vmatprep.subr.bf16.mxu0 0
      %1738 = vmatpush1.bf16.msra.mxu0 %v1230
      %1739 = vmatprep.subr.bf16.mxu0 0
      %1740 = vmatpush1.bf16.msra.mxu0 %v1231
      %1741 = vmatprep.subr.bf16.mxu0 0
      %1742 = vmatpush1.bf16.msra.mxu0 %v1232
      %1743 = vmatprep.subr.bf16.mxu0 0
      %1744 = vmatpush1.bf16.msra.mxu0 0
      %1745 = vmatprep.subr.bf16.mxu0 0
      %1746 = vmatpush1.bf16.msra.mxu0 0
      %1747 = vmatprep.subr.bf16.mxu0 0
      %1748 = vmatpush1.bf16.msra.mxu0 0
      %1749 = vmatprep.subr.bf16.mxu0 0
      %1750 = vmatpush1.bf16.msra.mxu0 0
      %1751 = vmatprep.subr.bf16.mxu0 0
      %1752 = vmatpush1.bf16.msra.mxu0 0
      %1753 = vmatprep.subr.bf16.mxu0 0
      %1754 = vmatpush1.bf16.msra.mxu0 0
      %1755 = vmatprep.subr.bf16.mxu0 0
      %1756 = vmatpush1.bf16.msra.mxu0 0
      %1757 = vmatprep.subr.bf16.mxu0 0
      %1758 = vmatpush1.bf16.msra.mxu0 0
      %1759 = vmatprep.mubr.bf16.mxu0 0
      %1760 = vmatmul.mubr.bf16.gmra.mrb[0].mxu0 %v621
      %v1761 = vpop.f32.mrb[0].mxu0
      %v1762 = vadd.f32 %v1697, %v1761
      %v1763 = vpop.f32.mrb[0].mxu0
      %v1764 = vpop.f32.mrb[0].mxu0
      %v1765 = vadd.f32 %v1700, %v1764
      %v1766 = vpop.f32.mrb[0].mxu0
      %1767 = vmatprep.mubr.bf16.mxu0 0
      %1768 = vmatmul.mubr.bf16.gmra.mrb[0].mxu0 %v634
      %v1769 = vpop.f32.mrb[0].mxu0
      %v1770 = vadd.f32 %v1705, %v1769
      %v1771 = vpop.f32.mrb[0].mxu0
      %v1772 = vpop.f32.mrb[0].mxu0
      %v1773 = vadd.f32 %v1708, %v1772
      %v1774 = vpop.f32.mrb[0].mxu0
      %1775 = vmatprep.mubr.bf16.mxu0 0
      %1776 = vmatmul.mubr.bf16.gmra.mrb[0].mxu0 %v647
      %v1777 = vpop.f32.mrb[0].mxu0
      %v1778 = vadd.f32 %v1713, %v1777
      %v1779 = vpop.f32.mrb[0].mxu0
      %v1780 = vpop.f32.mrb[0].mxu0
      %v1781 = vadd.f32 %v1716, %v1780
      %v1782 = vpop.f32.mrb[0].mxu0
      %1783 = vmatprep.mubr.bf16.mxu0 0
      %1784 = vmatmul.mubr.bf16.gmra.mrb[0].mxu0 %v660
      %v1785 = vpop.f32.mrb[0].mxu0
      %v1786 = vadd.f32 %v1721, %v1785
      %v1787 = vpop.f32.mrb[0].mxu0
      %v1788 = vpop.f32.mrb[0].mxu0
      %v1789 = vadd.f32 %v1724, %v1788
      %v1790 = vpop.f32.mrb[0].mxu0
      %1791 = vdwg.mxu0
      %v1792 = vmul.f32 %v1762, 0.2
      %v1793 = vmul.f32 %v1765, 0.2
      %v1794 = vmul.f32 %v1770, 0.2
      %v1795 = vmul.f32 %v1773, 0.2
      %v1796 = vmul.f32 %v1778, 0.2
      %v1797 = vmul.f32 %v1781, 0.2
      %v1798 = vmul.f32 %v1786, 0.2
      %v1799 = vmul.f32 %v1789, 0.2
      %v1800 = vmax.f32 %v1762, %v1792
      %v1801 = vmax.f32 %v1765, %v1793
      %v1802 = vmax.f32 %v1770, %v1794
      %v1803 = vmax.f32 %v1773, %v1795
      %v1804 = vmax.f32 %v1778, %v1796
      %v1805 = vmax.f32 %v1781, %v1797
      %v1806 = vmax.f32 %v1786, %v1798
      %v1807 = vmax.f32 %v1789, %v1799
      %v1808 = vpack.c.bf16 %v1801, %v1800
      %v1809 = vpack.c.bf16 %v1803, %v1802
      %v1810 = vpack.c.bf16 %v1805, %v1804
      %v1811 = vpack.c.bf16 %v1807, %v1806
      %v1816 = vunpack.c.l.b16 %v1808
      %v1817 = vunpack.c.h.b16 %v1808
      %v1818 = vunpack.c.l.b16 %v1809
      %v1819 = vunpack.c.h.b16 %v1809
      %v1820 = vunpack.c.l.b16 %v1810
      %v1821 = vunpack.c.h.b16 %v1810
      %v1822 = vunpack.c.l.b16 %v1811
      %v1823 = vunpack.c.h.b16 %v1811
      %v1824 = vpack.c.b16 %v1816, %v1816
      %v1825 = vpack.c.b16 %v1817, %v1817
      %v1826 = vpack.c.b16 %v1818, %v1818
      %v1827 = vpack.c.b16 %v1819, %v1819
      %v1828 = vpack.c.b16 %v1820, %v1820
      %v1829 = vpack.c.b16 %v1821, %v1821
      %v1830 = vpack.c.b16 %v1822, %v1822
      %v1831 = vpack.c.b16 %v1823, %v1823
      %1840 = vst [vmem:[%s175] sm:$0xf] %v1824
      %1841 = vst [vmem:[%s175 + $0x4] sm:$0xf] %v1825
      %1842 = vst [vmem:[%s175 + $0x8] sm:$0xf] %v1826
      %1843 = vst [vmem:[%s175 + $0xc] sm:$0xf] %v1827
      %1844 = vst [vmem:[%s175 + $0x10] sm:$0xf] %v1828
      %1845 = vst [vmem:[%s175 + $0x14] sm:$0xf] %v1829
      %1846 = vst [vmem:[%s175 + $0x18] sm:$0xf] %v1830
      %1847 = vst [vmem:[%s175 + $0x1c] sm:$0xf] %v1831
      %s1848 = smul.u32 8, %s14
      %p1849 = scmp.lt.s32.totalorder %s1848, 15
      %s1850 = scalar_select %p1849, %s1848, 15
      %s1851 = smul.addr %s1850, 4
      %s1852 = scalar_lea.vmem %s3, %s1851
      // Predicated region
      $region33: #{simple_discriminator_forward.4} parent=31 // pred_check
        %p1853 = pneg %p100
      $region34: #{simple_discriminator_forward.4} parent=31 // pred_check_branch
        %1855 = sbr.rel (%p1853) target = $region36
      $region35: #{simple_discriminator_forward.4} parent=31 // pred_region
        %s1856 = smul.u32 8, %s14
      $region36: #{simple_discriminator_forward.4} parent=31 // pred_fallthru
        _
    $region32: #{simple_discriminator_forward.4} parent=5 // pred_fallthru
      _
    %p1857 = scmp.le.s32.totalorder 2, %s9
    // Predicated region
    $region37: #{simple_discriminator_forward.4} parent=5 // pred_check
      %p1858 = pneg %p1857
    $region38: #{simple_discriminator_forward.4} parent=5 // pred_check_branch
      %1860 = sbr.rel (%p1858) target = $region40
    $region39: #{simple_discriminator_forward.4} parent=5 // pred_region
      %s1861 = ssub.s32 %s9, 2
      // Predicated region
      $region41: #{simple_discriminator_forward.4} parent=39 // pred_check
        %p1862 = pneg %p106
      $region42: #{simple_discriminator_forward.4} parent=39 // pred_check_branch
        %1864 = sbr.rel (%p1862) target = $region44
      $region43: #{simple_discriminator_forward.4} parent=39 // pred_region
        %s1865 = smul.u32 8, %s15
        %p1866 = scmp.lt.s32.totalorder %s1865, 15
        %s1867 = scalar_select %p1866, %s1865, 15
        %s1868 = smul.addr %s1867, 4
        %s1869 = scalar_lea.vmem %s3, %s1868
      $region44: #{simple_discriminator_forward.4} parent=39 // pred_fallthru
        _
    $region40: #{simple_discriminator_forward.4} parent=5 // pred_fallthru
      _
  $region6: #{simple_discriminator_forward.4} parent=0 // loop_footer
    %s13 = sadd.s32 1, %s9
  $region7: #{simple_discriminator_forward.4} parent=0 // loop_footer_branch
    %8 = sbr.rel target = $region3
  $region8: #{simple_discriminator_forward.4} parent=0 // loop_exit
    _

// kernel: simple_discriminator_forward.5
$region0: #{simple_discriminator_forward.5}
  #allocation0 [shape = 'u32[]', space=smem, size = 0x4, offset = 0x4, fixed_abs, tag = 'smem constant byte address 0x4 - core index']
  #allocation1 [shape = 'u32[144,128]{1,0:T(1,128)}', space=vmem, size = 0x12000, scoped, tag = 'internal scratch']
  %s0 = inlined_call_operand.vmem [shape: bf16[32,512], index: 0, kind: input, shape index: {}]
  %s1 = inlined_call_operand.vmem [shape: bf16[512,128], index: 1, kind: input, shape index: {}]
  %s2 = inlined_call_operand.vmem [shape: f32[1,128], index: 2, kind: input, shape index: {}]
  %s3 = inlined_call_operand.vmem [shape: f32[1,128], index: 3, kind: input, shape index: {}]
  %s4 = inlined_call_operand.vmem [shape: f32[1,128], index: 4, kind: input, shape index: {}]
  %s5 = inlined_call_operand.vmem [shape: f32[8,32], index: 5, kind: input, shape index: {}]
  %s6 = inlined_call_operand.vmem [shape: f32[32,8], index: 6, kind: input, shape index: {}]
  %s7 = inlined_call_operand.vmem [shape: bf16[32,128], index: 7, kind: output, shape index: {}]
  %s8 = sld [smem:[#allocation0]]
  $region38: #{simple_discriminator_forward.5} parent=0
    _
  %s10 = ssub.s32 1, %s8
  %s11 = scalar_select 0, %s10, %s8
  // Predicated region
  $region2: #{simple_discriminator_forward.5} parent=0 // pred_check
    _
  $region3: #{simple_discriminator_forward.5} parent=0 // pred_check_branch
    %13 = sbr.rel (0) target = $region5
  $region4: #{simple_discriminator_forward.5} parent=0 // pred_region
    _
  $region5: #{simple_discriminator_forward.5} parent=0 // pred_fallthru
    _
  // Predicated region
  $region6: #{simple_discriminator_forward.5} parent=0 // pred_check
    _
  $region7: #{simple_discriminator_forward.5} parent=0 // pred_check_branch
    %15 = sbr.rel (0) target = $region9
  $region8: #{simple_discriminator_forward.5} parent=0 // pred_region
    _
  $region9: #{simple_discriminator_forward.5} parent=0 // pred_fallthru
    _
  // Predicated region
  $region10: #{simple_discriminator_forward.5} parent=0 // pred_check
    _
  $region11: #{simple_discriminator_forward.5} parent=0 // pred_check_branch
    %17 = sbr.rel (0) target = $region13
  $region12: #{simple_discriminator_forward.5} parent=0 // pred_region
    _
  $region13: #{simple_discriminator_forward.5} parent=0 // pred_fallthru
    _
  // Predicated region
  $region14: #{simple_discriminator_forward.5} parent=0 // pred_check
    _
  $region15: #{simple_discriminator_forward.5} parent=0 // pred_check_branch
    %19 = sbr.rel (0) target = $region17
  $region16: #{simple_discriminator_forward.5} parent=0 // pred_region
    _
  $region17: #{simple_discriminator_forward.5} parent=0 // pred_fallthru
    _
  // Predicated region
  $region18: #{simple_discriminator_forward.5} parent=0 // pred_check
    _
  $region19: #{simple_discriminator_forward.5} parent=0 // pred_check_branch
    %21 = sbr.rel (0) target = $region21
  $region20: #{simple_discriminator_forward.5} parent=0 // pred_region
    _
  $region21: #{simple_discriminator_forward.5} parent=0 // pred_fallthru
    _
  // Predicated region
  $region22: #{simple_discriminator_forward.5} parent=0 // pred_check
    _
  $region23: #{simple_discriminator_forward.5} parent=0 // pred_check_branch
    %23 = sbr.rel (0) target = $region25
  $region24: #{simple_discriminator_forward.5} parent=0 // pred_region
    _
  $region25: #{simple_discriminator_forward.5} parent=0 // pred_fallthru
    _
  // Predicated region
  $region26: #{simple_discriminator_forward.5} parent=0 // pred_check
    _
  $region27: #{simple_discriminator_forward.5} parent=0 // pred_check_branch
    %25 = sbr.rel (0) target = $region29
  $region28: #{simple_discriminator_forward.5} parent=0 // pred_region
    _
  $region29: #{simple_discriminator_forward.5} parent=0 // pred_fallthru
    _
  %v27 = vld [vmem:[%s0] sm:$0xff]
  %v28 = vld [vmem:[%s0 + $0x8] sm:$0xff]
  %v29 = vld [vmem:[%s0 + $0x10] sm:$0xff]
  %v30 = vld [vmem:[%s0 + $0x18] sm:$0xff]
  %v31 = vld [vmem:[%s0 + $0x20] sm:$0xff]
  %v32 = vld [vmem:[%s0 + $0x28] sm:$0xff]
  %v33 = vld [vmem:[%s0 + $0x30] sm:$0xff]
  %v34 = vld [vmem:[%s0 + $0x38] sm:$0xff]
  %v35 = vld [vmem:[%s1] sm:$0xf]
  %v36 = vld [vmem:[%s1 + $0x4] sm:$0xf]
  %v37 = vld [vmem:[%s1 + $0x8] sm:$0xf]
  %v38 = vld [vmem:[%s1 + $0xc] sm:$0xf]
  %v39 = vld [vmem:[%s1 + $0x10] sm:$0xf]
  %v40 = vld [vmem:[%s1 + $0x14] sm:$0xf]
  %v41 = vld [vmem:[%s1 + $0x18] sm:$0xf]
  %v42 = vld [vmem:[%s1 + $0x1c] sm:$0xf]
  %v43 = vld [vmem:[%s1 + $0x20] sm:$0xf]
  %v44 = vld [vmem:[%s1 + $0x24] sm:$0xf]
  %v45 = vld [vmem:[%s1 + $0x28] sm:$0xf]
  %v46 = vld [vmem:[%s1 + $0x2c] sm:$0xf]
  %v47 = vld [vmem:[%s1 + $0x30] sm:$0xf]
  %v48 = vld [vmem:[%s1 + $0x34] sm:$0xf]
  %v49 = vld [vmem:[%s1 + $0x38] sm:$0xf]
  %v50 = vld [vmem:[%s1 + $0x3c] sm:$0xf]
  %v51 = vld [vmem:[%s1 + $0x40] sm:$0xf]
  %v52 = vld [vmem:[%s1 + $0x44] sm:$0xf]
  %v53 = vld [vmem:[%s1 + $0x48] sm:$0xf]
  %v54 = vld [vmem:[%s1 + $0x4c] sm:$0xf]
  %v55 = vld [vmem:[%s1 + $0x50] sm:$0xf]
  %v56 = vld [vmem:[%s1 + $0x54] sm:$0xf]
  %v57 = vld [vmem:[%s1 + $0x58] sm:$0xf]
  %v58 = vld [vmem:[%s1 + $0x5c] sm:$0xf]
  %v59 = vld [vmem:[%s1 + $0x60] sm:$0xf]
  %v60 = vld [vmem:[%s1 + $0x64] sm:$0xf]
  %v61 = vld [vmem:[%s1 + $0x68] sm:$0xf]
  %v62 = vld [vmem:[%s1 + $0x6c] sm:$0xf]
  %v63 = vld [vmem:[%s1 + $0x70] sm:$0xf]
  %v64 = vld [vmem:[%s1 + $0x74] sm:$0xf]
  %v65 = vld [vmem:[%s1 + $0x78] sm:$0xf]
  %v66 = vld [vmem:[%s1 + $0x7c] sm:$0xf]
  %v67 = vld [vmem:[%s1 + $0x80] sm:$0xf]
  %v68 = vld [vmem:[%s1 + $0x84] sm:$0xf]
  %v69 = vld [vmem:[%s1 + $0x88] sm:$0xf]
  %v70 = vld [vmem:[%s1 + $0x8c] sm:$0xf]
  %v71 = vld [vmem:[%s1 + $0x90] sm:$0xf]
  %v72 = vld [vmem:[%s1 + $0x94] sm:$0xf]
  %v73 = vld [vmem:[%s1 + $0x98] sm:$0xf]
  %v74 = vld [vmem:[%s1 + $0x9c] sm:$0xf]
  %v75 = vld [vmem:[%s1 + $0xa0] sm:$0xf]
  %v76 = vld [vmem:[%s1 + $0xa4] sm:$0xf]
  %v77 = vld [vmem:[%s1 + $0xa8] sm:$0xf]
  %v78 = vld [vmem:[%s1 + $0xac] sm:$0xf]
  %v79 = vld [vmem:[%s1 + $0xb0] sm:$0xf]
  %v80 = vld [vmem:[%s1 + $0xb4] sm:$0xf]
  %v81 = vld [vmem:[%s1 + $0xb8] sm:$0xf]
  %v82 = vld [vmem:[%s1 + $0xbc] sm:$0xf]
  %v83 = vld [vmem:[%s1 + $0xc0] sm:$0xf]
  %v84 = vld [vmem:[%s1 + $0xc4] sm:$0xf]
  %v85 = vld [vmem:[%s1 + $0xc8] sm:$0xf]
  %v86 = vld [vmem:[%s1 + $0xcc] sm:$0xf]
  %v87 = vld [vmem:[%s1 + $0xd0] sm:$0xf]
  %v88 = vld [vmem:[%s1 + $0xd4] sm:$0xf]
  %v89 = vld [vmem:[%s1 + $0xd8] sm:$0xf]
  %v90 = vld [vmem:[%s1 + $0xdc] sm:$0xf]
  %v91 = vld [vmem:[%s1 + $0xe0] sm:$0xf]
  %v92 = vld [vmem:[%s1 + $0xe4] sm:$0xf]
  %v93 = vld [vmem:[%s1 + $0xe8] sm:$0xf]
  %v94 = vld [vmem:[%s1 + $0xec] sm:$0xf]
  %v95 = vld [vmem:[%s1 + $0xf0] sm:$0xf]
  %v96 = vld [vmem:[%s1 + $0xf4] sm:$0xf]
  %v97 = vld [vmem:[%s1 + $0xf8] sm:$0xf]
  %v98 = vld [vmem:[%s1 + $0xfc] sm:$0xf]
  %v99 = vld [vmem:[%s2] sm:$0x1]
  %v101 = vlaneseq
  %v102 = vshrl.u32 %v101, 7
  %v103 = vsub.s32 0, %v102
  %v104 = vrot.slane %v99, %v103
  %v114 = vunpack.c.l.b16 %v27
  %v115 = vunpack.c.h.b16 %v27
  %v116 = vunpack.c.l.b16 %v28
  %v117 = vunpack.c.h.b16 %v28
  %v118 = vunpack.c.l.b16 %v29
  %v119 = vunpack.c.h.b16 %v29
  %v120 = vunpack.c.l.b16 %v30
  %v121 = vunpack.c.h.b16 %v30
  %v122 = vunpack.c.l.b16 %v31
  %v123 = vunpack.c.h.b16 %v31
  %v124 = vunpack.c.l.b16 %v32
  %v125 = vunpack.c.h.b16 %v32
  %v126 = vunpack.c.l.b16 %v33
  %v127 = vunpack.c.h.b16 %v33
  %v128 = vunpack.c.l.b16 %v34
  %v129 = vunpack.c.h.b16 %v34
  %v130 = vpack.c.b16 %v118, %v114
  %v131 = vpack.c.b16 %v119, %v115
  %v132 = vpack.c.b16 %v120, %v116
  %v133 = vpack.c.b16 %v121, %v117
  %v134 = vpack.c.b16 %v126, %v122
  %v135 = vpack.c.b16 %v127, %v123
  %v136 = vpack.c.b16 %v128, %v124
  %v137 = vpack.c.b16 %v129, %v125
  %v210 = vunpack.c.l.b16 %v35
  %v211 = vunpack.c.l.b16 %v36
  %v212 = vunpack.c.l.b16 %v37
  %v213 = vunpack.c.l.b16 %v38
  %v214 = vunpack.c.l.b16 %v39
  %v215 = vunpack.c.l.b16 %v40
  %v216 = vunpack.c.l.b16 %v41
  %v217 = vunpack.c.l.b16 %v42
  %v218 = vunpack.c.l.b16 %v43
  %v219 = vunpack.c.l.b16 %v44
  %v220 = vunpack.c.l.b16 %v45
  %v221 = vunpack.c.l.b16 %v46
  %v222 = vunpack.c.l.b16 %v47
  %v223 = vunpack.c.l.b16 %v48
  %v224 = vunpack.c.l.b16 %v49
  %v225 = vunpack.c.l.b16 %v50
  %v226 = vunpack.c.l.b16 %v51
  %v227 = vunpack.c.l.b16 %v52
  %v228 = vunpack.c.l.b16 %v53
  %v229 = vunpack.c.l.b16 %v54
  %v230 = vunpack.c.l.b16 %v55
  %v231 = vunpack.c.l.b16 %v56
  %v232 = vunpack.c.l.b16 %v57
  %v233 = vunpack.c.l.b16 %v58
  %v234 = vunpack.c.l.b16 %v59
  %v235 = vunpack.c.l.b16 %v60
  %v236 = vunpack.c.l.b16 %v61
  %v237 = vunpack.c.l.b16 %v62
  %v238 = vunpack.c.l.b16 %v63
  %v239 = vunpack.c.l.b16 %v64
  %v240 = vunpack.c.l.b16 %v65
  %v241 = vunpack.c.l.b16 %v66
  %v242 = vunpack.c.l.b16 %v67
  %v243 = vunpack.c.l.b16 %v68
  %v244 = vunpack.c.l.b16 %v69
  %v245 = vunpack.c.l.b16 %v70
  %v246 = vunpack.c.l.b16 %v71
  %v247 = vunpack.c.l.b16 %v72
  %v248 = vunpack.c.l.b16 %v73
  %v249 = vunpack.c.l.b16 %v74
  %v250 = vunpack.c.l.b16 %v75
  %v251 = vunpack.c.l.b16 %v76
  %v252 = vunpack.c.l.b16 %v77
  %v253 = vunpack.c.l.b16 %v78
  %v254 = vunpack.c.l.b16 %v79
  %v255 = vunpack.c.l.b16 %v80
  %v256 = vunpack.c.l.b16 %v81
  %v257 = vunpack.c.l.b16 %v82
  %v258 = vunpack.c.l.b16 %v83
  %v259 = vunpack.c.l.b16 %v84
  %v260 = vunpack.c.l.b16 %v85
  %v261 = vunpack.c.l.b16 %v86
  %v262 = vunpack.c.l.b16 %v87
  %v263 = vunpack.c.l.b16 %v88
  %v264 = vunpack.c.l.b16 %v89
  %v265 = vunpack.c.l.b16 %v90
  %v266 = vunpack.c.l.b16 %v91
  %v267 = vunpack.c.l.b16 %v92
  %v268 = vunpack.c.l.b16 %v93
  %v269 = vunpack.c.l.b16 %v94
  %v270 = vunpack.c.l.b16 %v95
  %v271 = vunpack.c.l.b16 %v96
  %v272 = vunpack.c.l.b16 %v97
  %v273 = vunpack.c.l.b16 %v98
  %v274 = vpack.c.b16 %v211, %v210
  %v275 = vpack.c.b16 %v213, %v212
  %v276 = vpack.c.b16 %v215, %v214
  %v277 = vpack.c.b16 %v217, %v216
  %v278 = vpack.c.b16 %v219, %v218
  %v279 = vpack.c.b16 %v221, %v220
  %v280 = vpack.c.b16 %v223, %v222
  %v281 = vpack.c.b16 %v225, %v224
  %v282 = vpack.c.b16 %v227, %v226
  %v283 = vpack.c.b16 %v229, %v228
  %v284 = vpack.c.b16 %v231, %v230
  %v285 = vpack.c.b16 %v233, %v232
  %v286 = vpack.c.b16 %v235, %v234
  %v287 = vpack.c.b16 %v237, %v236
  %v288 = vpack.c.b16 %v239, %v238
  %v289 = vpack.c.b16 %v241, %v240
  %v290 = vpack.c.b16 %v243, %v242
  %v291 = vpack.c.b16 %v245, %v244
  %v292 = vpack.c.b16 %v247, %v246
  %v293 = vpack.c.b16 %v249, %v248
  %v294 = vpack.c.b16 %v251, %v250
  %v295 = vpack.c.b16 %v253, %v252
  %v296 = vpack.c.b16 %v255, %v254
  %v297 = vpack.c.b16 %v257, %v256
  %v298 = vpack.c.b16 %v259, %v258
  %v299 = vpack.c.b16 %v261, %v260
  %v300 = vpack.c.b16 %v263, %v262
  %v301 = vpack.c.b16 %v265, %v264
  %v302 = vpack.c.b16 %v267, %v266
  %v303 = vpack.c.b16 %v269, %v268
  %v304 = vpack.c.b16 %v271, %v270
  %v305 = vpack.c.b16 %v273, %v272
  %338 = vmatprep.subr.bf16.mxu0 0
  %339 = vmatpush1.bf16.msra.mxu0 %v274
  %340 = vmatprep.subr.bf16.mxu0 0
  %341 = vmatpush1.bf16.msra.mxu0 %v275
  %342 = vmatprep.subr.bf16.mxu0 0
  %343 = vmatpush1.bf16.msra.mxu0 %v276
  %344 = vmatprep.subr.bf16.mxu0 0
  %345 = vmatpush1.bf16.msra.mxu0 %v277
  %346 = vmatprep.subr.bf16.mxu0 0
  %347 = vmatpush1.bf16.msra.mxu0 %v278
  %348 = vmatprep.subr.bf16.mxu0 0
  %349 = vmatpush1.bf16.msra.mxu0 %v279
  %350 = vmatprep.subr.bf16.mxu0 0
  %351 = vmatpush1.bf16.msra.mxu0 %v280
  %352 = vmatprep.subr.bf16.mxu0 0
  %353 = vmatpush1.bf16.msra.mxu0 %v281
  %354 = vmatprep.subr.bf16.mxu0 0
  %355 = vmatpush1.bf16.msra.mxu0 %v282
  %356 = vmatprep.subr.bf16.mxu0 0
  %357 = vmatpush1.bf16.msra.mxu0 %v283
  %358 = vmatprep.subr.bf16.mxu0 0
  %359 = vmatpush1.bf16.msra.mxu0 %v284
  %360 = vmatprep.subr.bf16.mxu0 0
  %361 = vmatpush1.bf16.msra.mxu0 %v285
  %362 = vmatprep.subr.bf16.mxu0 0
  %363 = vmatpush1.bf16.msra.mxu0 %v286
  %364 = vmatprep.subr.bf16.mxu0 0
  %365 = vmatpush1.bf16.msra.mxu0 %v287
  %366 = vmatprep.subr.bf16.mxu0 0
  %367 = vmatpush1.bf16.msra.mxu0 %v288
  %368 = vmatprep.subr.bf16.mxu0 0
  %369 = vmatpush1.bf16.msra.mxu0 %v289
  %370 = vmatprep.mubr.bf16.mxu0 %v131
  %371 = vmatmul.mubr.bf16.gmra.mrb[0].mxu0 %v130
  %v372 = vpop.f32.mrb[0].mxu0
  %v373 = vadd.f32 %v104, %v372
  %v374 = vpop.f32.mrb[0].mxu0
  %v375 = vpop.f32.mrb[0].mxu0
  %v376 = vadd.f32 %v104, %v375
  %v377 = vpop.f32.mrb[0].mxu0
  %378 = vmatprep.mubr.bf16.mxu0 %v135
  %379 = vmatmul.mubr.bf16.gmra.mrb[0].mxu0 %v134
  %v380 = vpop.f32.mrb[0].mxu0
  %v381 = vadd.f32 %v104, %v380
  %v382 = vpop.f32.mrb[0].mxu0
  %v383 = vpop.f32.mrb[0].mxu0
  %v384 = vadd.f32 %v104, %v383
  %v385 = vpop.f32.mrb[0].mxu0
  %386 = vdwg.mxu0
  %387 = vmatprep.subr.bf16.mxu0 0
  %388 = vmatpush1.bf16.msra.mxu0 %v290
  %389 = vmatprep.subr.bf16.mxu0 0
  %390 = vmatpush1.bf16.msra.mxu0 %v291
  %391 = vmatprep.subr.bf16.mxu0 0
  %392 = vmatpush1.bf16.msra.mxu0 %v292
  %393 = vmatprep.subr.bf16.mxu0 0
  %394 = vmatpush1.bf16.msra.mxu0 %v293
  %395 = vmatprep.subr.bf16.mxu0 0
  %396 = vmatpush1.bf16.msra.mxu0 %v294
  %397 = vmatprep.subr.bf16.mxu0 0
  %398 = vmatpush1.bf16.msra.mxu0 %v295
  %399 = vmatprep.subr.bf16.mxu0 0
  %400 = vmatpush1.bf16.msra.mxu0 %v296
  %401 = vmatprep.subr.bf16.mxu0 0
  %402 = vmatpush1.bf16.msra.mxu0 %v297
  %403 = vmatprep.subr.bf16.mxu0 0
  %404 = vmatpush1.bf16.msra.mxu0 %v298
  %405 = vmatprep.subr.bf16.mxu0 0
  %406 = vmatpush1.bf16.msra.mxu0 %v299
  %407 = vmatprep.subr.bf16.mxu0 0
  %408 = vmatpush1.bf16.msra.mxu0 %v300
  %409 = vmatprep.subr.bf16.mxu0 0
  %410 = vmatpush1.bf16.msra.mxu0 %v301
  %411 = vmatprep.subr.bf16.mxu0 0
  %412 = vmatpush1.bf16.msra.mxu0 %v302
  %413 = vmatprep.subr.bf16.mxu0 0
  %414 = vmatpush1.bf16.msra.mxu0 %v303
  %415 = vmatprep.subr.bf16.mxu0 0
  %416 = vmatpush1.bf16.msra.mxu0 %v304
  %417 = vmatprep.subr.bf16.mxu0 0
  %418 = vmatpush1.bf16.msra.mxu0 %v305
  %419 = vmatprep.mubr.bf16.mxu0 %v133
  %420 = vmatmul.mubr.bf16.gmra.mrb[0].mxu0 %v132
  %v421 = vpop.f32.mrb[0].mxu0
  %v422 = vadd.f32 %v373, %v421
  %v423 = vpop.f32.mrb[0].mxu0
  %v424 = vpop.f32.mrb[0].mxu0
  %v425 = vadd.f32 %v376, %v424
  %v426 = vpop.f32.mrb[0].mxu0
  %427 = vmatprep.mubr.bf16.mxu0 %v137
  %428 = vmatmul.mubr.bf16.gmra.mrb[0].mxu0 %v136
  %v429 = vpop.f32.mrb[0].mxu0
  %v430 = vadd.f32 %v381, %v429
  %v431 = vpop.f32.mrb[0].mxu0
  %v432 = vpop.f32.mrb[0].mxu0
  %v433 = vadd.f32 %v384, %v432
  %v434 = vpop.f32.mrb[0].mxu0
  %435 = vdwg.mxu0
  %v436 = vld [vmem:[%s5] sm:$0xff]
  %v437 = vld [vmem:[%s6] sm:$0xff]
  %v438 = vld [vmem:[%s6 + $0x8] sm:$0xff]
  %v439 = vld [vmem:[%s6 + $0x10] sm:$0xff]
  %v440 = vld [vmem:[%s6 + $0x18] sm:$0xff]
  %vm441 = vcmask 261120
  %v443 = vsel %vm441, %v436, 0
  %445 = vmatprep.subr.mxu0 0.0
  %446 = vmatpush1.msra.mxu0 %v422
  %447 = vmatprep.subr.mxu0 0.0
  %448 = vmatpush1.msra.mxu0 %v425
  %449 = vmatprep.subr.mxu0 0.0
  %450 = vmatpush1.msra.mxu0 %v430
  %451 = vmatprep.subr.mxu0 0.0
  %452 = vmatpush1.msra.mxu0 %v433
  %453 = vmatprep.subr.mxu0 0.0
  %454 = vmatpush1.msra.mxu0 0.0
  %455 = vmatprep.subr.mxu0 0.0
  %456 = vmatpush1.msra.mxu0 0.0
  %457 = vmatprep.subr.mxu0 0.0
  %458 = vmatpush1.msra.mxu0 0.0
  %459 = vmatprep.subr.mxu0 0.0
  %460 = vmatpush1.msra.mxu0 0.0
  %461 = vmatprep.subr.mxu0 0.0
  %462 = vmatpush1.msra.mxu0 0.0
  %463 = vmatprep.subr.mxu0 0.0
  %464 = vmatpush1.msra.mxu0 0.0
  %465 = vmatprep.subr.mxu0 0.0
  %466 = vmatpush1.msra.mxu0 0.0
  %467 = vmatprep.subr.mxu0 0.0
  %468 = vmatpush1.msra.mxu0 0.0
  %469 = vmatprep.subr.mxu0 0.0
  %470 = vmatpush1.msra.mxu0 0.0
  %471 = vmatprep.subr.mxu0 0.0
  %472 = vmatpush1.msra.mxu0 0.0
  %473 = vmatprep.subr.mxu0 0.0
  %474 = vmatpush1.msra.mxu0 0.0
  %475 = vmatprep.subr.mxu0 0.0
  %476 = vmatpush1.msra.mxu0 0.0
  %477 = vmatprep.subr.mxu0 0.0
  %478 = vmatpush1.msra.mxu0 0.0
  %479 = vmatprep.subr.mxu0 0.0
  %480 = vmatpush1.msra.mxu0 0.0
  %481 = vmatprep.subr.mxu0 0.0
  %482 = vmatpush1.msra.mxu0 0.0
  %483 = vmatprep.subr.mxu0 0.0
  %484 = vmatpush1.msra.mxu0 0.0
  %485 = vmatprep.subr.mxu0 0.0
  %486 = vmatpush1.msra.mxu0 0.0
  %487 = vmatprep.subr.mxu0 0.0
  %488 = vmatpush1.msra.mxu0 0.0
  %489 = vmatprep.subr.mxu0 0.0
  %490 = vmatpush1.msra.mxu0 0.0
  %491 = vmatprep.subr.mxu0 0.0
  %492 = vmatpush1.msra.mxu0 0.0
  %493 = vmatprep.subr.mxu0 0.0
  %494 = vmatpush1.msra.mxu0 0.0
  %495 = vmatprep.subr.mxu0 0.0
  %496 = vmatpush1.msra.mxu0 0.0
  %497 = vmatprep.subr.mxu0 0.0
  %498 = vmatpush1.msra.mxu0 0.0
  %499 = vmatprep.subr.mxu0 0.0
  %500 = vmatpush1.msra.mxu0 0.0
  %501 = vmatprep.subr.mxu0 0.0
  %502 = vmatpush1.msra.mxu0 0.0
  %503 = vmatprep.subr.mxu0 0.0
  %504 = vmatpush1.msra.mxu0 0.0
  %505 = vmatprep.subr.mxu0 0.0
  %506 = vmatpush1.msra.mxu0 0.0
  %507 = vmatprep.subr.mxu0 0.0
  %508 = vmatpush1.msra.mxu0 0.0
  %509 = vmatprep.mubr.f32.mxu0 0.0
  %510 = vmatmul.mubr.f32.gmra.mrb[0].mxu0 %v443
  %v511 = vpop.f32.mrb[0].mxu0
  %v512 = vadd.f32 0.0, %v511
  %v513 = vpop.f32.mrb[0].mxu0
  %514 = vdwg.mxu0
  %v515 = vmul.f32 %v512, 0.0625
  %vm516 = vcmask 64512
  %v518 = vsel %vm516, %v437, 0
  %v521 = vsel %vm516, %v438, 0
  %v524 = vsel %vm516, %v439, 0
  %v527 = vsel %vm516, %v440, 0
  %529 = vmatprep.subr.mxu0 0.0
  %530 = vmatpush1.msra.mxu0 %v515
  %531 = vmatprep.subr.mxu0 0.0
  %532 = vmatpush1.msra.mxu0 0.0
  %533 = vmatprep.subr.mxu0 0.0
  %534 = vmatpush1.msra.mxu0 0.0
  %535 = vmatprep.subr.mxu0 0.0
  %536 = vmatpush1.msra.mxu0 0.0
  %537 = vmatprep.subr.mxu0 0.0
  %538 = vmatpush1.msra.mxu0 0.0
  %539 = vmatprep.subr.mxu0 0.0
  %540 = vmatpush1.msra.mxu0 0.0
  %541 = vmatprep.subr.mxu0 0.0
  %542 = vmatpush1.msra.mxu0 0.0
  %543 = vmatprep.subr.mxu0 0.0
  %544 = vmatpush1.msra.mxu0 0.0
  %545 = vmatprep.subr.mxu0 0.0
  %546 = vmatpush1.msra.mxu0 0.0
  %547 = vmatprep.subr.mxu0 0.0
  %548 = vmatpush1.msra.mxu0 0.0
  %549 = vmatprep.subr.mxu0 0.0
  %550 = vmatpush1.msra.mxu0 0.0
  %551 = vmatprep.subr.mxu0 0.0
  %552 = vmatpush1.msra.mxu0 0.0
  %553 = vmatprep.subr.mxu0 0.0
  %554 = vmatpush1.msra.mxu0 0.0
  %555 = vmatprep.subr.mxu0 0.0
  %556 = vmatpush1.msra.mxu0 0.0
  %557 = vmatprep.subr.mxu0 0.0
  %558 = vmatpush1.msra.mxu0 0.0
  %559 = vmatprep.subr.mxu0 0.0
  %560 = vmatpush1.msra.mxu0 0.0
  %561 = vmatprep.subr.mxu0 0.0
  %562 = vmatpush1.msra.mxu0 0.0
  %563 = vmatprep.subr.mxu0 0.0
  %564 = vmatpush1.msra.mxu0 0.0
  %565 = vmatprep.subr.mxu0 0.0
  %566 = vmatpush1.msra.mxu0 0.0
  %567 = vmatprep.subr.mxu0 0.0
  %568 = vmatpush1.msra.mxu0 0.0
  %569 = vmatprep.subr.mxu0 0.0
  %570 = vmatpush1.msra.mxu0 0.0
  %571 = vmatprep.subr.mxu0 0.0
  %572 = vmatpush1.msra.mxu0 0.0
  %573 = vmatprep.subr.mxu0 0.0
  %574 = vmatpush1.msra.mxu0 0.0
  %575 = vmatprep.subr.mxu0 0.0
  %576 = vmatpush1.msra.mxu0 0.0
  %577 = vmatprep.subr.mxu0 0.0
  %578 = vmatpush1.msra.mxu0 0.0
  %579 = vmatprep.subr.mxu0 0.0
  %580 = vmatpush1.msra.mxu0 0.0
  %581 = vmatprep.subr.mxu0 0.0
  %582 = vmatpush1.msra.mxu0 0.0
  %583 = vmatprep.subr.mxu0 0.0
  %584 = vmatpush1.msra.mxu0 0.0
  %585 = vmatprep.subr.mxu0 0.0
  %586 = vmatpush1.msra.mxu0 0.0
  %587 = vmatprep.subr.mxu0 0.0
  %588 = vmatpush1.msra.mxu0 0.0
  %589 = vmatprep.subr.mxu0 0.0
  %590 = vmatpush1.msra.mxu0 0.0
  %591 = vmatprep.subr.mxu0 0.0
  %592 = vmatpush1.msra.mxu0 0.0
  %593 = vmatprep.mubr.f32.mxu0 0.0
  %594 = vmatmul.mubr.f32.gmra.mrb[0].mxu0 %v518
  %v595 = vpop.f32.mrb[0].mxu0
  %v596 = vadd.f32 0.0, %v595
  %v597 = vpop.f32.mrb[0].mxu0
  %598 = vmatprep.mubr.f32.mxu0 0.0
  %599 = vmatmul.mubr.f32.gmra.mrb[0].mxu0 %v521
  %v600 = vpop.f32.mrb[0].mxu0
  %v601 = vadd.f32 0.0, %v600
  %v602 = vpop.f32.mrb[0].mxu0
  %603 = vmatprep.mubr.f32.mxu0 0.0
  %604 = vmatmul.mubr.f32.gmra.mrb[0].mxu0 %v524
  %v605 = vpop.f32.mrb[0].mxu0
  %v606 = vadd.f32 0.0, %v605
  %v607 = vpop.f32.mrb[0].mxu0
  %608 = vmatprep.mubr.f32.mxu0 0.0
  %609 = vmatmul.mubr.f32.gmra.mrb[0].mxu0 %v527
  %v610 = vpop.f32.mrb[0].mxu0
  %v611 = vadd.f32 0.0, %v610
  %v612 = vpop.f32.mrb[0].mxu0
  %613 = vdwg.mxu0
  %v614 = vsub.f32 %v422, %v596
  %v615 = vsub.f32 %v425, %v601
  %v616 = vsub.f32 %v430, %v606
  %v617 = vsub.f32 %v433, %v611
  %v618 = vmul.f32 %v614, %v614
  %v619 = vmul.f32 %v615, %v615
  %v620 = vmul.f32 %v616, %v616
  %v621 = vmul.f32 %v617, %v617
  %622 = vmatprep.subr.mxu0 0.0
  %623 = vmatpush1.msra.mxu0 %v618
  %624 = vmatprep.subr.mxu0 0.0
  %625 = vmatpush1.msra.mxu0 %v619
  %626 = vmatprep.subr.mxu0 0.0
  %627 = vmatpush1.msra.mxu0 %v620
  %628 = vmatprep.subr.mxu0 0.0
  %629 = vmatpush1.msra.mxu0 %v621
  %630 = vmatprep.subr.mxu0 0.0
  %631 = vmatpush1.msra.mxu0 0.0
  %632 = vmatprep.subr.mxu0 0.0
  %633 = vmatpush1.msra.mxu0 0.0
  %634 = vmatprep.subr.mxu0 0.0
  %635 = vmatpush1.msra.mxu0 0.0
  %636 = vmatprep.subr.mxu0 0.0
  %637 = vmatpush1.msra.mxu0 0.0
  %638 = vmatprep.subr.mxu0 0.0
  %639 = vmatpush1.msra.mxu0 0.0
  %640 = vmatprep.subr.mxu0 0.0
  %641 = vmatpush1.msra.mxu0 0.0
  %642 = vmatprep.subr.mxu0 0.0
  %643 = vmatpush1.msra.mxu0 0.0
  %644 = vmatprep.subr.mxu0 0.0
  %645 = vmatpush1.msra.mxu0 0.0
  %646 = vmatprep.subr.mxu0 0.0
  %647 = vmatpush1.msra.mxu0 0.0
  %648 = vmatprep.subr.mxu0 0.0
  %649 = vmatpush1.msra.mxu0 0.0
  %650 = vmatprep.subr.mxu0 0.0
  %651 = vmatpush1.msra.mxu0 0.0
  %652 = vmatprep.subr.mxu0 0.0
  %653 = vmatpush1.msra.mxu0 0.0
  %654 = vmatprep.subr.mxu0 0.0
  %655 = vmatpush1.msra.mxu0 0.0
  %656 = vmatprep.subr.mxu0 0.0
  %657 = vmatpush1.msra.mxu0 0.0
  %658 = vmatprep.subr.mxu0 0.0
  %659 = vmatpush1.msra.mxu0 0.0
  %660 = vmatprep.subr.mxu0 0.0
  %661 = vmatpush1.msra.mxu0 0.0
  %662 = vmatprep.subr.mxu0 0.0
  %663 = vmatpush1.msra.mxu0 0.0
  %664 = vmatprep.subr.mxu0 0.0
  %665 = vmatpush1.msra.mxu0 0.0
  %666 = vmatprep.subr.mxu0 0.0
  %667 = vmatpush1.msra.mxu0 0.0
  %668 = vmatprep.subr.mxu0 0.0
  %669 = vmatpush1.msra.mxu0 0.0
  %670 = vmatprep.subr.mxu0 0.0
  %671 = vmatpush1.msra.mxu0 0.0
  %672 = vmatprep.subr.mxu0 0.0
  %673 = vmatpush1.msra.mxu0 0.0
  %674 = vmatprep.subr.mxu0 0.0
  %675 = vmatpush1.msra.mxu0 0.0
  %676 = vmatprep.subr.mxu0 0.0
  %677 = vmatpush1.msra.mxu0 0.0
  %678 = vmatprep.subr.mxu0 0.0
  %679 = vmatpush1.msra.mxu0 0.0
  %680 = vmatprep.subr.mxu0 0.0
  %681 = vmatpush1.msra.mxu0 0.0
  %682 = vmatprep.subr.mxu0 0.0
  %683 = vmatpush1.msra.mxu0 0.0
  %684 = vmatprep.subr.mxu0 0.0
  %685 = vmatpush1.msra.mxu0 0.0
  %686 = vmatprep.mubr.f32.mxu0 0.0
  %687 = vmatmul.mubr.f32.gmra.mrb[0].mxu0 %v443
  %v688 = vpop.f32.mrb[0].mxu0
  %v689 = vadd.f32 0.0, %v688
  %v690 = vpop.f32.mrb[0].mxu0
  %691 = vdwg.mxu0
  %v692 = vmul.f32 %v689, 0.0625
  %v693 = vadd.f32 %v692, 1e-05
  %v694 = vrsqrt.pop %v693
  %695 = vmatprep.subr.mxu0 0.0
  %696 = vmatpush1.msra.mxu0 %v694
  %697 = vmatprep.subr.mxu0 0.0
  %698 = vmatpush1.msra.mxu0 0.0
  %699 = vmatprep.subr.mxu0 0.0
  %700 = vmatpush1.msra.mxu0 0.0
  %701 = vmatprep.subr.mxu0 0.0
  %702 = vmatpush1.msra.mxu0 0.0
  %703 = vmatprep.subr.mxu0 0.0
  %704 = vmatpush1.msra.mxu0 0.0
  %705 = vmatprep.subr.mxu0 0.0
  %706 = vmatpush1.msra.mxu0 0.0
  %707 = vmatprep.subr.mxu0 0.0
  %708 = vmatpush1.msra.mxu0 0.0
  %709 = vmatprep.subr.mxu0 0.0
  %710 = vmatpush1.msra.mxu0 0.0
  %711 = vmatprep.subr.mxu0 0.0
  %712 = vmatpush1.msra.mxu0 0.0
  %713 = vmatprep.subr.mxu0 0.0
  %714 = vmatpush1.msra.mxu0 0.0
  %715 = vmatprep.subr.mxu0 0.0
  %716 = vmatpush1.msra.mxu0 0.0
  %717 = vmatprep.subr.mxu0 0.0
  %718 = vmatpush1.msra.mxu0 0.0
  %719 = vmatprep.subr.mxu0 0.0
  %720 = vmatpush1.msra.mxu0 0.0
  %721 = vmatprep.subr.mxu0 0.0
  %722 = vmatpush1.msra.mxu0 0.0
  %723 = vmatprep.subr.mxu0 0.0
  %724 = vmatpush1.msra.mxu0 0.0
  %725 = vmatprep.subr.mxu0 0.0
  %726 = vmatpush1.msra.mxu0 0.0
  %727 = vmatprep.subr.mxu0 0.0
  %728 = vmatpush1.msra.mxu0 0.0
  %729 = vmatprep.subr.mxu0 0.0
  %730 = vmatpush1.msra.mxu0 0.0
  %731 = vmatprep.subr.mxu0 0.0
  %732 = vmatpush1.msra.mxu0 0.0
  %733 = vmatprep.subr.mxu0 0.0
  %734 = vmatpush1.msra.mxu0 0.0
  %735 = vmatprep.subr.mxu0 0.0
  %736 = vmatpush1.msra.mxu0 0.0
  %737 = vmatprep.subr.mxu0 0.0
  %738 = vmatpush1.msra.mxu0 0.0
  %739 = vmatprep.subr.mxu0 0.0
  %740 = vmatpush1.msra.mxu0 0.0
  %741 = vmatprep.subr.mxu0 0.0
  %742 = vmatpush1.msra.mxu0 0.0
  %743 = vmatprep.subr.mxu0 0.0
  %744 = vmatpush1.msra.mxu0 0.0
  %745 = vmatprep.subr.mxu0 0.0
  %746 = vmatpush1.msra.mxu0 0.0
  %747 = vmatprep.subr.mxu0 0.0
  %748 = vmatpush1.msra.mxu0 0.0
  %749 = vmatprep.subr.mxu0 0.0
  %750 = vmatpush1.msra.mxu0 0.0
  %751 = vmatprep.subr.mxu0 0.0
  %752 = vmatpush1.msra.mxu0 0.0
  %753 = vmatprep.subr.mxu0 0.0
  %754 = vmatpush1.msra.mxu0 0.0
  %755 = vmatprep.subr.mxu0 0.0
  %756 = vmatpush1.msra.mxu0 0.0
  %757 = vmatprep.subr.mxu0 0.0
  %758 = vmatpush1.msra.mxu0 0.0
  %759 = vmatprep.mubr.f32.mxu0 0.0
  %760 = vmatmul.mubr.f32.gmra.mrb[0].mxu0 %v518
  %v761 = vpop.f32.mrb[0].mxu0
  %v762 = vadd.f32 0.0, %v761
  %v763 = vpop.f32.mrb[0].mxu0
  %764 = vmatprep.mubr.f32.mxu0 0.0
  %765 = vmatmul.mubr.f32.gmra.mrb[0].mxu0 %v521
  %v766 = vpop.f32.mrb[0].mxu0
  %v767 = vadd.f32 0.0, %v766
  %v768 = vpop.f32.mrb[0].mxu0
  %769 = vmatprep.mubr.f32.mxu0 0.0
  %770 = vmatmul.mubr.f32.gmra.mrb[0].mxu0 %v524
  %v771 = vpop.f32.mrb[0].mxu0
  %v772 = vadd.f32 0.0, %v771
  %v773 = vpop.f32.mrb[0].mxu0
  %774 = vmatprep.mubr.f32.mxu0 0.0
  %775 = vmatmul.mubr.f32.gmra.mrb[0].mxu0 %v527
  %v776 = vpop.f32.mrb[0].mxu0
  %v777 = vadd.f32 0.0, %v776
  %v778 = vpop.f32.mrb[0].mxu0
  %779 = vdwg.mxu0
  %v780 = vmul.f32 %v614, %v762
  %v781 = vmul.f32 %v615, %v767
  %v782 = vmul.f32 %v616, %v772
  %v783 = vmul.f32 %v617, %v777
  %v784 = vld [vmem:[%s3] sm:$0x1]
  %v786 = vlaneseq
  %v787 = vshrl.u32 %v786, 7
  %v788 = vsub.s32 0, %v787
  %v789 = vrot.slane %v784, %v788
  %v791 = vmul.f32 %v780, %v789
  %v792 = vmul.f32 %v781, %v789
  %v793 = vmul.f32 %v782, %v789
  %v794 = vmul.f32 %v783, %v789
  %v795 = vld [vmem:[%s4] sm:$0x1]
  %v797 = vlaneseq
  %v798 = vshrl.u32 %v797, 7
  %v799 = vsub.s32 0, %v798
  %v800 = vrot.slane %v795, %v799
  %v802 = vadd.f32 %v791, %v800
  %v803 = vadd.f32 %v792, %v800
  %v804 = vadd.f32 %v793, %v800
  %v805 = vadd.f32 %v794, %v800
  %v806 = vpack.c.bf16 %v803, %v802
  %v807 = vpack.c.bf16 %v805, %v804
  %v810 = vunpack.c.l.b16 %v806
  %v811 = vunpack.c.h.b16 %v806
  %v812 = vunpack.c.l.b16 %v807
  %v813 = vunpack.c.h.b16 %v807
  %v814 = vpack.c.b16 %v810, %v810
  %v815 = vpack.c.b16 %v811, %v811
  %v816 = vpack.c.b16 %v812, %v812
  %v817 = vpack.c.b16 %v813, %v813
  %822 = vst [vmem:[%s7] sm:$0xf] %v814
  %823 = vst [vmem:[%s7 + $0x4] sm:$0xf] %v815
  %824 = vst [vmem:[%s7 + $0x8] sm:$0xf] %v816
  %825 = vst [vmem:[%s7 + $0xc] sm:$0xf] %v817
  // Predicated region
  $region30: #{simple_discriminator_forward.5} parent=0 // pred_check
    _
  $region31: #{simple_discriminator_forward.5} parent=0 // pred_check_branch
    %827 = sbr.rel (0) target = $region33
  $region32: #{simple_discriminator_forward.5} parent=0 // pred_region
    _
  $region33: #{simple_discriminator_forward.5} parent=0 // pred_fallthru
    _
  // Predicated region
  $region34: #{simple_discriminator_forward.5} parent=0 // pred_check
    _
  $region35: #{simple_discriminator_forward.5} parent=0 // pred_check_branch
    %829 = sbr.rel (0) target = $region37
  $region36: #{simple_discriminator_forward.5} parent=0 // pred_region
    _
  $region37: #{simple_discriminator_forward.5} parent=0 // pred_fallthru
    _

// kernel: simple_discriminator_forward.6
$region0: #{simple_discriminator_forward.6}
  #allocation0 [shape = 'u32[]', space=smem, size = 0x4, offset = 0x4, fixed_abs, tag = 'smem constant byte address 0x4 - core index']
  #allocation1 [shape = 'u32[144,128]{1,0:T(1,128)}', space=vmem, size = 0x12000, scoped, tag = 'internal scratch']
  %s0 = inlined_call_operand.vmem [shape: bf16[32,1024], index: 0, kind: input, shape index: {}]
  %s1 = inlined_call_operand.vmem [shape: bf16[1024,128], index: 1, kind: input, shape index: {}]
  %s2 = inlined_call_operand.vmem [shape: f32[1,128], index: 2, kind: input, shape index: {}]
  %s3 = inlined_call_operand.vmem [shape: f32[1,128], index: 3, kind: input, shape index: {}]
  %s4 = inlined_call_operand.vmem [shape: f32[1,128], index: 4, kind: input, shape index: {}]
  %s5 = inlined_call_operand.vmem [shape: f32[8,32], index: 5, kind: input, shape index: {}]
  %s6 = inlined_call_operand.vmem [shape: f32[32,8], index: 6, kind: input, shape index: {}]
  %s7 = inlined_call_operand.vmem [shape: bf16[32,128], index: 7, kind: output, shape index: {}]
  %s8 = sld [smem:[#allocation0]]
  $region38: #{simple_discriminator_forward.6} parent=0
    _
  %s10 = ssub.s32 1, %s8
  %s11 = scalar_select 0, %s10, %s8
  // Predicated region
  $region2: #{simple_discriminator_forward.6} parent=0 // pred_check
    _
  $region3: #{simple_discriminator_forward.6} parent=0 // pred_check_branch
    %13 = sbr.rel (0) target = $region5
  $region4: #{simple_discriminator_forward.6} parent=0 // pred_region
    _
  $region5: #{simple_discriminator_forward.6} parent=0 // pred_fallthru
    _
  // Predicated region
  $region6: #{simple_discriminator_forward.6} parent=0 // pred_check
    _
  $region7: #{simple_discriminator_forward.6} parent=0 // pred_check_branch
    %15 = sbr.rel (0) target = $region9
  $region8: #{simple_discriminator_forward.6} parent=0 // pred_region
    _
  $region9: #{simple_discriminator_forward.6} parent=0 // pred_fallthru
    _
  // Predicated region
  $region10: #{simple_discriminator_forward.6} parent=0 // pred_check
    _
  $region11: #{simple_discriminator_forward.6} parent=0 // pred_check_branch
    %17 = sbr.rel (0) target = $region13
  $region12: #{simple_discriminator_forward.6} parent=0 // pred_region
    _
  $region13: #{simple_discriminator_forward.6} parent=0 // pred_fallthru
    _
  // Predicated region
  $region14: #{simple_discriminator_forward.6} parent=0 // pred_check
    _
  $region15: #{simple_discriminator_forward.6} parent=0 // pred_check_branch
    %19 = sbr.rel (0) target = $region17
  $region16: #{simple_discriminator_forward.6} parent=0 // pred_region
    _
  $region17: #{simple_discriminator_forward.6} parent=0 // pred_fallthru
    _
  // Predicated region
  $region18: #{simple_discriminator_forward.6} parent=0 // pred_check
    _
  $region19: #{simple_discriminator_forward.6} parent=0 // pred_check_branch
    %21 = sbr.rel (0) target = $region21
  $region20: #{simple_discriminator_forward.6} parent=0 // pred_region
    _
  $region21: #{simple_discriminator_forward.6} parent=0 // pred_fallthru
    _
  // Predicated region
  $region22: #{simple_discriminator_forward.6} parent=0 // pred_check
    _
  $region23: #{simple_discriminator_forward.6} parent=0 // pred_check_branch
    %23 = sbr.rel (0) target = $region25
  $region24: #{simple_discriminator_forward.6} parent=0 // pred_region
    _
  $region25: #{simple_discriminator_forward.6} parent=0 // pred_fallthru
    _
  // Predicated region
  $region26: #{simple_discriminator_forward.6} parent=0 // pred_check
    _
  $region27: #{simple_discriminator_forward.6} parent=0 // pred_check_branch
    %25 = sbr.rel (0) target = $region29
  $region28: #{simple_discriminator_forward.6} parent=0 // pred_region
    _
  $region29: #{simple_discriminator_forward.6} parent=0 // pred_fallthru
    _
  %v27 = vld [vmem:[%s0] sm:$0xff]
  %v28 = vld [vmem:[%s0 + $0x8] sm:$0xff]
  %v29 = vld [vmem:[%s0 + $0x10] sm:$0xff]
  %v30 = vld [vmem:[%s0 + $0x18] sm:$0xff]
  %v31 = vld [vmem:[%s0 + $0x20] sm:$0xff]
  %v32 = vld [vmem:[%s0 + $0x28] sm:$0xff]
  %v33 = vld [vmem:[%s0 + $0x30] sm:$0xff]
  %v34 = vld [vmem:[%s0 + $0x38] sm:$0xff]
  %v35 = vld [vmem:[%s0 + $0x40] sm:$0xff]
  %v36 = vld [vmem:[%s0 + $0x48] sm:$0xff]
  %v37 = vld [vmem:[%s0 + $0x50] sm:$0xff]
  %v38 = vld [vmem:[%s0 + $0x58] sm:$0xff]
  %v39 = vld [vmem:[%s0 + $0x60] sm:$0xff]
  %v40 = vld [vmem:[%s0 + $0x68] sm:$0xff]
  %v41 = vld [vmem:[%s0 + $0x70] sm:$0xff]
  %v42 = vld [vmem:[%s0 + $0x78] sm:$0xff]
  %v43 = vld [vmem:[%s1] sm:$0xf]
  %v44 = vld [vmem:[%s1 + $0x4] sm:$0xf]
  %v45 = vld [vmem:[%s1 + $0x8] sm:$0xf]
  %v46 = vld [vmem:[%s1 + $0xc] sm:$0xf]
  %v47 = vld [vmem:[%s1 + $0x10] sm:$0xf]
  %v48 = vld [vmem:[%s1 + $0x14] sm:$0xf]
  %v49 = vld [vmem:[%s1 + $0x18] sm:$0xf]
  %v50 = vld [vmem:[%s1 + $0x1c] sm:$0xf]
  %v51 = vld [vmem:[%s1 + $0x20] sm:$0xf]
  %v52 = vld [vmem:[%s1 + $0x24] sm:$0xf]
  %v53 = vld [vmem:[%s1 + $0x28] sm:$0xf]
  %v54 = vld [vmem:[%s1 + $0x2c] sm:$0xf]
  %v55 = vld [vmem:[%s1 + $0x30] sm:$0xf]
  %v56 = vld [vmem:[%s1 + $0x34] sm:$0xf]
  %v57 = vld [vmem:[%s1 + $0x38] sm:$0xf]
  %v58 = vld [vmem:[%s1 + $0x3c] sm:$0xf]
  %v59 = vld [vmem:[%s1 + $0x40] sm:$0xf]
  %v60 = vld [vmem:[%s1 + $0x44] sm:$0xf]
  %v61 = vld [vmem:[%s1 + $0x48] sm:$0xf]
  %v62 = vld [vmem:[%s1 + $0x4c] sm:$0xf]
  %v63 = vld [vmem:[%s1 + $0x50] sm:$0xf]
  %v64 = vld [vmem:[%s1 + $0x54] sm:$0xf]
  %v65 = vld [vmem:[%s1 + $0x58] sm:$0xf]
  %v66 = vld [vmem:[%s1 + $0x5c] sm:$0xf]
  %v67 = vld [vmem:[%s1 + $0x60] sm:$0xf]
  %v68 = vld [vmem:[%s1 + $0x64] sm:$0xf]
  %v69 = vld [vmem:[%s1 + $0x68] sm:$0xf]
  %v70 = vld [vmem:[%s1 + $0x6c] sm:$0xf]
  %v71 = vld [vmem:[%s1 + $0x70] sm:$0xf]
  %v72 = vld [vmem:[%s1 + $0x74] sm:$0xf]
  %v73 = vld [vmem:[%s1 + $0x78] sm:$0xf]
  %v74 = vld [vmem:[%s1 + $0x7c] sm:$0xf]
  %v75 = vld [vmem:[%s1 + $0x80] sm:$0xf]
  %v76 = vld [vmem:[%s1 + $0x84] sm:$0xf]
  %v77 = vld [vmem:[%s1 + $0x88] sm:$0xf]
  %v78 = vld [vmem:[%s1 + $0x8c] sm:$0xf]
  %v79 = vld [vmem:[%s1 + $0x90] sm:$0xf]
  %v80 = vld [vmem:[%s1 + $0x94] sm:$0xf]
  %v81 = vld [vmem:[%s1 + $0x98] sm:$0xf]
  %v82 = vld [vmem:[%s1 + $0x9c] sm:$0xf]
  %v83 = vld [vmem:[%s1 + $0xa0] sm:$0xf]
  %v84 = vld [vmem:[%s1 + $0xa4] sm:$0xf]
  %v85 = vld [vmem:[%s1 + $0xa8] sm:$0xf]
  %v86 = vld [vmem:[%s1 + $0xac] sm:$0xf]
  %v87 = vld [vmem:[%s1 + $0xb0] sm:$0xf]
  %v88 = vld [vmem:[%s1 + $0xb4] sm:$0xf]
  %v89 = vld [vmem:[%s1 + $0xb8] sm:$0xf]
  %v90 = vld [vmem:[%s1 + $0xbc] sm:$0xf]
  %v91 = vld [vmem:[%s1 + $0xc0] sm:$0xf]
  %v92 = vld [vmem:[%s1 + $0xc4] sm:$0xf]
  %v93 = vld [vmem:[%s1 + $0xc8] sm:$0xf]
  %v94 = vld [vmem:[%s1 + $0xcc] sm:$0xf]
  %v95 = vld [vmem:[%s1 + $0xd0] sm:$0xf]
  %v96 = vld [vmem:[%s1 + $0xd4] sm:$0xf]
  %v97 = vld [vmem:[%s1 + $0xd8] sm:$0xf]
  %v98 = vld [vmem:[%s1 + $0xdc] sm:$0xf]
  %v99 = vld [vmem:[%s1 + $0xe0] sm:$0xf]
  %v100 = vld [vmem:[%s1 + $0xe4] sm:$0xf]
  %v101 = vld [vmem:[%s1 + $0xe8] sm:$0xf]
  %v102 = vld [vmem:[%s1 + $0xec] sm:$0xf]
  %v103 = vld [vmem:[%s1 + $0xf0] sm:$0xf]
  %v104 = vld [vmem:[%s1 + $0xf4] sm:$0xf]
  %v105 = vld [vmem:[%s1 + $0xf8] sm:$0xf]
  %v106 = vld [vmem:[%s1 + $0xfc] sm:$0xf]
  %v107 = vld [vmem:[%s1 + $0x100] sm:$0xf]
  %v108 = vld [vmem:[%s1 + $0x104] sm:$0xf]
  %v109 = vld [vmem:[%s1 + $0x108] sm:$0xf]
  %v110 = vld [vmem:[%s1 + $0x10c] sm:$0xf]
  %v111 = vld [vmem:[%s1 + $0x110] sm:$0xf]
  %v112 = vld [vmem:[%s1 + $0x114] sm:$0xf]
  %v113 = vld [vmem:[%s1 + $0x118] sm:$0xf]
  %v114 = vld [vmem:[%s1 + $0x11c] sm:$0xf]
  %v115 = vld [vmem:[%s1 + $0x120] sm:$0xf]
  %v116 = vld [vmem:[%s1 + $0x124] sm:$0xf]
  %v117 = vld [vmem:[%s1 + $0x128] sm:$0xf]
  %v118 = vld [vmem:[%s1 + $0x12c] sm:$0xf]
  %v119 = vld [vmem:[%s1 + $0x130] sm:$0xf]
  %v120 = vld [vmem:[%s1 + $0x134] sm:$0xf]
  %v121 = vld [vmem:[%s1 + $0x138] sm:$0xf]
  %v122 = vld [vmem:[%s1 + $0x13c] sm:$0xf]
  %v123 = vld [vmem:[%s1 + $0x140] sm:$0xf]
  %v124 = vld [vmem:[%s1 + $0x144] sm:$0xf]
  %v125 = vld [vmem:[%s1 + $0x148] sm:$0xf]
  %v126 = vld [vmem:[%s1 + $0x14c] sm:$0xf]
  %v127 = vld [vmem:[%s1 + $0x150] sm:$0xf]
  %v128 = vld [vmem:[%s1 + $0x154] sm:$0xf]
  %v129 = vld [vmem:[%s1 + $0x158] sm:$0xf]
  %v130 = vld [vmem:[%s1 + $0x15c] sm:$0xf]
  %v131 = vld [vmem:[%s1 + $0x160] sm:$0xf]
  %v132 = vld [vmem:[%s1 + $0x164] sm:$0xf]
  %v133 = vld [vmem:[%s1 + $0x168] sm:$0xf]
  %v134 = vld [vmem:[%s1 + $0x16c] sm:$0xf]
  %v135 = vld [vmem:[%s1 + $0x170] sm:$0xf]
  %v136 = vld [vmem:[%s1 + $0x174] sm:$0xf]
  %v137 = vld [vmem:[%s1 + $0x178] sm:$0xf]
  %v138 = vld [vmem:[%s1 + $0x17c] sm:$0xf]
  %v139 = vld [vmem:[%s1 + $0x180] sm:$0xf]
  %v140 = vld [vmem:[%s1 + $0x184] sm:$0xf]
  %v141 = vld [vmem:[%s1 + $0x188] sm:$0xf]
  %v142 = vld [vmem:[%s1 + $0x18c] sm:$0xf]
  %v143 = vld [vmem:[%s1 + $0x190] sm:$0xf]
  %v144 = vld [vmem:[%s1 + $0x194] sm:$0xf]
  %v145 = vld [vmem:[%s1 + $0x198] sm:$0xf]
  %v146 = vld [vmem:[%s1 + $0x19c] sm:$0xf]
  %v147 = vld [vmem:[%s1 + $0x1a0] sm:$0xf]
  %v148 = vld [vmem:[%s1 + $0x1a4] sm:$0xf]
  %v149 = vld [vmem:[%s1 + $0x1a8] sm:$0xf]
  %v150 = vld [vmem:[%s1 + $0x1ac] sm:$0xf]
  %v151 = vld [vmem:[%s1 + $0x1b0] sm:$0xf]
  %v152 = vld [vmem:[%s1 + $0x1b4] sm:$0xf]
  %v153 = vld [vmem:[%s1 + $0x1b8] sm:$0xf]
  %v154 = vld [vmem:[%s1 + $0x1bc] sm:$0xf]
  %v155 = vld [vmem:[%s1 + $0x1c0] sm:$0xf]
  %v156 = vld [vmem:[%s1 + $0x1c4] sm:$0xf]
  %v157 = vld [vmem:[%s1 + $0x1c8] sm:$0xf]
  %v158 = vld [vmem:[%s1 + $0x1cc] sm:$0xf]
  %v159 = vld [vmem:[%s1 + $0x1d0] sm:$0xf]
  %v160 = vld [vmem:[%s1 + $0x1d4] sm:$0xf]
  %v161 = vld [vmem:[%s1 + $0x1d8] sm:$0xf]
  %v162 = vld [vmem:[%s1 + $0x1dc] sm:$0xf]
  %v163 = vld [vmem:[%s1 + $0x1e0] sm:$0xf]
  %v164 = vld [vmem:[%s1 + $0x1e4] sm:$0xf]
  %v165 = vld [vmem:[%s1 + $0x1e8] sm:$0xf]
  %v166 = vld [vmem:[%s1 + $0x1ec] sm:$0xf]
  %v167 = vld [vmem:[%s1 + $0x1f0] sm:$0xf]
  %v168 = vld [vmem:[%s1 + $0x1f4] sm:$0xf]
  %v169 = vld [vmem:[%s1 + $0x1f8] sm:$0xf]
  %v170 = vld [vmem:[%s1 + $0x1fc] sm:$0xf]
  %v171 = vld [vmem:[%s2] sm:$0x1]
  %v173 = vlaneseq
  %v174 = vshrl.u32 %v173, 7
  %v175 = vsub.s32 0, %v174
  %v176 = vrot.slane %v171, %v175
  %v194 = vunpack.c.l.b16 %v27
  %v195 = vunpack.c.h.b16 %v27
  %v196 = vunpack.c.l.b16 %v28
  %v197 = vunpack.c.h.b16 %v28
  %v198 = vunpack.c.l.b16 %v29
  %v199 = vunpack.c.h.b16 %v29
  %v200 = vunpack.c.l.b16 %v30
  %v201 = vunpack.c.h.b16 %v30
  %v202 = vunpack.c.l.b16 %v31
  %v203 = vunpack.c.h.b16 %v31
  %v204 = vunpack.c.l.b16 %v32
  %v205 = vunpack.c.h.b16 %v32
  %v206 = vunpack.c.l.b16 %v33
  %v207 = vunpack.c.h.b16 %v33
  %v208 = vunpack.c.l.b16 %v34
  %v209 = vunpack.c.h.b16 %v34
  %v210 = vunpack.c.l.b16 %v35
  %v211 = vunpack.c.h.b16 %v35
  %v212 = vunpack.c.l.b16 %v36
  %v213 = vunpack.c.h.b16 %v36
  %v214 = vunpack.c.l.b16 %v37
  %v215 = vunpack.c.h.b16 %v37
  %v216 = vunpack.c.l.b16 %v38
  %v217 = vunpack.c.h.b16 %v38
  %v218 = vunpack.c.l.b16 %v39
  %v219 = vunpack.c.h.b16 %v39
  %v220 = vunpack.c.l.b16 %v40
  %v221 = vunpack.c.h.b16 %v40
  %v222 = vunpack.c.l.b16 %v41
  %v223 = vunpack.c.h.b16 %v41
  %v224 = vunpack.c.l.b16 %v42
  %v225 = vunpack.c.h.b16 %v42
  %v226 = vpack.c.b16 %v202, %v194
  %v227 = vpack.c.b16 %v203, %v195
  %v228 = vpack.c.b16 %v204, %v196
  %v229 = vpack.c.b16 %v205, %v197
  %v230 = vpack.c.b16 %v206, %v198
  %v231 = vpack.c.b16 %v207, %v199
  %v232 = vpack.c.b16 %v208, %v200
  %v233 = vpack.c.b16 %v209, %v201
  %v234 = vpack.c.b16 %v218, %v210
  %v235 = vpack.c.b16 %v219, %v211
  %v236 = vpack.c.b16 %v220, %v212
  %v237 = vpack.c.b16 %v221, %v213
  %v238 = vpack.c.b16 %v222, %v214
  %v239 = vpack.c.b16 %v223, %v215
  %v240 = vpack.c.b16 %v224, %v216
  %v241 = vpack.c.b16 %v225, %v217
  %v386 = vunpack.c.l.b16 %v43
  %v387 = vunpack.c.l.b16 %v44
  %v388 = vunpack.c.l.b16 %v45
  %v389 = vunpack.c.l.b16 %v46
  %v390 = vunpack.c.l.b16 %v47
  %v391 = vunpack.c.l.b16 %v48
  %v392 = vunpack.c.l.b16 %v49
  %v393 = vunpack.c.l.b16 %v50
  %v394 = vunpack.c.l.b16 %v51
  %v395 = vunpack.c.l.b16 %v52
  %v396 = vunpack.c.l.b16 %v53
  %v397 = vunpack.c.l.b16 %v54
  %v398 = vunpack.c.l.b16 %v55
  %v399 = vunpack.c.l.b16 %v56
  %v400 = vunpack.c.l.b16 %v57
  %v401 = vunpack.c.l.b16 %v58
  %v402 = vunpack.c.l.b16 %v59
  %v403 = vunpack.c.l.b16 %v60
  %v404 = vunpack.c.l.b16 %v61
  %v405 = vunpack.c.l.b16 %v62
  %v406 = vunpack.c.l.b16 %v63
  %v407 = vunpack.c.l.b16 %v64
  %v408 = vunpack.c.l.b16 %v65
  %v409 = vunpack.c.l.b16 %v66
  %v410 = vunpack.c.l.b16 %v67
  %v411 = vunpack.c.l.b16 %v68
  %v412 = vunpack.c.l.b16 %v69
  %v413 = vunpack.c.l.b16 %v70
  %v414 = vunpack.c.l.b16 %v71
  %v415 = vunpack.c.l.b16 %v72
  %v416 = vunpack.c.l.b16 %v73
  %v417 = vunpack.c.l.b16 %v74
  %v418 = vunpack.c.l.b16 %v75
  %v419 = vunpack.c.l.b16 %v76
  %v420 = vunpack.c.l.b16 %v77
  %v421 = vunpack.c.l.b16 %v78
  %v422 = vunpack.c.l.b16 %v79
  %v423 = vunpack.c.l.b16 %v80
  %v424 = vunpack.c.l.b16 %v81
  %v425 = vunpack.c.l.b16 %v82
  %v426 = vunpack.c.l.b16 %v83
  %v427 = vunpack.c.l.b16 %v84
  %v428 = vunpack.c.l.b16 %v85
  %v429 = vunpack.c.l.b16 %v86
  %v430 = vunpack.c.l.b16 %v87
  %v431 = vunpack.c.l.b16 %v88
  %v432 = vunpack.c.l.b16 %v89
  %v433 = vunpack.c.l.b16 %v90
  %v434 = vunpack.c.l.b16 %v91
  %v435 = vunpack.c.l.b16 %v92
  %v436 = vunpack.c.l.b16 %v93
  %v437 = vunpack.c.l.b16 %v94
  %v438 = vunpack.c.l.b16 %v95
  %v439 = vunpack.c.l.b16 %v96
  %v440 = vunpack.c.l.b16 %v97
  %v441 = vunpack.c.l.b16 %v98
  %v442 = vunpack.c.l.b16 %v99
  %v443 = vunpack.c.l.b16 %v100
  %v444 = vunpack.c.l.b16 %v101
  %v445 = vunpack.c.l.b16 %v102
  %v446 = vunpack.c.l.b16 %v103
  %v447 = vunpack.c.l.b16 %v104
  %v448 = vunpack.c.l.b16 %v105
  %v449 = vunpack.c.l.b16 %v106
  %v450 = vunpack.c.l.b16 %v107
  %v451 = vunpack.c.l.b16 %v108
  %v452 = vunpack.c.l.b16 %v109
  %v453 = vunpack.c.l.b16 %v110
  %v454 = vunpack.c.l.b16 %v111
  %v455 = vunpack.c.l.b16 %v112
  %v456 = vunpack.c.l.b16 %v113
  %v457 = vunpack.c.l.b16 %v114
  %v458 = vunpack.c.l.b16 %v115
  %v459 = vunpack.c.l.b16 %v116
  %v460 = vunpack.c.l.b16 %v117
  %v461 = vunpack.c.l.b16 %v118
  %v462 = vunpack.c.l.b16 %v119
  %v463 = vunpack.c.l.b16 %v120
  %v464 = vunpack.c.l.b16 %v121
  %v465 = vunpack.c.l.b16 %v122
  %v466 = vunpack.c.l.b16 %v123
  %v467 = vunpack.c.l.b16 %v124
  %v468 = vunpack.c.l.b16 %v125
  %v469 = vunpack.c.l.b16 %v126
  %v470 = vunpack.c.l.b16 %v127
  %v471 = vunpack.c.l.b16 %v128
  %v472 = vunpack.c.l.b16 %v129
  %v473 = vunpack.c.l.b16 %v130
  %v474 = vunpack.c.l.b16 %v131
  %v475 = vunpack.c.l.b16 %v132
  %v476 = vunpack.c.l.b16 %v133
  %v477 = vunpack.c.l.b16 %v134
  %v478 = vunpack.c.l.b16 %v135
  %v479 = vunpack.c.l.b16 %v136
  %v480 = vunpack.c.l.b16 %v137
  %v481 = vunpack.c.l.b16 %v138
  %v482 = vunpack.c.l.b16 %v139
  %v483 = vunpack.c.l.b16 %v140
  %v484 = vunpack.c.l.b16 %v141
  %v485 = vunpack.c.l.b16 %v142
  %v486 = vunpack.c.l.b16 %v143
  %v487 = vunpack.c.l.b16 %v144
  %v488 = vunpack.c.l.b16 %v145
  %v489 = vunpack.c.l.b16 %v146
  %v490 = vunpack.c.l.b16 %v147
  %v491 = vunpack.c.l.b16 %v148
  %v492 = vunpack.c.l.b16 %v149
  %v493 = vunpack.c.l.b16 %v150
  %v494 = vunpack.c.l.b16 %v151
  %v495 = vunpack.c.l.b16 %v152
  %v496 = vunpack.c.l.b16 %v153
  %v497 = vunpack.c.l.b16 %v154
  %v498 = vunpack.c.l.b16 %v155
  %v499 = vunpack.c.l.b16 %v156
  %v500 = vunpack.c.l.b16 %v157
  %v501 = vunpack.c.l.b16 %v158
  %v502 = vunpack.c.l.b16 %v159
  %v503 = vunpack.c.l.b16 %v160
  %v504 = vunpack.c.l.b16 %v161
  %v505 = vunpack.c.l.b16 %v162
  %v506 = vunpack.c.l.b16 %v163
  %v507 = vunpack.c.l.b16 %v164
  %v508 = vunpack.c.l.b16 %v165
  %v509 = vunpack.c.l.b16 %v166
  %v510 = vunpack.c.l.b16 %v167
  %v511 = vunpack.c.l.b16 %v168
  %v512 = vunpack.c.l.b16 %v169
  %v513 = vunpack.c.l.b16 %v170
  %v514 = vpack.c.b16 %v387, %v386
  %v515 = vpack.c.b16 %v389, %v388
  %v516 = vpack.c.b16 %v391, %v390
  %v517 = vpack.c.b16 %v393, %v392
  %v518 = vpack.c.b16 %v395, %v394
  %v519 = vpack.c.b16 %v397, %v396
  %v520 = vpack.c.b16 %v399, %v398
  %v521 = vpack.c.b16 %v401, %v400
  %v522 = vpack.c.b16 %v403, %v402
  %v523 = vpack.c.b16 %v405, %v404
  %v524 = vpack.c.b16 %v407, %v406
  %v525 = vpack.c.b16 %v409, %v408
  %v526 = vpack.c.b16 %v411, %v410
  %v527 = vpack.c.b16 %v413, %v412
  %v528 = vpack.c.b16 %v415, %v414
  %v529 = vpack.c.b16 %v417, %v416
  %v530 = vpack.c.b16 %v419, %v418
  %v531 = vpack.c.b16 %v421, %v420
  %v532 = vpack.c.b16 %v423, %v422
  %v533 = vpack.c.b16 %v425, %v424
  %v534 = vpack.c.b16 %v427, %v426
  %v535 = vpack.c.b16 %v429, %v428
  %v536 = vpack.c.b16 %v431, %v430
  %v537 = vpack.c.b16 %v433, %v432
  %v538 = vpack.c.b16 %v435, %v434
  %v539 = vpack.c.b16 %v437, %v436
  %v540 = vpack.c.b16 %v439, %v438
  %v541 = vpack.c.b16 %v441, %v440
  %v542 = vpack.c.b16 %v443, %v442
  %v543 = vpack.c.b16 %v445, %v444
  %v544 = vpack.c.b16 %v447, %v446
  %v545 = vpack.c.b16 %v449, %v448
  %v546 = vpack.c.b16 %v451, %v450
  %v547 = vpack.c.b16 %v453, %v452
  %v548 = vpack.c.b16 %v455, %v454
  %v549 = vpack.c.b16 %v457, %v456
  %v550 = vpack.c.b16 %v459, %v458
  %v551 = vpack.c.b16 %v461, %v460
  %v552 = vpack.c.b16 %v463, %v462
  %v553 = vpack.c.b16 %v465, %v464
  %v554 = vpack.c.b16 %v467, %v466
  %v555 = vpack.c.b16 %v469, %v468
  %v556 = vpack.c.b16 %v471, %v470
  %v557 = vpack.c.b16 %v473, %v472
  %v558 = vpack.c.b16 %v475, %v474
  %v559 = vpack.c.b16 %v477, %v476
  %v560 = vpack.c.b16 %v479, %v478
  %v561 = vpack.c.b16 %v481, %v480
  %v562 = vpack.c.b16 %v483, %v482
  %v563 = vpack.c.b16 %v485, %v484
  %v564 = vpack.c.b16 %v487, %v486
  %v565 = vpack.c.b16 %v489, %v488
  %v566 = vpack.c.b16 %v491, %v490
  %v567 = vpack.c.b16 %v493, %v492
  %v568 = vpack.c.b16 %v495, %v494
  %v569 = vpack.c.b16 %v497, %v496
  %v570 = vpack.c.b16 %v499, %v498
  %v571 = vpack.c.b16 %v501, %v500
  %v572 = vpack.c.b16 %v503, %v502
  %v573 = vpack.c.b16 %v505, %v504
  %v574 = vpack.c.b16 %v507, %v506
  %v575 = vpack.c.b16 %v509, %v508
  %v576 = vpack.c.b16 %v511, %v510
  %v577 = vpack.c.b16 %v513, %v512
  %642 = vmatprep.subr.bf16.mxu0 0
  %643 = vmatpush1.bf16.msra.mxu0 %v514
  %644 = vmatprep.subr.bf16.mxu0 0
  %645 = vmatpush1.bf16.msra.mxu0 %v515
  %646 = vmatprep.subr.bf16.mxu0 0
  %647 = vmatpush1.bf16.msra.mxu0 %v516
  %648 = vmatprep.subr.bf16.mxu0 0
  %649 = vmatpush1.bf16.msra.mxu0 %v517
  %650 = vmatprep.subr.bf16.mxu0 0
  %651 = vmatpush1.bf16.msra.mxu0 %v518
  %652 = vmatprep.subr.bf16.mxu0 0
  %653 = vmatpush1.bf16.msra.mxu0 %v519
  %654 = vmatprep.subr.bf16.mxu0 0
  %655 = vmatpush1.bf16.msra.mxu0 %v520
  %656 = vmatprep.subr.bf16.mxu0 0
  %657 = vmatpush1.bf16.msra.mxu0 %v521
  %658 = vmatprep.subr.bf16.mxu0 0
  %659 = vmatpush1.bf16.msra.mxu0 %v522
  %660 = vmatprep.subr.bf16.mxu0 0
  %661 = vmatpush1.bf16.msra.mxu0 %v523
  %662 = vmatprep.subr.bf16.mxu0 0
  %663 = vmatpush1.bf16.msra.mxu0 %v524
  %664 = vmatprep.subr.bf16.mxu0 0
  %665 = vmatpush1.bf16.msra.mxu0 %v525
  %666 = vmatprep.subr.bf16.mxu0 0
  %667 = vmatpush1.bf16.msra.mxu0 %v526
  %668 = vmatprep.subr.bf16.mxu0 0
  %669 = vmatpush1.bf16.msra.mxu0 %v527
  %670 = vmatprep.subr.bf16.mxu0 0
  %671 = vmatpush1.bf16.msra.mxu0 %v528
  %672 = vmatprep.subr.bf16.mxu0 0
  %673 = vmatpush1.bf16.msra.mxu0 %v529
  %674 = vmatprep.mubr.bf16.mxu0 %v227
  %675 = vmatmul.mubr.bf16.gmra.mrb[0].mxu0 %v226
  %v676 = vpop.f32.mrb[0].mxu0
  %v677 = vadd.f32 %v176, %v676
  %v678 = vpop.f32.mrb[0].mxu0
  %v679 = vpop.f32.mrb[0].mxu0
  %v680 = vadd.f32 %v176, %v679
  %v681 = vpop.f32.mrb[0].mxu0
  %682 = vmatprep.mubr.bf16.mxu0 %v235
  %683 = vmatmul.mubr.bf16.gmra.mrb[0].mxu0 %v234
  %v684 = vpop.f32.mrb[0].mxu0
  %v685 = vadd.f32 %v176, %v684
  %v686 = vpop.f32.mrb[0].mxu0
  %v687 = vpop.f32.mrb[0].mxu0
  %v688 = vadd.f32 %v176, %v687
  %v689 = vpop.f32.mrb[0].mxu0
  %690 = vdwg.mxu0
  %691 = vmatprep.subr.bf16.mxu0 0
  %692 = vmatpush1.bf16.msra.mxu0 %v530
  %693 = vmatprep.subr.bf16.mxu0 0
  %694 = vmatpush1.bf16.msra.mxu0 %v531
  %695 = vmatprep.subr.bf16.mxu0 0
  %696 = vmatpush1.bf16.msra.mxu0 %v532
  %697 = vmatprep.subr.bf16.mxu0 0
  %698 = vmatpush1.bf16.msra.mxu0 %v533
  %699 = vmatprep.subr.bf16.mxu0 0
  %700 = vmatpush1.bf16.msra.mxu0 %v534
  %701 = vmatprep.subr.bf16.mxu0 0
  %702 = vmatpush1.bf16.msra.mxu0 %v535
  %703 = vmatprep.subr.bf16.mxu0 0
  %704 = vmatpush1.bf16.msra.mxu0 %v536
  %705 = vmatprep.subr.bf16.mxu0 0
  %706 = vmatpush1.bf16.msra.mxu0 %v537
  %707 = vmatprep.subr.bf16.mxu0 0
  %708 = vmatpush1.bf16.msra.mxu0 %v538
  %709 = vmatprep.subr.bf16.mxu0 0
  %710 = vmatpush1.bf16.msra.mxu0 %v539
  %711 = vmatprep.subr.bf16.mxu0 0
  %712 = vmatpush1.bf16.msra.mxu0 %v540
  %713 = vmatprep.subr.bf16.mxu0 0
  %714 = vmatpush1.bf16.msra.mxu0 %v541
  %715 = vmatprep.subr.bf16.mxu0 0
  %716 = vmatpush1.bf16.msra.mxu0 %v542
  %717 = vmatprep.subr.bf16.mxu0 0
  %718 = vmatpush1.bf16.msra.mxu0 %v543
  %719 = vmatprep.subr.bf16.mxu0 0
  %720 = vmatpush1.bf16.msra.mxu0 %v544
  %721 = vmatprep.subr.bf16.mxu0 0
  %722 = vmatpush1.bf16.msra.mxu0 %v545
  %723 = vmatprep.mubr.bf16.mxu0 %v229
  %724 = vmatmul.mubr.bf16.gmra.mrb[0].mxu0 %v228
  %v725 = vpop.f32.mrb[0].mxu0
  %v726 = vadd.f32 %v677, %v725
  %v727 = vpop.f32.mrb[0].mxu0
  %v728 = vpop.f32.mrb[0].mxu0
  %v729 = vadd.f32 %v680, %v728
  %v730 = vpop.f32.mrb[0].mxu0
  %731 = vmatprep.mubr.bf16.mxu0 %v237
  %732 = vmatmul.mubr.bf16.gmra.mrb[0].mxu0 %v236
  %v733 = vpop.f32.mrb[0].mxu0
  %v734 = vadd.f32 %v685, %v733
  %v735 = vpop.f32.mrb[0].mxu0
  %v736 = vpop.f32.mrb[0].mxu0
  %v737 = vadd.f32 %v688, %v736
  %v738 = vpop.f32.mrb[0].mxu0
  %739 = vdwg.mxu0
  %740 = vmatprep.subr.bf16.mxu0 0
  %741 = vmatpush1.bf16.msra.mxu0 %v546
  %742 = vmatprep.subr.bf16.mxu0 0
  %743 = vmatpush1.bf16.msra.mxu0 %v547
  %744 = vmatprep.subr.bf16.mxu0 0
  %745 = vmatpush1.bf16.msra.mxu0 %v548
  %746 = vmatprep.subr.bf16.mxu0 0
  %747 = vmatpush1.bf16.msra.mxu0 %v549
  %748 = vmatprep.subr.bf16.mxu0 0
  %749 = vmatpush1.bf16.msra.mxu0 %v550
  %750 = vmatprep.subr.bf16.mxu0 0
  %751 = vmatpush1.bf16.msra.mxu0 %v551
  %752 = vmatprep.subr.bf16.mxu0 0
  %753 = vmatpush1.bf16.msra.mxu0 %v552
  %754 = vmatprep.subr.bf16.mxu0 0
  %755 = vmatpush1.bf16.msra.mxu0 %v553
  %756 = vmatprep.subr.bf16.mxu0 0
  %757 = vmatpush1.bf16.msra.mxu0 %v554
  %758 = vmatprep.subr.bf16.mxu0 0
  %759 = vmatpush1.bf16.msra.mxu0 %v555
  %760 = vmatprep.subr.bf16.mxu0 0
  %761 = vmatpush1.bf16.msra.mxu0 %v556
  %762 = vmatprep.subr.bf16.mxu0 0
  %763 = vmatpush1.bf16.msra.mxu0 %v557
  %764 = vmatprep.subr.bf16.mxu0 0
  %765 = vmatpush1.bf16.msra.mxu0 %v558
  %766 = vmatprep.subr.bf16.mxu0 0
  %767 = vmatpush1.bf16.msra.mxu0 %v559
  %768 = vmatprep.subr.bf16.mxu0 0
  %769 = vmatpush1.bf16.msra.mxu0 %v560
  %770 = vmatprep.subr.bf16.mxu0 0
  %771 = vmatpush1.bf16.msra.mxu0 %v561
  %772 = vmatprep.mubr.bf16.mxu0 %v231
  %773 = vmatmul.mubr.bf16.gmra.mrb[0].mxu0 %v230
  %v774 = vpop.f32.mrb[0].mxu0
  %v775 = vadd.f32 %v726, %v774
  %v776 = vpop.f32.mrb[0].mxu0
  %v777 = vpop.f32.mrb[0].mxu0
  %v778 = vadd.f32 %v729, %v777
  %v779 = vpop.f32.mrb[0].mxu0
  %780 = vmatprep.mubr.bf16.mxu0 %v239
  %781 = vmatmul.mubr.bf16.gmra.mrb[0].mxu0 %v238
  %v782 = vpop.f32.mrb[0].mxu0
  %v783 = vadd.f32 %v734, %v782
  %v784 = vpop.f32.mrb[0].mxu0
  %v785 = vpop.f32.mrb[0].mxu0
  %v786 = vadd.f32 %v737, %v785
  %v787 = vpop.f32.mrb[0].mxu0
  %788 = vdwg.mxu0
  %789 = vmatprep.subr.bf16.mxu0 0
  %790 = vmatpush1.bf16.msra.mxu0 %v562
  %791 = vmatprep.subr.bf16.mxu0 0
  %792 = vmatpush1.bf16.msra.mxu0 %v563
  %793 = vmatprep.subr.bf16.mxu0 0
  %794 = vmatpush1.bf16.msra.mxu0 %v564
  %795 = vmatprep.subr.bf16.mxu0 0
  %796 = vmatpush1.bf16.msra.mxu0 %v565
  %797 = vmatprep.subr.bf16.mxu0 0
  %798 = vmatpush1.bf16.msra.mxu0 %v566
  %799 = vmatprep.subr.bf16.mxu0 0
  %800 = vmatpush1.bf16.msra.mxu0 %v567
  %801 = vmatprep.subr.bf16.mxu0 0
  %802 = vmatpush1.bf16.msra.mxu0 %v568
  %803 = vmatprep.subr.bf16.mxu0 0
  %804 = vmatpush1.bf16.msra.mxu0 %v569
  %805 = vmatprep.subr.bf16.mxu0 0
  %806 = vmatpush1.bf16.msra.mxu0 %v570
  %807 = vmatprep.subr.bf16.mxu0 0
  %808 = vmatpush1.bf16.msra.mxu0 %v571
  %809 = vmatprep.subr.bf16.mxu0 0
  %810 = vmatpush1.bf16.msra.mxu0 %v572
  %811 = vmatprep.subr.bf16.mxu0 0
  %812 = vmatpush1.bf16.msra.mxu0 %v573
  %813 = vmatprep.subr.bf16.mxu0 0
  %814 = vmatpush1.bf16.msra.mxu0 %v574
  %815 = vmatprep.subr.bf16.mxu0 0
  %816 = vmatpush1.bf16.msra.mxu0 %v575
  %817 = vmatprep.subr.bf16.mxu0 0
  %818 = vmatpush1.bf16.msra.mxu0 %v576
  %819 = vmatprep.subr.bf16.mxu0 0
  %820 = vmatpush1.bf16.msra.mxu0 %v577
  %821 = vmatprep.mubr.bf16.mxu0 %v233
  %822 = vmatmul.mubr.bf16.gmra.mrb[0].mxu0 %v232
  %v823 = vpop.f32.mrb[0].mxu0
  %v824 = vadd.f32 %v775, %v823
  %v825 = vpop.f32.mrb[0].mxu0
  %v826 = vpop.f32.mrb[0].mxu0
  %v827 = vadd.f32 %v778, %v826
  %v828 = vpop.f32.mrb[0].mxu0
  %829 = vmatprep.mubr.bf16.mxu0 %v241
  %830 = vmatmul.mubr.bf16.gmra.mrb[0].mxu0 %v240
  %v831 = vpop.f32.mrb[0].mxu0
  %v832 = vadd.f32 %v783, %v831
  %v833 = vpop.f32.mrb[0].mxu0
  %v834 = vpop.f32.mrb[0].mxu0
  %v835 = vadd.f32 %v786, %v834
  %v836 = vpop.f32.mrb[0].mxu0
  %837 = vdwg.mxu0
  %v838 = vld [vmem:[%s5] sm:$0xff]
  %v839 = vld [vmem:[%s6] sm:$0xff]
  %v840 = vld [vmem:[%s6 + $0x8] sm:$0xff]
  %v841 = vld [vmem:[%s6 + $0x10] sm:$0xff]
  %v842 = vld [vmem:[%s6 + $0x18] sm:$0xff]
  %vm843 = vcmask 261120
  %v845 = vsel %vm843, %v838, 0
  %847 = vmatprep.subr.mxu0 0.0
  %848 = vmatpush1.msra.mxu0 %v824
  %849 = vmatprep.subr.mxu0 0.0
  %850 = vmatpush1.msra.mxu0 %v827
  %851 = vmatprep.subr.mxu0 0.0
  %852 = vmatpush1.msra.mxu0 %v832
  %853 = vmatprep.subr.mxu0 0.0
  %854 = vmatpush1.msra.mxu0 %v835
  %855 = vmatprep.subr.mxu0 0.0
  %856 = vmatpush1.msra.mxu0 0.0
  %857 = vmatprep.subr.mxu0 0.0
  %858 = vmatpush1.msra.mxu0 0.0
  %859 = vmatprep.subr.mxu0 0.0
  %860 = vmatpush1.msra.mxu0 0.0
  %861 = vmatprep.subr.mxu0 0.0
  %862 = vmatpush1.msra.mxu0 0.0
  %863 = vmatprep.subr.mxu0 0.0
  %864 = vmatpush1.msra.mxu0 0.0
  %865 = vmatprep.subr.mxu0 0.0
  %866 = vmatpush1.msra.mxu0 0.0
  %867 = vmatprep.subr.mxu0 0.0
  %868 = vmatpush1.msra.mxu0 0.0
  %869 = vmatprep.subr.mxu0 0.0
  %870 = vmatpush1.msra.mxu0 0.0
  %871 = vmatprep.subr.mxu0 0.0
  %872 = vmatpush1.msra.mxu0 0.0
  %873 = vmatprep.subr.mxu0 0.0
  %874 = vmatpush1.msra.mxu0 0.0
  %875 = vmatprep.subr.mxu0 0.0
  %876 = vmatpush1.msra.mxu0 0.0
  %877 = vmatprep.subr.mxu0 0.0
  %878 = vmatpush1.msra.mxu0 0.0
  %879 = vmatprep.subr.mxu0 0.0
  %880 = vmatpush1.msra.mxu0 0.0
  %881 = vmatprep.subr.mxu0 0.0
  %882 = vmatpush1.msra.mxu0 0.0
  %883 = vmatprep.subr.mxu0 0.0
  %884 = vmatpush1.msra.mxu0 0.0
  %885 = vmatprep.subr.mxu0 0.0
  %886 = vmatpush1.msra.mxu0 0.0
  %887 = vmatprep.subr.mxu0 0.0
  %888 = vmatpush1.msra.mxu0 0.0
  %889 = vmatprep.subr.mxu0 0.0
  %890 = vmatpush1.msra.mxu0 0.0
  %891 = vmatprep.subr.mxu0 0.0
  %892 = vmatpush1.msra.mxu0 0.0
  %893 = vmatprep.subr.mxu0 0.0
  %894 = vmatpush1.msra.mxu0 0.0
  %895 = vmatprep.subr.mxu0 0.0
  %896 = vmatpush1.msra.mxu0 0.0
  %897 = vmatprep.subr.mxu0 0.0
  %898 = vmatpush1.msra.mxu0 0.0
  %899 = vmatprep.subr.mxu0 0.0
  %900 = vmatpush1.msra.mxu0 0.0
  %901 = vmatprep.subr.mxu0 0.0
  %902 = vmatpush1.msra.mxu0 0.0
  %903 = vmatprep.subr.mxu0 0.0
  %904 = vmatpush1.msra.mxu0 0.0
  %905 = vmatprep.subr.mxu0 0.0
  %906 = vmatpush1.msra.mxu0 0.0
  %907 = vmatprep.subr.mxu0 0.0
  %908 = vmatpush1.msra.mxu0 0.0
  %909 = vmatprep.subr.mxu0 0.0
  %910 = vmatpush1.msra.mxu0 0.0
  %911 = vmatprep.mubr.f32.mxu0 0.0
  %912 = vmatmul.mubr.f32.gmra.mrb[0].mxu0 %v845
  %v913 = vpop.f32.mrb[0].mxu0
  %v914 = vadd.f32 0.0, %v913
  %v915 = vpop.f32.mrb[0].mxu0
  %916 = vdwg.mxu0
  %v917 = vmul.f32 %v914, 0.11111111
  %vm918 = vcmask 64512
  %v920 = vsel %vm918, %v839, 0
  %v923 = vsel %vm918, %v840, 0
  %v926 = vsel %vm918, %v841, 0
  %v929 = vsel %vm918, %v842, 0
  %931 = vmatprep.subr.mxu0 0.0
  %932 = vmatpush1.msra.mxu0 %v917
  %933 = vmatprep.subr.mxu0 0.0
  %934 = vmatpush1.msra.mxu0 0.0
  %935 = vmatprep.subr.mxu0 0.0
  %936 = vmatpush1.msra.mxu0 0.0
  %937 = vmatprep.subr.mxu0 0.0
  %938 = vmatpush1.msra.mxu0 0.0
  %939 = vmatprep.subr.mxu0 0.0
  %940 = vmatpush1.msra.mxu0 0.0
  %941 = vmatprep.subr.mxu0 0.0
  %942 = vmatpush1.msra.mxu0 0.0
  %943 = vmatprep.subr.mxu0 0.0
  %944 = vmatpush1.msra.mxu0 0.0
  %945 = vmatprep.subr.mxu0 0.0
  %946 = vmatpush1.msra.mxu0 0.0
  %947 = vmatprep.subr.mxu0 0.0
  %948 = vmatpush1.msra.mxu0 0.0
  %949 = vmatprep.subr.mxu0 0.0
  %950 = vmatpush1.msra.mxu0 0.0
  %951 = vmatprep.subr.mxu0 0.0
  %952 = vmatpush1.msra.mxu0 0.0
  %953 = vmatprep.subr.mxu0 0.0
  %954 = vmatpush1.msra.mxu0 0.0
  %955 = vmatprep.subr.mxu0 0.0
  %956 = vmatpush1.msra.mxu0 0.0
  %957 = vmatprep.subr.mxu0 0.0
  %958 = vmatpush1.msra.mxu0 0.0
  %959 = vmatprep.subr.mxu0 0.0
  %960 = vmatpush1.msra.mxu0 0.0
  %961 = vmatprep.subr.mxu0 0.0
  %962 = vmatpush1.msra.mxu0 0.0
  %963 = vmatprep.subr.mxu0 0.0
  %964 = vmatpush1.msra.mxu0 0.0
  %965 = vmatprep.subr.mxu0 0.0
  %966 = vmatpush1.msra.mxu0 0.0
  %967 = vmatprep.subr.mxu0 0.0
  %968 = vmatpush1.msra.mxu0 0.0
  %969 = vmatprep.subr.mxu0 0.0
  %970 = vmatpush1.msra.mxu0 0.0
  %971 = vmatprep.subr.mxu0 0.0
  %972 = vmatpush1.msra.mxu0 0.0
  %973 = vmatprep.subr.mxu0 0.0
  %974 = vmatpush1.msra.mxu0 0.0
  %975 = vmatprep.subr.mxu0 0.0
  %976 = vmatpush1.msra.mxu0 0.0
  %977 = vmatprep.subr.mxu0 0.0
  %978 = vmatpush1.msra.mxu0 0.0
  %979 = vmatprep.subr.mxu0 0.0
  %980 = vmatpush1.msra.mxu0 0.0
  %981 = vmatprep.subr.mxu0 0.0
  %982 = vmatpush1.msra.mxu0 0.0
  %983 = vmatprep.subr.mxu0 0.0
  %984 = vmatpush1.msra.mxu0 0.0
  %985 = vmatprep.subr.mxu0 0.0
  %986 = vmatpush1.msra.mxu0 0.0
  %987 = vmatprep.subr.mxu0 0.0
  %988 = vmatpush1.msra.mxu0 0.0
  %989 = vmatprep.subr.mxu0 0.0
  %990 = vmatpush1.msra.mxu0 0.0
  %991 = vmatprep.subr.mxu0 0.0
  %992 = vmatpush1.msra.mxu0 0.0
  %993 = vmatprep.subr.mxu0 0.0
  %994 = vmatpush1.msra.mxu0 0.0
  %995 = vmatprep.mubr.f32.mxu0 0.0
  %996 = vmatmul.mubr.f32.gmra.mrb[0].mxu0 %v920
  %v997 = vpop.f32.mrb[0].mxu0
  %v998 = vadd.f32 0.0, %v997
  %v999 = vpop.f32.mrb[0].mxu0
  %1000 = vmatprep.mubr.f32.mxu0 0.0
  %1001 = vmatmul.mubr.f32.gmra.mrb[0].mxu0 %v923
  %v1002 = vpop.f32.mrb[0].mxu0
  %v1003 = vadd.f32 0.0, %v1002
  %v1004 = vpop.f32.mrb[0].mxu0
  %1005 = vmatprep.mubr.f32.mxu0 0.0
  %1006 = vmatmul.mubr.f32.gmra.mrb[0].mxu0 %v926
  %v1007 = vpop.f32.mrb[0].mxu0
  %v1008 = vadd.f32 0.0, %v1007
  %v1009 = vpop.f32.mrb[0].mxu0
  %1010 = vmatprep.mubr.f32.mxu0 0.0
  %1011 = vmatmul.mubr.f32.gmra.mrb[0].mxu0 %v929
  %v1012 = vpop.f32.mrb[0].mxu0
  %v1013 = vadd.f32 0.0, %v1012
  %v1014 = vpop.f32.mrb[0].mxu0
  %1015 = vdwg.mxu0
  %v1016 = vsub.f32 %v824, %v998
  %v1017 = vsub.f32 %v827, %v1003
  %v1018 = vsub.f32 %v832, %v1008
  %v1019 = vsub.f32 %v835, %v1013
  %v1020 = vmul.f32 %v1016, %v1016
  %v1021 = vmul.f32 %v1017, %v1017
  %v1022 = vmul.f32 %v1018, %v1018
  %v1023 = vmul.f32 %v1019, %v1019
  %1024 = vmatprep.subr.mxu0 0.0
  %1025 = vmatpush1.msra.mxu0 %v1020
  %1026 = vmatprep.subr.mxu0 0.0
  %1027 = vmatpush1.msra.mxu0 %v1021
  %1028 = vmatprep.subr.mxu0 0.0
  %1029 = vmatpush1.msra.mxu0 %v1022
  %1030 = vmatprep.subr.mxu0 0.0
  %1031 = vmatpush1.msra.mxu0 %v1023
  %1032 = vmatprep.subr.mxu0 0.0
  %1033 = vmatpush1.msra.mxu0 0.0
  %1034 = vmatprep.subr.mxu0 0.0
  %1035 = vmatpush1.msra.mxu0 0.0
  %1036 = vmatprep.subr.mxu0 0.0
  %1037 = vmatpush1.msra.mxu0 0.0
  %1038 = vmatprep.subr.mxu0 0.0
  %1039 = vmatpush1.msra.mxu0 0.0
  %1040 = vmatprep.subr.mxu0 0.0
  %1041 = vmatpush1.msra.mxu0 0.0
  %1042 = vmatprep.subr.mxu0 0.0
  %1043 = vmatpush1.msra.mxu0 0.0
  %1044 = vmatprep.subr.mxu0 0.0
  %1045 = vmatpush1.msra.mxu0 0.0
  %1046 = vmatprep.subr.mxu0 0.0
  %1047 = vmatpush1.msra.mxu0 0.0
  %1048 = vmatprep.subr.mxu0 0.0
  %1049 = vmatpush1.msra.mxu0 0.0
  %1050 = vmatprep.subr.mxu0 0.0
  %1051 = vmatpush1.msra.mxu0 0.0
  %1052 = vmatprep.subr.mxu0 0.0
  %1053 = vmatpush1.msra.mxu0 0.0
  %1054 = vmatprep.subr.mxu0 0.0
  %1055 = vmatpush1.msra.mxu0 0.0
  %1056 = vmatprep.subr.mxu0 0.0
  %1057 = vmatpush1.msra.mxu0 0.0
  %1058 = vmatprep.subr.mxu0 0.0
  %1059 = vmatpush1.msra.mxu0 0.0
  %1060 = vmatprep.subr.mxu0 0.0
  %1061 = vmatpush1.msra.mxu0 0.0
  %1062 = vmatprep.subr.mxu0 0.0
  %1063 = vmatpush1.msra.mxu0 0.0
  %1064 = vmatprep.subr.mxu0 0.0
  %1065 = vmatpush1.msra.mxu0 0.0
  %1066 = vmatprep.subr.mxu0 0.0
  %1067 = vmatpush1.msra.mxu0 0.0
  %1068 = vmatprep.subr.mxu0 0.0
  %1069 = vmatpush1.msra.mxu0 0.0
  %1070 = vmatprep.subr.mxu0 0.0
  %1071 = vmatpush1.msra.mxu0 0.0
  %1072 = vmatprep.subr.mxu0 0.0
  %1073 = vmatpush1.msra.mxu0 0.0
  %1074 = vmatprep.subr.mxu0 0.0
  %1075 = vmatpush1.msra.mxu0 0.0
  %1076 = vmatprep.subr.mxu0 0.0
  %1077 = vmatpush1.msra.mxu0 0.0
  %1078 = vmatprep.subr.mxu0 0.0
  %1079 = vmatpush1.msra.mxu0 0.0
  %1080 = vmatprep.subr.mxu0 0.0
  %1081 = vmatpush1.msra.mxu0 0.0
  %1082 = vmatprep.subr.mxu0 0.0
  %1083 = vmatpush1.msra.mxu0 0.0
  %1084 = vmatprep.subr.mxu0 0.0
  %1085 = vmatpush1.msra.mxu0 0.0
  %1086 = vmatprep.subr.mxu0 0.0
  %1087 = vmatpush1.msra.mxu0 0.0
  %1088 = vmatprep.mubr.f32.mxu0 0.0
  %1089 = vmatmul.mubr.f32.gmra.mrb[0].mxu0 %v845
  %v1090 = vpop.f32.mrb[0].mxu0
  %v1091 = vadd.f32 0.0, %v1090
  %v1092 = vpop.f32.mrb[0].mxu0
  %1093 = vdwg.mxu0
  %v1094 = vmul.f32 %v1091, 0.11111111
  %v1095 = vadd.f32 %v1094, 1e-05
  %v1096 = vrsqrt.pop %v1095
  %1097 = vmatprep.subr.mxu0 0.0
  %1098 = vmatpush1.msra.mxu0 %v1096
  %1099 = vmatprep.subr.mxu0 0.0
  %1100 = vmatpush1.msra.mxu0 0.0
  %1101 = vmatprep.subr.mxu0 0.0
  %1102 = vmatpush1.msra.mxu0 0.0
  %1103 = vmatprep.subr.mxu0 0.0
  %1104 = vmatpush1.msra.mxu0 0.0
  %1105 = vmatprep.subr.mxu0 0.0
  %1106 = vmatpush1.msra.mxu0 0.0
  %1107 = vmatprep.subr.mxu0 0.0
  %1108 = vmatpush1.msra.mxu0 0.0
  %1109 = vmatprep.subr.mxu0 0.0
  %1110 = vmatpush1.msra.mxu0 0.0
  %1111 = vmatprep.subr.mxu0 0.0
  %1112 = vmatpush1.msra.mxu0 0.0
  %1113 = vmatprep.subr.mxu0 0.0
  %1114 = vmatpush1.msra.mxu0 0.0
  %1115 = vmatprep.subr.mxu0 0.0
  %1116 = vmatpush1.msra.mxu0 0.0
  %1117 = vmatprep.subr.mxu0 0.0
  %1118 = vmatpush1.msra.mxu0 0.0
  %1119 = vmatprep.subr.mxu0 0.0
  %1120 = vmatpush1.msra.mxu0 0.0
  %1121 = vmatprep.subr.mxu0 0.0
  %1122 = vmatpush1.msra.mxu0 0.0
  %1123 = vmatprep.subr.mxu0 0.0
  %1124 = vmatpush1.msra.mxu0 0.0
  %1125 = vmatprep.subr.mxu0 0.0
  %1126 = vmatpush1.msra.mxu0 0.0
  %1127 = vmatprep.subr.mxu0 0.0
  %1128 = vmatpush1.msra.mxu0 0.0
  %1129 = vmatprep.subr.mxu0 0.0
  %1130 = vmatpush1.msra.mxu0 0.0
  %1131 = vmatprep.subr.mxu0 0.0
  %1132 = vmatpush1.msra.mxu0 0.0
  %1133 = vmatprep.subr.mxu0 0.0
  %1134 = vmatpush1.msra.mxu0 0.0
  %1135 = vmatprep.subr.mxu0 0.0
  %1136 = vmatpush1.msra.mxu0 0.0
  %1137 = vmatprep.subr.mxu0 0.0
  %1138 = vmatpush1.msra.mxu0 0.0
  %1139 = vmatprep.subr.mxu0 0.0
  %1140 = vmatpush1.msra.mxu0 0.0
  %1141 = vmatprep.subr.mxu0 0.0
  %1142 = vmatpush1.msra.mxu0 0.0
  %1143 = vmatprep.subr.mxu0 0.0
  %1144 = vmatpush1.msra.mxu0 0.0
  %1145 = vmatprep.subr.mxu0 0.0
  %1146 = vmatpush1.msra.mxu0 0.0
  %1147 = vmatprep.subr.mxu0 0.0
  %1148 = vmatpush1.msra.mxu0 0.0
  %1149 = vmatprep.subr.mxu0 0.0
  %1150 = vmatpush1.msra.mxu0 0.0
  %1151 = vmatprep.subr.mxu0 0.0
  %1152 = vmatpush1.msra.mxu0 0.0
  %1153 = vmatprep.subr.mxu0 0.0
  %1154 = vmatpush1.msra.mxu0 0.0
  %1155 = vmatprep.subr.mxu0 0.0
  %1156 = vmatpush1.msra.mxu0 0.0
  %1157 = vmatprep.subr.mxu0 0.0
  %1158 = vmatpush1.msra.mxu0 0.0
  %1159 = vmatprep.subr.mxu0 0.0
  %1160 = vmatpush1.msra.mxu0 0.0
  %1161 = vmatprep.mubr.f32.mxu0 0.0
  %1162 = vmatmul.mubr.f32.gmra.mrb[0].mxu0 %v920
  %v1163 = vpop.f32.mrb[0].mxu0
  %v1164 = vadd.f32 0.0, %v1163
  %v1165 = vpop.f32.mrb[0].mxu0
  %1166 = vmatprep.mubr.f32.mxu0 0.0
  %1167 = vmatmul.mubr.f32.gmra.mrb[0].mxu0 %v923
  %v1168 = vpop.f32.mrb[0].mxu0
  %v1169 = vadd.f32 0.0, %v1168
  %v1170 = vpop.f32.mrb[0].mxu0
  %1171 = vmatprep.mubr.f32.mxu0 0.0
  %1172 = vmatmul.mubr.f32.gmra.mrb[0].mxu0 %v926
  %v1173 = vpop.f32.mrb[0].mxu0
  %v1174 = vadd.f32 0.0, %v1173
  %v1175 = vpop.f32.mrb[0].mxu0
  %1176 = vmatprep.mubr.f32.mxu0 0.0
  %1177 = vmatmul.mubr.f32.gmra.mrb[0].mxu0 %v929
  %v1178 = vpop.f32.mrb[0].mxu0
  %v1179 = vadd.f32 0.0, %v1178
  %v1180 = vpop.f32.mrb[0].mxu0
  %1181 = vdwg.mxu0
  %v1182 = vmul.f32 %v1016, %v1164
  %v1183 = vmul.f32 %v1017, %v1169
  %v1184 = vmul.f32 %v1018, %v1174
  %v1185 = vmul.f32 %v1019, %v1179
  %v1186 = vld [vmem:[%s3] sm:$0x1]
  %v1188 = vlaneseq
  %v1189 = vshrl.u32 %v1188, 7
  %v1190 = vsub.s32 0, %v1189
  %v1191 = vrot.slane %v1186, %v1190
  %v1193 = vmul.f32 %v1182, %v1191
  %v1194 = vmul.f32 %v1183, %v1191
  %v1195 = vmul.f32 %v1184, %v1191
  %v1196 = vmul.f32 %v1185, %v1191
  %v1197 = vld [vmem:[%s4] sm:$0x1]
  %v1199 = vlaneseq
  %v1200 = vshrl.u32 %v1199, 7
  %v1201 = vsub.s32 0, %v1200
  %v1202 = vrot.slane %v1197, %v1201
  %v1204 = vadd.f32 %v1193, %v1202
  %v1205 = vadd.f32 %v1194, %v1202
  %v1206 = vadd.f32 %v1195, %v1202
  %v1207 = vadd.f32 %v1196, %v1202
  %v1208 = vpack.c.bf16 %v1205, %v1204
  %v1209 = vpack.c.bf16 %v1207, %v1206
  %v1212 = vunpack.c.l.b16 %v1208
  %v1213 = vunpack.c.h.b16 %v1208
  %v1214 = vunpack.c.l.b16 %v1209
  %v1215 = vunpack.c.h.b16 %v1209
  %v1216 = vpack.c.b16 %v1212, %v1212
  %v1217 = vpack.c.b16 %v1213, %v1213
  %v1218 = vpack.c.b16 %v1214, %v1214
  %v1219 = vpack.c.b16 %v1215, %v1215
  %1224 = vst [vmem:[%s7] sm:$0xf] %v1216
  %1225 = vst [vmem:[%s7 + $0x4] sm:$0xf] %v1217
  %1226 = vst [vmem:[%s7 + $0x8] sm:$0xf] %v1218
  %1227 = vst [vmem:[%s7 + $0xc] sm:$0xf] %v1219
  // Predicated region
  $region30: #{simple_discriminator_forward.6} parent=0 // pred_check
    _
  $region31: #{simple_discriminator_forward.6} parent=0 // pred_check_branch
    %1229 = sbr.rel (0) target = $region33
  $region32: #{simple_discriminator_forward.6} parent=0 // pred_region
    _
  $region33: #{simple_discriminator_forward.6} parent=0 // pred_fallthru
    _
  // Predicated region
  $region34: #{simple_discriminator_forward.6} parent=0 // pred_check
    _
  $region35: #{simple_discriminator_forward.6} parent=0 // pred_check_branch
    %1231 = sbr.rel (0) target = $region37
  $region36: #{simple_discriminator_forward.6} parent=0 // pred_region
    _
  $region37: #{simple_discriminator_forward.6} parent=0 // pred_fallthru
    _

// kernel: simple_discriminator_forward.7
$region0: #{simple_discriminator_forward.7}
  #allocation0 [shape = 'u32[]', space=smem, size = 0x4, offset = 0x4, fixed_abs, tag = 'smem constant byte address 0x4 - core index']
  #allocation1 [shape = 'u32[144,128]{1,0:T(1,128)}', space=vmem, size = 0x12000, scoped, tag = 'internal scratch']
  %s0 = inlined_call_operand.vmem [shape: bf16[16,2048], index: 0, kind: input, shape index: {}]
  %s1 = inlined_call_operand.vmem [shape: bf16[2048,128], index: 1, kind: input, shape index: {}]
  %s2 = inlined_call_operand.vmem [shape: f32[1,128], index: 2, kind: input, shape index: {}]
  %s3 = inlined_call_operand.vmem [shape: f32[16,128], index: 3, kind: output, shape index: {}]
  %s4 = sld [smem:[#allocation0]]
  $region22: #{simple_discriminator_forward.7} parent=0
    _
  %s6 = ssub.s32 1, %s4
  %s7 = scalar_select 0, %s6, %s4
  // Predicated region
  $region2: #{simple_discriminator_forward.7} parent=0 // pred_check
    _
  $region3: #{simple_discriminator_forward.7} parent=0 // pred_check_branch
    %9 = sbr.rel (0) target = $region5
  $region4: #{simple_discriminator_forward.7} parent=0 // pred_region
    _
  $region5: #{simple_discriminator_forward.7} parent=0 // pred_fallthru
    _
  // Predicated region
  $region6: #{simple_discriminator_forward.7} parent=0 // pred_check
    _
  $region7: #{simple_discriminator_forward.7} parent=0 // pred_check_branch
    %11 = sbr.rel (0) target = $region9
  $region8: #{simple_discriminator_forward.7} parent=0 // pred_region
    _
  $region9: #{simple_discriminator_forward.7} parent=0 // pred_fallthru
    _
  // Predicated region
  $region10: #{simple_discriminator_forward.7} parent=0 // pred_check
    _
  $region11: #{simple_discriminator_forward.7} parent=0 // pred_check_branch
    %13 = sbr.rel (0) target = $region13
  $region12: #{simple_discriminator_forward.7} parent=0 // pred_region
    _
  $region13: #{simple_discriminator_forward.7} parent=0 // pred_fallthru
    _
  %v15 = vld [vmem:[%s0] sm:$0xff]
  %v16 = vld [vmem:[%s0 + $0x8] sm:$0xff]
  %v17 = vld [vmem:[%s0 + $0x10] sm:$0xff]
  %v18 = vld [vmem:[%s0 + $0x18] sm:$0xff]
  %v19 = vld [vmem:[%s0 + $0x20] sm:$0xff]
  %v20 = vld [vmem:[%s0 + $0x28] sm:$0xff]
  %v21 = vld [vmem:[%s0 + $0x30] sm:$0xff]
  %v22 = vld [vmem:[%s0 + $0x38] sm:$0xff]
  %v23 = vld [vmem:[%s0 + $0x40] sm:$0xff]
  %v24 = vld [vmem:[%s0 + $0x48] sm:$0xff]
  %v25 = vld [vmem:[%s0 + $0x50] sm:$0xff]
  %v26 = vld [vmem:[%s0 + $0x58] sm:$0xff]
  %v27 = vld [vmem:[%s0 + $0x60] sm:$0xff]
  %v28 = vld [vmem:[%s0 + $0x68] sm:$0xff]
  %v29 = vld [vmem:[%s0 + $0x70] sm:$0xff]
  %v30 = vld [vmem:[%s0 + $0x78] sm:$0xff]
  %v31 = vld [vmem:[%s1] sm:$0xf]
  %v32 = vld [vmem:[%s1 + $0x4] sm:$0xf]
  %v33 = vld [vmem:[%s1 + $0x8] sm:$0xf]
  %v34 = vld [vmem:[%s1 + $0xc] sm:$0xf]
  %v35 = vld [vmem:[%s1 + $0x10] sm:$0xf]
  %v36 = vld [vmem:[%s1 + $0x14] sm:$0xf]
  %v37 = vld [vmem:[%s1 + $0x18] sm:$0xf]
  %v38 = vld [vmem:[%s1 + $0x1c] sm:$0xf]
  %v39 = vld [vmem:[%s1 + $0x20] sm:$0xf]
  %v40 = vld [vmem:[%s1 + $0x24] sm:$0xf]
  %v41 = vld [vmem:[%s1 + $0x28] sm:$0xf]
  %v42 = vld [vmem:[%s1 + $0x2c] sm:$0xf]
  %v43 = vld [vmem:[%s1 + $0x30] sm:$0xf]
  %v44 = vld [vmem:[%s1 + $0x34] sm:$0xf]
  %v45 = vld [vmem:[%s1 + $0x38] sm:$0xf]
  %v46 = vld [vmem:[%s1 + $0x3c] sm:$0xf]
  %v47 = vld [vmem:[%s1 + $0x40] sm:$0xf]
  %v48 = vld [vmem:[%s1 + $0x44] sm:$0xf]
  %v49 = vld [vmem:[%s1 + $0x48] sm:$0xf]
  %v50 = vld [vmem:[%s1 + $0x4c] sm:$0xf]
  %v51 = vld [vmem:[%s1 + $0x50] sm:$0xf]
  %v52 = vld [vmem:[%s1 + $0x54] sm:$0xf]
  %v53 = vld [vmem:[%s1 + $0x58] sm:$0xf]
  %v54 = vld [vmem:[%s1 + $0x5c] sm:$0xf]
  %v55 = vld [vmem:[%s1 + $0x60] sm:$0xf]
  %v56 = vld [vmem:[%s1 + $0x64] sm:$0xf]
  %v57 = vld [vmem:[%s1 + $0x68] sm:$0xf]
  %v58 = vld [vmem:[%s1 + $0x6c] sm:$0xf]
  %v59 = vld [vmem:[%s1 + $0x70] sm:$0xf]
  %v60 = vld [vmem:[%s1 + $0x74] sm:$0xf]
  %v61 = vld [vmem:[%s1 + $0x78] sm:$0xf]
  %v62 = vld [vmem:[%s1 + $0x7c] sm:$0xf]
  %v63 = vld [vmem:[%s1 + $0x80] sm:$0xf]
  %v64 = vld [vmem:[%s1 + $0x84] sm:$0xf]
  %v65 = vld [vmem:[%s1 + $0x88] sm:$0xf]
  %v66 = vld [vmem:[%s1 + $0x8c] sm:$0xf]
  %v67 = vld [vmem:[%s1 + $0x90] sm:$0xf]
  %v68 = vld [vmem:[%s1 + $0x94] sm:$0xf]
  %v69 = vld [vmem:[%s1 + $0x98] sm:$0xf]
  %v70 = vld [vmem:[%s1 + $0x9c] sm:$0xf]
  %v71 = vld [vmem:[%s1 + $0xa0] sm:$0xf]
  %v72 = vld [vmem:[%s1 + $0xa4] sm:$0xf]
  %v73 = vld [vmem:[%s1 + $0xa8] sm:$0xf]
  %v74 = vld [vmem:[%s1 + $0xac] sm:$0xf]
  %v75 = vld [vmem:[%s1 + $0xb0] sm:$0xf]
  %v76 = vld [vmem:[%s1 + $0xb4] sm:$0xf]
  %v77 = vld [vmem:[%s1 + $0xb8] sm:$0xf]
  %v78 = vld [vmem:[%s1 + $0xbc] sm:$0xf]
  %v79 = vld [vmem:[%s1 + $0xc0] sm:$0xf]
  %v80 = vld [vmem:[%s1 + $0xc4] sm:$0xf]
  %v81 = vld [vmem:[%s1 + $0xc8] sm:$0xf]
  %v82 = vld [vmem:[%s1 + $0xcc] sm:$0xf]
  %v83 = vld [vmem:[%s1 + $0xd0] sm:$0xf]
  %v84 = vld [vmem:[%s1 + $0xd4] sm:$0xf]
  %v85 = vld [vmem:[%s1 + $0xd8] sm:$0xf]
  %v86 = vld [vmem:[%s1 + $0xdc] sm:$0xf]
  %v87 = vld [vmem:[%s1 + $0xe0] sm:$0xf]
  %v88 = vld [vmem:[%s1 + $0xe4] sm:$0xf]
  %v89 = vld [vmem:[%s1 + $0xe8] sm:$0xf]
  %v90 = vld [vmem:[%s1 + $0xec] sm:$0xf]
  %v91 = vld [vmem:[%s1 + $0xf0] sm:$0xf]
  %v92 = vld [vmem:[%s1 + $0xf4] sm:$0xf]
  %v93 = vld [vmem:[%s1 + $0xf8] sm:$0xf]
  %v94 = vld [vmem:[%s1 + $0xfc] sm:$0xf]
  %v95 = vld [vmem:[%s1 + $0x100] sm:$0xf]
  %v96 = vld [vmem:[%s1 + $0x104] sm:$0xf]
  %v97 = vld [vmem:[%s1 + $0x108] sm:$0xf]
  %v98 = vld [vmem:[%s1 + $0x10c] sm:$0xf]
  %v99 = vld [vmem:[%s1 + $0x110] sm:$0xf]
  %v100 = vld [vmem:[%s1 + $0x114] sm:$0xf]
  %v101 = vld [vmem:[%s1 + $0x118] sm:$0xf]
  %v102 = vld [vmem:[%s1 + $0x11c] sm:$0xf]
  %v103 = vld [vmem:[%s1 + $0x120] sm:$0xf]
  %v104 = vld [vmem:[%s1 + $0x124] sm:$0xf]
  %v105 = vld [vmem:[%s1 + $0x128] sm:$0xf]
  %v106 = vld [vmem:[%s1 + $0x12c] sm:$0xf]
  %v107 = vld [vmem:[%s1 + $0x130] sm:$0xf]
  %v108 = vld [vmem:[%s1 + $0x134] sm:$0xf]
  %v109 = vld [vmem:[%s1 + $0x138] sm:$0xf]
  %v110 = vld [vmem:[%s1 + $0x13c] sm:$0xf]
  %v111 = vld [vmem:[%s1 + $0x140] sm:$0xf]
  %v112 = vld [vmem:[%s1 + $0x144] sm:$0xf]
  %v113 = vld [vmem:[%s1 + $0x148] sm:$0xf]
  %v114 = vld [vmem:[%s1 + $0x14c] sm:$0xf]
  %v115 = vld [vmem:[%s1 + $0x150] sm:$0xf]
  %v116 = vld [vmem:[%s1 + $0x154] sm:$0xf]
  %v117 = vld [vmem:[%s1 + $0x158] sm:$0xf]
  %v118 = vld [vmem:[%s1 + $0x15c] sm:$0xf]
  %v119 = vld [vmem:[%s1 + $0x160] sm:$0xf]
  %v120 = vld [vmem:[%s1 + $0x164] sm:$0xf]
  %v121 = vld [vmem:[%s1 + $0x168] sm:$0xf]
  %v122 = vld [vmem:[%s1 + $0x16c] sm:$0xf]
  %v123 = vld [vmem:[%s1 + $0x170] sm:$0xf]
  %v124 = vld [vmem:[%s1 + $0x174] sm:$0xf]
  %v125 = vld [vmem:[%s1 + $0x178] sm:$0xf]
  %v126 = vld [vmem:[%s1 + $0x17c] sm:$0xf]
  %v127 = vld [vmem:[%s1 + $0x180] sm:$0xf]
  %v128 = vld [vmem:[%s1 + $0x184] sm:$0xf]
  %v129 = vld [vmem:[%s1 + $0x188] sm:$0xf]
  %v130 = vld [vmem:[%s1 + $0x18c] sm:$0xf]
  %v131 = vld [vmem:[%s1 + $0x190] sm:$0xf]
  %v132 = vld [vmem:[%s1 + $0x194] sm:$0xf]
  %v133 = vld [vmem:[%s1 + $0x198] sm:$0xf]
  %v134 = vld [vmem:[%s1 + $0x19c] sm:$0xf]
  %v135 = vld [vmem:[%s1 + $0x1a0] sm:$0xf]
  %v136 = vld [vmem:[%s1 + $0x1a4] sm:$0xf]
  %v137 = vld [vmem:[%s1 + $0x1a8] sm:$0xf]
  %v138 = vld [vmem:[%s1 + $0x1ac] sm:$0xf]
  %v139 = vld [vmem:[%s1 + $0x1b0] sm:$0xf]
  %v140 = vld [vmem:[%s1 + $0x1b4] sm:$0xf]
  %v141 = vld [vmem:[%s1 + $0x1b8] sm:$0xf]
  %v142 = vld [vmem:[%s1 + $0x1bc] sm:$0xf]
  %v143 = vld [vmem:[%s1 + $0x1c0] sm:$0xf]
  %v144 = vld [vmem:[%s1 + $0x1c4] sm:$0xf]
  %v145 = vld [vmem:[%s1 + $0x1c8] sm:$0xf]
  %v146 = vld [vmem:[%s1 + $0x1cc] sm:$0xf]
  %v147 = vld [vmem:[%s1 + $0x1d0] sm:$0xf]
  %v148 = vld [vmem:[%s1 + $0x1d4] sm:$0xf]
  %v149 = vld [vmem:[%s1 + $0x1d8] sm:$0xf]
  %v150 = vld [vmem:[%s1 + $0x1dc] sm:$0xf]
  %v151 = vld [vmem:[%s1 + $0x1e0] sm:$0xf]
  %v152 = vld [vmem:[%s1 + $0x1e4] sm:$0xf]
  %v153 = vld [vmem:[%s1 + $0x1e8] sm:$0xf]
  %v154 = vld [vmem:[%s1 + $0x1ec] sm:$0xf]
  %v155 = vld [vmem:[%s1 + $0x1f0] sm:$0xf]
  %v156 = vld [vmem:[%s1 + $0x1f4] sm:$0xf]
  %v157 = vld [vmem:[%s1 + $0x1f8] sm:$0xf]
  %v158 = vld [vmem:[%s1 + $0x1fc] sm:$0xf]
  %v159 = vld [vmem:[%s1 + $0x200] sm:$0xf]
  %v160 = vld [vmem:[%s1 + $0x204] sm:$0xf]
  %v161 = vld [vmem:[%s1 + $0x208] sm:$0xf]
  %v162 = vld [vmem:[%s1 + $0x20c] sm:$0xf]
  %v163 = vld [vmem:[%s1 + $0x210] sm:$0xf]
  %v164 = vld [vmem:[%s1 + $0x214] sm:$0xf]
  %v165 = vld [vmem:[%s1 + $0x218] sm:$0xf]
  %v166 = vld [vmem:[%s1 + $0x21c] sm:$0xf]
  %v167 = vld [vmem:[%s1 + $0x220] sm:$0xf]
  %v168 = vld [vmem:[%s1 + $0x224] sm:$0xf]
  %v169 = vld [vmem:[%s1 + $0x228] sm:$0xf]
  %v170 = vld [vmem:[%s1 + $0x22c] sm:$0xf]
  %v171 = vld [vmem:[%s1 + $0x230] sm:$0xf]
  %v172 = vld [vmem:[%s1 + $0x234] sm:$0xf]
  %v173 = vld [vmem:[%s1 + $0x238] sm:$0xf]
  %v174 = vld [vmem:[%s1 + $0x23c] sm:$0xf]
  %v175 = vld [vmem:[%s1 + $0x240] sm:$0xf]
  %v176 = vld [vmem:[%s1 + $0x244] sm:$0xf]
  %v177 = vld [vmem:[%s1 + $0x248] sm:$0xf]
  %v178 = vld [vmem:[%s1 + $0x24c] sm:$0xf]
  %v179 = vld [vmem:[%s1 + $0x250] sm:$0xf]
  %v180 = vld [vmem:[%s1 + $0x254] sm:$0xf]
  %v181 = vld [vmem:[%s1 + $0x258] sm:$0xf]
  %v182 = vld [vmem:[%s1 + $0x25c] sm:$0xf]
  %v183 = vld [vmem:[%s1 + $0x260] sm:$0xf]
  %v184 = vld [vmem:[%s1 + $0x264] sm:$0xf]
  %v185 = vld [vmem:[%s1 + $0x268] sm:$0xf]
  %v186 = vld [vmem:[%s1 + $0x26c] sm:$0xf]
  %v187 = vld [vmem:[%s1 + $0x270] sm:$0xf]
  %v188 = vld [vmem:[%s1 + $0x274] sm:$0xf]
  %v189 = vld [vmem:[%s1 + $0x278] sm:$0xf]
  %v190 = vld [vmem:[%s1 + $0x27c] sm:$0xf]
  %v191 = vld [vmem:[%s1 + $0x280] sm:$0xf]
  %v192 = vld [vmem:[%s1 + $0x284] sm:$0xf]
  %v193 = vld [vmem:[%s1 + $0x288] sm:$0xf]
  %v194 = vld [vmem:[%s1 + $0x28c] sm:$0xf]
  %v195 = vld [vmem:[%s1 + $0x290] sm:$0xf]
  %v196 = vld [vmem:[%s1 + $0x294] sm:$0xf]
  %v197 = vld [vmem:[%s1 + $0x298] sm:$0xf]
  %v198 = vld [vmem:[%s1 + $0x29c] sm:$0xf]
  %v199 = vld [vmem:[%s1 + $0x2a0] sm:$0xf]
  %v200 = vld [vmem:[%s1 + $0x2a4] sm:$0xf]
  %v201 = vld [vmem:[%s1 + $0x2a8] sm:$0xf]
  %v202 = vld [vmem:[%s1 + $0x2ac] sm:$0xf]
  %v203 = vld [vmem:[%s1 + $0x2b0] sm:$0xf]
  %v204 = vld [vmem:[%s1 + $0x2b4] sm:$0xf]
  %v205 = vld [vmem:[%s1 + $0x2b8] sm:$0xf]
  %v206 = vld [vmem:[%s1 + $0x2bc] sm:$0xf]
  %v207 = vld [vmem:[%s1 + $0x2c0] sm:$0xf]
  %v208 = vld [vmem:[%s1 + $0x2c4] sm:$0xf]
  %v209 = vld [vmem:[%s1 + $0x2c8] sm:$0xf]
  %v210 = vld [vmem:[%s1 + $0x2cc] sm:$0xf]
  %v211 = vld [vmem:[%s1 + $0x2d0] sm:$0xf]
  %v212 = vld [vmem:[%s1 + $0x2d4] sm:$0xf]
  %v213 = vld [vmem:[%s1 + $0x2d8] sm:$0xf]
  %v214 = vld [vmem:[%s1 + $0x2dc] sm:$0xf]
  %v215 = vld [vmem:[%s1 + $0x2e0] sm:$0xf]
  %v216 = vld [vmem:[%s1 + $0x2e4] sm:$0xf]
  %v217 = vld [vmem:[%s1 + $0x2e8] sm:$0xf]
  %v218 = vld [vmem:[%s1 + $0x2ec] sm:$0xf]
  %v219 = vld [vmem:[%s1 + $0x2f0] sm:$0xf]
  %v220 = vld [vmem:[%s1 + $0x2f4] sm:$0xf]
  %v221 = vld [vmem:[%s1 + $0x2f8] sm:$0xf]
  %v222 = vld [vmem:[%s1 + $0x2fc] sm:$0xf]
  %v223 = vld [vmem:[%s1 + $0x300] sm:$0xf]
  %v224 = vld [vmem:[%s1 + $0x304] sm:$0xf]
  %v225 = vld [vmem:[%s1 + $0x308] sm:$0xf]
  %v226 = vld [vmem:[%s1 + $0x30c] sm:$0xf]
  %v227 = vld [vmem:[%s1 + $0x310] sm:$0xf]
  %v228 = vld [vmem:[%s1 + $0x314] sm:$0xf]
  %v229 = vld [vmem:[%s1 + $0x318] sm:$0xf]
  %v230 = vld [vmem:[%s1 + $0x31c] sm:$0xf]
  %v231 = vld [vmem:[%s1 + $0x320] sm:$0xf]
  %v232 = vld [vmem:[%s1 + $0x324] sm:$0xf]
  %v233 = vld [vmem:[%s1 + $0x328] sm:$0xf]
  %v234 = vld [vmem:[%s1 + $0x32c] sm:$0xf]
  %v235 = vld [vmem:[%s1 + $0x330] sm:$0xf]
  %v236 = vld [vmem:[%s1 + $0x334] sm:$0xf]
  %v237 = vld [vmem:[%s1 + $0x338] sm:$0xf]
  %v238 = vld [vmem:[%s1 + $0x33c] sm:$0xf]
  %v239 = vld [vmem:[%s1 + $0x340] sm:$0xf]
  %v240 = vld [vmem:[%s1 + $0x344] sm:$0xf]
  %v241 = vld [vmem:[%s1 + $0x348] sm:$0xf]
  %v242 = vld [vmem:[%s1 + $0x34c] sm:$0xf]
  %v243 = vld [vmem:[%s1 + $0x350] sm:$0xf]
  %v244 = vld [vmem:[%s1 + $0x354] sm:$0xf]
  %v245 = vld [vmem:[%s1 + $0x358] sm:$0xf]
  %v246 = vld [vmem:[%s1 + $0x35c] sm:$0xf]
  %v247 = vld [vmem:[%s1 + $0x360] sm:$0xf]
  %v248 = vld [vmem:[%s1 + $0x364] sm:$0xf]
  %v249 = vld [vmem:[%s1 + $0x368] sm:$0xf]
  %v250 = vld [vmem:[%s1 + $0x36c] sm:$0xf]
  %v251 = vld [vmem:[%s1 + $0x370] sm:$0xf]
  %v252 = vld [vmem:[%s1 + $0x374] sm:$0xf]
  %v253 = vld [vmem:[%s1 + $0x378] sm:$0xf]
  %v254 = vld [vmem:[%s1 + $0x37c] sm:$0xf]
  %v255 = vld [vmem:[%s1 + $0x380] sm:$0xf]
  %v256 = vld [vmem:[%s1 + $0x384] sm:$0xf]
  %v257 = vld [vmem:[%s1 + $0x388] sm:$0xf]
  %v258 = vld [vmem:[%s1 + $0x38c] sm:$0xf]
  %v259 = vld [vmem:[%s1 + $0x390] sm:$0xf]
  %v260 = vld [vmem:[%s1 + $0x394] sm:$0xf]
  %v261 = vld [vmem:[%s1 + $0x398] sm:$0xf]
  %v262 = vld [vmem:[%s1 + $0x39c] sm:$0xf]
  %v263 = vld [vmem:[%s1 + $0x3a0] sm:$0xf]
  %v264 = vld [vmem:[%s1 + $0x3a4] sm:$0xf]
  %v265 = vld [vmem:[%s1 + $0x3a8] sm:$0xf]
  %v266 = vld [vmem:[%s1 + $0x3ac] sm:$0xf]
  %v267 = vld [vmem:[%s1 + $0x3b0] sm:$0xf]
  %v268 = vld [vmem:[%s1 + $0x3b4] sm:$0xf]
  %v269 = vld [vmem:[%s1 + $0x3b8] sm:$0xf]
  %v270 = vld [vmem:[%s1 + $0x3bc] sm:$0xf]
  %v271 = vld [vmem:[%s1 + $0x3c0] sm:$0xf]
  %v272 = vld [vmem:[%s1 + $0x3c4] sm:$0xf]
  %v273 = vld [vmem:[%s1 + $0x3c8] sm:$0xf]
  %v274 = vld [vmem:[%s1 + $0x3cc] sm:$0xf]
  %v275 = vld [vmem:[%s1 + $0x3d0] sm:$0xf]
  %v276 = vld [vmem:[%s1 + $0x3d4] sm:$0xf]
  %v277 = vld [vmem:[%s1 + $0x3d8] sm:$0xf]
  %v278 = vld [vmem:[%s1 + $0x3dc] sm:$0xf]
  %v279 = vld [vmem:[%s1 + $0x3e0] sm:$0xf]
  %v280 = vld [vmem:[%s1 + $0x3e4] sm:$0xf]
  %v281 = vld [vmem:[%s1 + $0x3e8] sm:$0xf]
  %v282 = vld [vmem:[%s1 + $0x3ec] sm:$0xf]
  %v283 = vld [vmem:[%s1 + $0x3f0] sm:$0xf]
  %v284 = vld [vmem:[%s1 + $0x3f4] sm:$0xf]
  %v285 = vld [vmem:[%s1 + $0x3f8] sm:$0xf]
  %v286 = vld [vmem:[%s1 + $0x3fc] sm:$0xf]
  %v287 = vld [vmem:[%s2] sm:$0x1]
  %v289 = vlaneseq
  %v290 = vshrl.u32 %v289, 7
  %v291 = vsub.s32 0, %v290
  %v292 = vrot.slane %v287, %v291
  %v310 = vunpack.c.l.b16 %v15
  %v311 = vunpack.c.h.b16 %v15
  %v312 = vunpack.c.l.b16 %v16
  %v313 = vunpack.c.h.b16 %v16
  %v314 = vunpack.c.l.b16 %v17
  %v315 = vunpack.c.h.b16 %v17
  %v316 = vunpack.c.l.b16 %v18
  %v317 = vunpack.c.h.b16 %v18
  %v318 = vunpack.c.l.b16 %v19
  %v319 = vunpack.c.h.b16 %v19
  %v320 = vunpack.c.l.b16 %v20
  %v321 = vunpack.c.h.b16 %v20
  %v322 = vunpack.c.l.b16 %v21
  %v323 = vunpack.c.h.b16 %v21
  %v324 = vunpack.c.l.b16 %v22
  %v325 = vunpack.c.h.b16 %v22
  %v326 = vunpack.c.l.b16 %v23
  %v327 = vunpack.c.h.b16 %v23
  %v328 = vunpack.c.l.b16 %v24
  %v329 = vunpack.c.h.b16 %v24
  %v330 = vunpack.c.l.b16 %v25
  %v331 = vunpack.c.h.b16 %v25
  %v332 = vunpack.c.l.b16 %v26
  %v333 = vunpack.c.h.b16 %v26
  %v334 = vunpack.c.l.b16 %v27
  %v335 = vunpack.c.h.b16 %v27
  %v336 = vunpack.c.l.b16 %v28
  %v337 = vunpack.c.h.b16 %v28
  %v338 = vunpack.c.l.b16 %v29
  %v339 = vunpack.c.h.b16 %v29
  %v340 = vunpack.c.l.b16 %v30
  %v341 = vunpack.c.h.b16 %v30
  %v342 = vpack.c.b16 %v326, %v310
  %v343 = vpack.c.b16 %v327, %v311
  %v344 = vpack.c.b16 %v328, %v312
  %v345 = vpack.c.b16 %v329, %v313
  %v346 = vpack.c.b16 %v330, %v314
  %v347 = vpack.c.b16 %v331, %v315
  %v348 = vpack.c.b16 %v332, %v316
  %v349 = vpack.c.b16 %v333, %v317
  %v350 = vpack.c.b16 %v334, %v318
  %v351 = vpack.c.b16 %v335, %v319
  %v352 = vpack.c.b16 %v336, %v320
  %v353 = vpack.c.b16 %v337, %v321
  %v354 = vpack.c.b16 %v338, %v322
  %v355 = vpack.c.b16 %v339, %v323
  %v356 = vpack.c.b16 %v340, %v324
  %v357 = vpack.c.b16 %v341, %v325
  %v630 = vunpack.c.l.b16 %v31
  %v631 = vunpack.c.l.b16 %v32
  %v632 = vunpack.c.l.b16 %v33
  %v633 = vunpack.c.l.b16 %v34
  %v634 = vunpack.c.l.b16 %v35
  %v635 = vunpack.c.l.b16 %v36
  %v636 = vunpack.c.l.b16 %v37
  %v637 = vunpack.c.l.b16 %v38
  %v638 = vunpack.c.l.b16 %v39
  %v639 = vunpack.c.l.b16 %v40
  %v640 = vunpack.c.l.b16 %v41
  %v641 = vunpack.c.l.b16 %v42
  %v642 = vunpack.c.l.b16 %v43
  %v643 = vunpack.c.l.b16 %v44
  %v644 = vunpack.c.l.b16 %v45
  %v645 = vunpack.c.l.b16 %v46
  %v646 = vunpack.c.l.b16 %v47
  %v647 = vunpack.c.l.b16 %v48
  %v648 = vunpack.c.l.b16 %v49
  %v649 = vunpack.c.l.b16 %v50
  %v650 = vunpack.c.l.b16 %v51
  %v651 = vunpack.c.l.b16 %v52
  %v652 = vunpack.c.l.b16 %v53
  %v653 = vunpack.c.l.b16 %v54
  %v654 = vunpack.c.l.b16 %v55
  %v655 = vunpack.c.l.b16 %v56
  %v656 = vunpack.c.l.b16 %v57
  %v657 = vunpack.c.l.b16 %v58
  %v658 = vunpack.c.l.b16 %v59
  %v659 = vunpack.c.l.b16 %v60
  %v660 = vunpack.c.l.b16 %v61
  %v661 = vunpack.c.l.b16 %v62
  %v662 = vunpack.c.l.b16 %v63
  %v663 = vunpack.c.l.b16 %v64
  %v664 = vunpack.c.l.b16 %v65
  %v665 = vunpack.c.l.b16 %v66
  %v666 = vunpack.c.l.b16 %v67
  %v667 = vunpack.c.l.b16 %v68
  %v668 = vunpack.c.l.b16 %v69
  %v669 = vunpack.c.l.b16 %v70
  %v670 = vunpack.c.l.b16 %v71
  %v671 = vunpack.c.l.b16 %v72
  %v672 = vunpack.c.l.b16 %v73
  %v673 = vunpack.c.l.b16 %v74
  %v674 = vunpack.c.l.b16 %v75
  %v675 = vunpack.c.l.b16 %v76
  %v676 = vunpack.c.l.b16 %v77
  %v677 = vunpack.c.l.b16 %v78
  %v678 = vunpack.c.l.b16 %v79
  %v679 = vunpack.c.l.b16 %v80
  %v680 = vunpack.c.l.b16 %v81
  %v681 = vunpack.c.l.b16 %v82
  %v682 = vunpack.c.l.b16 %v83
  %v683 = vunpack.c.l.b16 %v84
  %v684 = vunpack.c.l.b16 %v85
  %v685 = vunpack.c.l.b16 %v86
  %v686 = vunpack.c.l.b16 %v87
  %v687 = vunpack.c.l.b16 %v88
  %v688 = vunpack.c.l.b16 %v89
  %v689 = vunpack.c.l.b16 %v90
  %v690 = vunpack.c.l.b16 %v91
  %v691 = vunpack.c.l.b16 %v92
  %v692 = vunpack.c.l.b16 %v93
  %v693 = vunpack.c.l.b16 %v94
  %v694 = vunpack.c.l.b16 %v95
  %v695 = vunpack.c.l.b16 %v96
  %v696 = vunpack.c.l.b16 %v97
  %v697 = vunpack.c.l.b16 %v98
  %v698 = vunpack.c.l.b16 %v99
  %v699 = vunpack.c.l.b16 %v100
  %v700 = vunpack.c.l.b16 %v101
  %v701 = vunpack.c.l.b16 %v102
  %v702 = vunpack.c.l.b16 %v103
  %v703 = vunpack.c.l.b16 %v104
  %v704 = vunpack.c.l.b16 %v105
  %v705 = vunpack.c.l.b16 %v106
  %v706 = vunpack.c.l.b16 %v107
  %v707 = vunpack.c.l.b16 %v108
  %v708 = vunpack.c.l.b16 %v109
  %v709 = vunpack.c.l.b16 %v110
  %v710 = vunpack.c.l.b16 %v111
  %v711 = vunpack.c.l.b16 %v112
  %v712 = vunpack.c.l.b16 %v113
  %v713 = vunpack.c.l.b16 %v114
  %v714 = vunpack.c.l.b16 %v115
  %v715 = vunpack.c.l.b16 %v116
  %v716 = vunpack.c.l.b16 %v117
  %v717 = vunpack.c.l.b16 %v118
  %v718 = vunpack.c.l.b16 %v119
  %v719 = vunpack.c.l.b16 %v120
  %v720 = vunpack.c.l.b16 %v121
  %v721 = vunpack.c.l.b16 %v122
  %v722 = vunpack.c.l.b16 %v123
  %v723 = vunpack.c.l.b16 %v124
  %v724 = vunpack.c.l.b16 %v125
  %v725 = vunpack.c.l.b16 %v126
  %v726 = vunpack.c.l.b16 %v127
  %v727 = vunpack.c.l.b16 %v128
  %v728 = vunpack.c.l.b16 %v129
  %v729 = vunpack.c.l.b16 %v130
  %v730 = vunpack.c.l.b16 %v131
  %v731 = vunpack.c.l.b16 %v132
  %v732 = vunpack.c.l.b16 %v133
  %v733 = vunpack.c.l.b16 %v134
  %v734 = vunpack.c.l.b16 %v135
  %v735 = vunpack.c.l.b16 %v136
  %v736 = vunpack.c.l.b16 %v137
  %v737 = vunpack.c.l.b16 %v138
  %v738 = vunpack.c.l.b16 %v139
  %v739 = vunpack.c.l.b16 %v140
  %v740 = vunpack.c.l.b16 %v141
  %v741 = vunpack.c.l.b16 %v142
  %v742 = vunpack.c.l.b16 %v143
  %v743 = vunpack.c.l.b16 %v144
  %v744 = vunpack.c.l.b16 %v145
  %v745 = vunpack.c.l.b16 %v146
  %v746 = vunpack.c.l.b16 %v147
  %v747 = vunpack.c.l.b16 %v148
  %v748 = vunpack.c.l.b16 %v149
  %v749 = vunpack.c.l.b16 %v150
  %v750 = vunpack.c.l.b16 %v151
  %v751 = vunpack.c.l.b16 %v152
  %v752 = vunpack.c.l.b16 %v153
  %v753 = vunpack.c.l.b16 %v154
  %v754 = vunpack.c.l.b16 %v155
  %v755 = vunpack.c.l.b16 %v156
  %v756 = vunpack.c.l.b16 %v157
  %v757 = vunpack.c.l.b16 %v158
  %v758 = vunpack.c.l.b16 %v159
  %v759 = vunpack.c.l.b16 %v160
  %v760 = vunpack.c.l.b16 %v161
  %v761 = vunpack.c.l.b16 %v162
  %v762 = vunpack.c.l.b16 %v163
  %v763 = vunpack.c.l.b16 %v164
  %v764 = vunpack.c.l.b16 %v165
  %v765 = vunpack.c.l.b16 %v166
  %v766 = vunpack.c.l.b16 %v167
  %v767 = vunpack.c.l.b16 %v168
  %v768 = vunpack.c.l.b16 %v169
  %v769 = vunpack.c.l.b16 %v170
  %v770 = vunpack.c.l.b16 %v171
  %v771 = vunpack.c.l.b16 %v172
  %v772 = vunpack.c.l.b16 %v173
  %v773 = vunpack.c.l.b16 %v174
  %v774 = vunpack.c.l.b16 %v175
  %v775 = vunpack.c.l.b16 %v176
  %v776 = vunpack.c.l.b16 %v177
  %v777 = vunpack.c.l.b16 %v178
  %v778 = vunpack.c.l.b16 %v179
  %v779 = vunpack.c.l.b16 %v180
  %v780 = vunpack.c.l.b16 %v181
  %v781 = vunpack.c.l.b16 %v182
  %v782 = vunpack.c.l.b16 %v183
  %v783 = vunpack.c.l.b16 %v184
  %v784 = vunpack.c.l.b16 %v185
  %v785 = vunpack.c.l.b16 %v186
  %v786 = vunpack.c.l.b16 %v187
  %v787 = vunpack.c.l.b16 %v188
  %v788 = vunpack.c.l.b16 %v189
  %v789 = vunpack.c.l.b16 %v190
  %v790 = vunpack.c.l.b16 %v191
  %v791 = vunpack.c.l.b16 %v192
  %v792 = vunpack.c.l.b16 %v193
  %v793 = vunpack.c.l.b16 %v194
  %v794 = vunpack.c.l.b16 %v195
  %v795 = vunpack.c.l.b16 %v196
  %v796 = vunpack.c.l.b16 %v197
  %v797 = vunpack.c.l.b16 %v198
  %v798 = vunpack.c.l.b16 %v199
  %v799 = vunpack.c.l.b16 %v200
  %v800 = vunpack.c.l.b16 %v201
  %v801 = vunpack.c.l.b16 %v202
  %v802 = vunpack.c.l.b16 %v203
  %v803 = vunpack.c.l.b16 %v204
  %v804 = vunpack.c.l.b16 %v205
  %v805 = vunpack.c.l.b16 %v206
  %v806 = vunpack.c.l.b16 %v207
  %v807 = vunpack.c.l.b16 %v208
  %v808 = vunpack.c.l.b16 %v209
  %v809 = vunpack.c.l.b16 %v210
  %v810 = vunpack.c.l.b16 %v211
  %v811 = vunpack.c.l.b16 %v212
  %v812 = vunpack.c.l.b16 %v213
  %v813 = vunpack.c.l.b16 %v214
  %v814 = vunpack.c.l.b16 %v215
  %v815 = vunpack.c.l.b16 %v216
  %v816 = vunpack.c.l.b16 %v217
  %v817 = vunpack.c.l.b16 %v218
  %v818 = vunpack.c.l.b16 %v219
  %v819 = vunpack.c.l.b16 %v220
  %v820 = vunpack.c.l.b16 %v221
  %v821 = vunpack.c.l.b16 %v222
  %v822 = vunpack.c.l.b16 %v223
  %v823 = vunpack.c.l.b16 %v224
  %v824 = vunpack.c.l.b16 %v225
  %v825 = vunpack.c.l.b16 %v226
  %v826 = vunpack.c.l.b16 %v227
  %v827 = vunpack.c.l.b16 %v228
  %v828 = vunpack.c.l.b16 %v229
  %v829 = vunpack.c.l.b16 %v230
  %v830 = vunpack.c.l.b16 %v231
  %v831 = vunpack.c.l.b16 %v232
  %v832 = vunpack.c.l.b16 %v233
  %v833 = vunpack.c.l.b16 %v234
  %v834 = vunpack.c.l.b16 %v235
  %v835 = vunpack.c.l.b16 %v236
  %v836 = vunpack.c.l.b16 %v237
  %v837 = vunpack.c.l.b16 %v238
  %v838 = vunpack.c.l.b16 %v239
  %v839 = vunpack.c.l.b16 %v240
  %v840 = vunpack.c.l.b16 %v241
  %v841 = vunpack.c.l.b16 %v242
  %v842 = vunpack.c.l.b16 %v243
  %v843 = vunpack.c.l.b16 %v244
  %v844 = vunpack.c.l.b16 %v245
  %v845 = vunpack.c.l.b16 %v246
  %v846 = vunpack.c.l.b16 %v247
  %v847 = vunpack.c.l.b16 %v248
  %v848 = vunpack.c.l.b16 %v249
  %v849 = vunpack.c.l.b16 %v250
  %v850 = vunpack.c.l.b16 %v251
  %v851 = vunpack.c.l.b16 %v252
  %v852 = vunpack.c.l.b16 %v253
  %v853 = vunpack.c.l.b16 %v254
  %v854 = vunpack.c.l.b16 %v255
  %v855 = vunpack.c.l.b16 %v256
  %v856 = vunpack.c.l.b16 %v257
  %v857 = vunpack.c.l.b16 %v258
  %v858 = vunpack.c.l.b16 %v259
  %v859 = vunpack.c.l.b16 %v260
  %v860 = vunpack.c.l.b16 %v261
  %v861 = vunpack.c.l.b16 %v262
  %v862 = vunpack.c.l.b16 %v263
  %v863 = vunpack.c.l.b16 %v264
  %v864 = vunpack.c.l.b16 %v265
  %v865 = vunpack.c.l.b16 %v266
  %v866 = vunpack.c.l.b16 %v267
  %v867 = vunpack.c.l.b16 %v268
  %v868 = vunpack.c.l.b16 %v269
  %v869 = vunpack.c.l.b16 %v270
  %v870 = vunpack.c.l.b16 %v271
  %v871 = vunpack.c.l.b16 %v272
  %v872 = vunpack.c.l.b16 %v273
  %v873 = vunpack.c.l.b16 %v274
  %v874 = vunpack.c.l.b16 %v275
  %v875 = vunpack.c.l.b16 %v276
  %v876 = vunpack.c.l.b16 %v277
  %v877 = vunpack.c.l.b16 %v278
  %v878 = vunpack.c.l.b16 %v279
  %v879 = vunpack.c.l.b16 %v280
  %v880 = vunpack.c.l.b16 %v281
  %v881 = vunpack.c.l.b16 %v282
  %v882 = vunpack.c.l.b16 %v283
  %v883 = vunpack.c.l.b16 %v284
  %v884 = vunpack.c.l.b16 %v285
  %v885 = vunpack.c.l.b16 %v286
  %v886 = vpack.c.b16 %v631, %v630
  %v887 = vpack.c.b16 %v633, %v632
  %v888 = vpack.c.b16 %v635, %v634
  %v889 = vpack.c.b16 %v637, %v636
  %v890 = vpack.c.b16 %v639, %v638
  %v891 = vpack.c.b16 %v641, %v640
  %v892 = vpack.c.b16 %v643, %v642
  %v893 = vpack.c.b16 %v645, %v644
  %v894 = vpack.c.b16 %v647, %v646
  %v895 = vpack.c.b16 %v649, %v648
  %v896 = vpack.c.b16 %v651, %v650
  %v897 = vpack.c.b16 %v653, %v652
  %v898 = vpack.c.b16 %v655, %v654
  %v899 = vpack.c.b16 %v657, %v656
  %v900 = vpack.c.b16 %v659, %v658
  %v901 = vpack.c.b16 %v661, %v660
  %v902 = vpack.c.b16 %v663, %v662
  %v903 = vpack.c.b16 %v665, %v664
  %v904 = vpack.c.b16 %v667, %v666
  %v905 = vpack.c.b16 %v669, %v668
  %v906 = vpack.c.b16 %v671, %v670
  %v907 = vpack.c.b16 %v673, %v672
  %v908 = vpack.c.b16 %v675, %v674
  %v909 = vpack.c.b16 %v677, %v676
  %v910 = vpack.c.b16 %v679, %v678
  %v911 = vpack.c.b16 %v681, %v680
  %v912 = vpack.c.b16 %v683, %v682
  %v913 = vpack.c.b16 %v685, %v684
  %v914 = vpack.c.b16 %v687, %v686
  %v915 = vpack.c.b16 %v689, %v688
  %v916 = vpack.c.b16 %v691, %v690
  %v917 = vpack.c.b16 %v693, %v692
  %v918 = vpack.c.b16 %v695, %v694
  %v919 = vpack.c.b16 %v697, %v696
  %v920 = vpack.c.b16 %v699, %v698
  %v921 = vpack.c.b16 %v701, %v700
  %v922 = vpack.c.b16 %v703, %v702
  %v923 = vpack.c.b16 %v705, %v704
  %v924 = vpack.c.b16 %v707, %v706
  %v925 = vpack.c.b16 %v709, %v708
  %v926 = vpack.c.b16 %v711, %v710
  %v927 = vpack.c.b16 %v713, %v712
  %v928 = vpack.c.b16 %v715, %v714
  %v929 = vpack.c.b16 %v717, %v716
  %v930 = vpack.c.b16 %v719, %v718
  %v931 = vpack.c.b16 %v721, %v720
  %v932 = vpack.c.b16 %v723, %v722
  %v933 = vpack.c.b16 %v725, %v724
  %v934 = vpack.c.b16 %v727, %v726
  %v935 = vpack.c.b16 %v729, %v728
  %v936 = vpack.c.b16 %v731, %v730
  %v937 = vpack.c.b16 %v733, %v732
  %v938 = vpack.c.b16 %v735, %v734
  %v939 = vpack.c.b16 %v737, %v736
  %v940 = vpack.c.b16 %v739, %v738
  %v941 = vpack.c.b16 %v741, %v740
  %v942 = vpack.c.b16 %v743, %v742
  %v943 = vpack.c.b16 %v745, %v744
  %v944 = vpack.c.b16 %v747, %v746
  %v945 = vpack.c.b16 %v749, %v748
  %v946 = vpack.c.b16 %v751, %v750
  %v947 = vpack.c.b16 %v753, %v752
  %v948 = vpack.c.b16 %v755, %v754
  %v949 = vpack.c.b16 %v757, %v756
  %v950 = vpack.c.b16 %v759, %v758
  %v951 = vpack.c.b16 %v761, %v760
  %v952 = vpack.c.b16 %v763, %v762
  %v953 = vpack.c.b16 %v765, %v764
  %v954 = vpack.c.b16 %v767, %v766
  %v955 = vpack.c.b16 %v769, %v768
  %v956 = vpack.c.b16 %v771, %v770
  %v957 = vpack.c.b16 %v773, %v772
  %v958 = vpack.c.b16 %v775, %v774
  %v959 = vpack.c.b16 %v777, %v776
  %v960 = vpack.c.b16 %v779, %v778
  %v961 = vpack.c.b16 %v781, %v780
  %v962 = vpack.c.b16 %v783, %v782
  %v963 = vpack.c.b16 %v785, %v784
  %v964 = vpack.c.b16 %v787, %v786
  %v965 = vpack.c.b16 %v789, %v788
  %v966 = vpack.c.b16 %v791, %v790
  %v967 = vpack.c.b16 %v793, %v792
  %v968 = vpack.c.b16 %v795, %v794
  %v969 = vpack.c.b16 %v797, %v796
  %v970 = vpack.c.b16 %v799, %v798
  %v971 = vpack.c.b16 %v801, %v800
  %v972 = vpack.c.b16 %v803, %v802
  %v973 = vpack.c.b16 %v805, %v804
  %v974 = vpack.c.b16 %v807, %v806
  %v975 = vpack.c.b16 %v809, %v808
  %v976 = vpack.c.b16 %v811, %v810
  %v977 = vpack.c.b16 %v813, %v812
  %v978 = vpack.c.b16 %v815, %v814
  %v979 = vpack.c.b16 %v817, %v816
  %v980 = vpack.c.b16 %v819, %v818
  %v981 = vpack.c.b16 %v821, %v820
  %v982 = vpack.c.b16 %v823, %v822
  %v983 = vpack.c.b16 %v825, %v824
  %v984 = vpack.c.b16 %v827, %v826
  %v985 = vpack.c.b16 %v829, %v828
  %v986 = vpack.c.b16 %v831, %v830
  %v987 = vpack.c.b16 %v833, %v832
  %v988 = vpack.c.b16 %v835, %v834
  %v989 = vpack.c.b16 %v837, %v836
  %v990 = vpack.c.b16 %v839, %v838
  %v991 = vpack.c.b16 %v841, %v840
  %v992 = vpack.c.b16 %v843, %v842
  %v993 = vpack.c.b16 %v845, %v844
  %v994 = vpack.c.b16 %v847, %v846
  %v995 = vpack.c.b16 %v849, %v848
  %v996 = vpack.c.b16 %v851, %v850
  %v997 = vpack.c.b16 %v853, %v852
  %v998 = vpack.c.b16 %v855, %v854
  %v999 = vpack.c.b16 %v857, %v856
  %v1000 = vpack.c.b16 %v859, %v858
  %v1001 = vpack.c.b16 %v861, %v860
  %v1002 = vpack.c.b16 %v863, %v862
  %v1003 = vpack.c.b16 %v865, %v864
  %v1004 = vpack.c.b16 %v867, %v866
  %v1005 = vpack.c.b16 %v869, %v868
  %v1006 = vpack.c.b16 %v871, %v870
  %v1007 = vpack.c.b16 %v873, %v872
  %v1008 = vpack.c.b16 %v875, %v874
  %v1009 = vpack.c.b16 %v877, %v876
  %v1010 = vpack.c.b16 %v879, %v878
  %v1011 = vpack.c.b16 %v881, %v880
  %v1012 = vpack.c.b16 %v883, %v882
  %v1013 = vpack.c.b16 %v885, %v884
  %1142 = vmatprep.subr.bf16.mxu0 0
  %1143 = vmatpush1.bf16.msra.mxu0 %v886
  %1144 = vmatprep.subr.bf16.mxu0 0
  %1145 = vmatpush1.bf16.msra.mxu0 %v887
  %1146 = vmatprep.subr.bf16.mxu0 0
  %1147 = vmatpush1.bf16.msra.mxu0 %v888
  %1148 = vmatprep.subr.bf16.mxu0 0
  %1149 = vmatpush1.bf16.msra.mxu0 %v889
  %1150 = vmatprep.subr.bf16.mxu0 0
  %1151 = vmatpush1.bf16.msra.mxu0 %v890
  %1152 = vmatprep.subr.bf16.mxu0 0
  %1153 = vmatpush1.bf16.msra.mxu0 %v891
  %1154 = vmatprep.subr.bf16.mxu0 0
  %1155 = vmatpush1.bf16.msra.mxu0 %v892
  %1156 = vmatprep.subr.bf16.mxu0 0
  %1157 = vmatpush1.bf16.msra.mxu0 %v893
  %1158 = vmatprep.subr.bf16.mxu0 0
  %1159 = vmatpush1.bf16.msra.mxu0 %v894
  %1160 = vmatprep.subr.bf16.mxu0 0
  %1161 = vmatpush1.bf16.msra.mxu0 %v895
  %1162 = vmatprep.subr.bf16.mxu0 0
  %1163 = vmatpush1.bf16.msra.mxu0 %v896
  %1164 = vmatprep.subr.bf16.mxu0 0
  %1165 = vmatpush1.bf16.msra.mxu0 %v897
  %1166 = vmatprep.subr.bf16.mxu0 0
  %1167 = vmatpush1.bf16.msra.mxu0 %v898
  %1168 = vmatprep.subr.bf16.mxu0 0
  %1169 = vmatpush1.bf16.msra.mxu0 %v899
  %1170 = vmatprep.subr.bf16.mxu0 0
  %1171 = vmatpush1.bf16.msra.mxu0 %v900
  %1172 = vmatprep.subr.bf16.mxu0 0
  %1173 = vmatpush1.bf16.msra.mxu0 %v901
  %1174 = vmatprep.mubr.bf16.mxu0 %v343
  %1175 = vmatmul.mubr.bf16.gmra.mrb[0].mxu0 %v342
  %v1176 = vpop.f32.mrb[0].mxu0
  %v1177 = vadd.f32 %v292, %v1176
  %v1178 = vpop.f32.mrb[0].mxu0
  %v1179 = vpop.f32.mrb[0].mxu0
  %v1180 = vadd.f32 %v292, %v1179
  %v1181 = vpop.f32.mrb[0].mxu0
  %1182 = vdwg.mxu0
  %1183 = vmatprep.subr.bf16.mxu0 0
  %1184 = vmatpush1.bf16.msra.mxu0 %v902
  %1185 = vmatprep.subr.bf16.mxu0 0
  %1186 = vmatpush1.bf16.msra.mxu0 %v903
  %1187 = vmatprep.subr.bf16.mxu0 0
  %1188 = vmatpush1.bf16.msra.mxu0 %v904
  %1189 = vmatprep.subr.bf16.mxu0 0
  %1190 = vmatpush1.bf16.msra.mxu0 %v905
  %1191 = vmatprep.subr.bf16.mxu0 0
  %1192 = vmatpush1.bf16.msra.mxu0 %v906
  %1193 = vmatprep.subr.bf16.mxu0 0
  %1194 = vmatpush1.bf16.msra.mxu0 %v907
  %1195 = vmatprep.subr.bf16.mxu0 0
  %1196 = vmatpush1.bf16.msra.mxu0 %v908
  %1197 = vmatprep.subr.bf16.mxu0 0
  %1198 = vmatpush1.bf16.msra.mxu0 %v909
  %1199 = vmatprep.subr.bf16.mxu0 0
  %1200 = vmatpush1.bf16.msra.mxu0 %v910
  %1201 = vmatprep.subr.bf16.mxu0 0
  %1202 = vmatpush1.bf16.msra.mxu0 %v911
  %1203 = vmatprep.subr.bf16.mxu0 0
  %1204 = vmatpush1.bf16.msra.mxu0 %v912
  %1205 = vmatprep.subr.bf16.mxu0 0
  %1206 = vmatpush1.bf16.msra.mxu0 %v913
  %1207 = vmatprep.subr.bf16.mxu0 0
  %1208 = vmatpush1.bf16.msra.mxu0 %v914
  %1209 = vmatprep.subr.bf16.mxu0 0
  %1210 = vmatpush1.bf16.msra.mxu0 %v915
  %1211 = vmatprep.subr.bf16.mxu0 0
  %1212 = vmatpush1.bf16.msra.mxu0 %v916
  %1213 = vmatprep.subr.bf16.mxu0 0
  %1214 = vmatpush1.bf16.msra.mxu0 %v917
  %1215 = vmatprep.mubr.bf16.mxu0 %v345
  %1216 = vmatmul.mubr.bf16.gmra.mrb[0].mxu0 %v344
  %v1217 = vpop.f32.mrb[0].mxu0
  %v1218 = vadd.f32 %v1177, %v1217
  %v1219 = vpop.f32.mrb[0].mxu0
  %v1220 = vpop.f32.mrb[0].mxu0
  %v1221 = vadd.f32 %v1180, %v1220
  %v1222 = vpop.f32.mrb[0].mxu0
  %1223 = vdwg.mxu0
  %1224 = vmatprep.subr.bf16.mxu0 0
  %1225 = vmatpush1.bf16.msra.mxu0 %v918
  %1226 = vmatprep.subr.bf16.mxu0 0
  %1227 = vmatpush1.bf16.msra.mxu0 %v919
  %1228 = vmatprep.subr.bf16.mxu0 0
  %1229 = vmatpush1.bf16.msra.mxu0 %v920
  %1230 = vmatprep.subr.bf16.mxu0 0
  %1231 = vmatpush1.bf16.msra.mxu0 %v921
  %1232 = vmatprep.subr.bf16.mxu0 0
  %1233 = vmatpush1.bf16.msra.mxu0 %v922
  %1234 = vmatprep.subr.bf16.mxu0 0
  %1235 = vmatpush1.bf16.msra.mxu0 %v923
  %1236 = vmatprep.subr.bf16.mxu0 0
  %1237 = vmatpush1.bf16.msra.mxu0 %v924
  %1238 = vmatprep.subr.bf16.mxu0 0
  %1239 = vmatpush1.bf16.msra.mxu0 %v925
  %1240 = vmatprep.subr.bf16.mxu0 0
  %1241 = vmatpush1.bf16.msra.mxu0 %v926
  %1242 = vmatprep.subr.bf16.mxu0 0
  %1243 = vmatpush1.bf16.msra.mxu0 %v927
  %1244 = vmatprep.subr.bf16.mxu0 0
  %1245 = vmatpush1.bf16.msra.mxu0 %v928
  %1246 = vmatprep.subr.bf16.mxu0 0
  %1247 = vmatpush1.bf16.msra.mxu0 %v929
  %1248 = vmatprep.subr.bf16.mxu0 0
  %1249 = vmatpush1.bf16.msra.mxu0 %v930
  %1250 = vmatprep.subr.bf16.mxu0 0
  %1251 = vmatpush1.bf16.msra.mxu0 %v931
  %1252 = vmatprep.subr.bf16.mxu0 0
  %1253 = vmatpush1.bf16.msra.mxu0 %v932
  %1254 = vmatprep.subr.bf16.mxu0 0
  %1255 = vmatpush1.bf16.msra.mxu0 %v933
  %1256 = vmatprep.mubr.bf16.mxu0 %v347
  %1257 = vmatmul.mubr.bf16.gmra.mrb[0].mxu0 %v346
  %v1258 = vpop.f32.mrb[0].mxu0
  %v1259 = vadd.f32 %v1218, %v1258
  %v1260 = vpop.f32.mrb[0].mxu0
  %v1261 = vpop.f32.mrb[0].mxu0
  %v1262 = vadd.f32 %v1221, %v1261
  %v1263 = vpop.f32.mrb[0].mxu0
  %1264 = vdwg.mxu0
  %1265 = vmatprep.subr.bf16.mxu0 0
  %1266 = vmatpush1.bf16.msra.mxu0 %v934
  %1267 = vmatprep.subr.bf16.mxu0 0
  %1268 = vmatpush1.bf16.msra.mxu0 %v935
  %1269 = vmatprep.subr.bf16.mxu0 0
  %1270 = vmatpush1.bf16.msra.mxu0 %v936
  %1271 = vmatprep.subr.bf16.mxu0 0
  %1272 = vmatpush1.bf16.msra.mxu0 %v937
  %1273 = vmatprep.subr.bf16.mxu0 0
  %1274 = vmatpush1.bf16.msra.mxu0 %v938
  %1275 = vmatprep.subr.bf16.mxu0 0
  %1276 = vmatpush1.bf16.msra.mxu0 %v939
  %1277 = vmatprep.subr.bf16.mxu0 0
  %1278 = vmatpush1.bf16.msra.mxu0 %v940
  %1279 = vmatprep.subr.bf16.mxu0 0
  %1280 = vmatpush1.bf16.msra.mxu0 %v941
  %1281 = vmatprep.subr.bf16.mxu0 0
  %1282 = vmatpush1.bf16.msra.mxu0 %v942
  %1283 = vmatprep.subr.bf16.mxu0 0
  %1284 = vmatpush1.bf16.msra.mxu0 %v943
  %1285 = vmatprep.subr.bf16.mxu0 0
  %1286 = vmatpush1.bf16.msra.mxu0 %v944
  %1287 = vmatprep.subr.bf16.mxu0 0
  %1288 = vmatpush1.bf16.msra.mxu0 %v945
  %1289 = vmatprep.subr.bf16.mxu0 0
  %1290 = vmatpush1.bf16.msra.mxu0 %v946
  %1291 = vmatprep.subr.bf16.mxu0 0
  %1292 = vmatpush1.bf16.msra.mxu0 %v947
  %1293 = vmatprep.subr.bf16.mxu0 0
  %1294 = vmatpush1.bf16.msra.mxu0 %v948
  %1295 = vmatprep.subr.bf16.mxu0 0
  %1296 = vmatpush1.bf16.msra.mxu0 %v949
  %1297 = vmatprep.mubr.bf16.mxu0 %v349
  %1298 = vmatmul.mubr.bf16.gmra.mrb[0].mxu0 %v348
  %v1299 = vpop.f32.mrb[0].mxu0
  %v1300 = vadd.f32 %v1259, %v1299
  %v1301 = vpop.f32.mrb[0].mxu0
  %v1302 = vpop.f32.mrb[0].mxu0
  %v1303 = vadd.f32 %v1262, %v1302
  %v1304 = vpop.f32.mrb[0].mxu0
  %1305 = vdwg.mxu0
  %1306 = vmatprep.subr.bf16.mxu0 0
  %1307 = vmatpush1.bf16.msra.mxu0 %v950
  %1308 = vmatprep.subr.bf16.mxu0 0
  %1309 = vmatpush1.bf16.msra.mxu0 %v951
  %1310 = vmatprep.subr.bf16.mxu0 0
  %1311 = vmatpush1.bf16.msra.mxu0 %v952
  %1312 = vmatprep.subr.bf16.mxu0 0
  %1313 = vmatpush1.bf16.msra.mxu0 %v953
  %1314 = vmatprep.subr.bf16.mxu0 0
  %1315 = vmatpush1.bf16.msra.mxu0 %v954
  %1316 = vmatprep.subr.bf16.mxu0 0
  %1317 = vmatpush1.bf16.msra.mxu0 %v955
  %1318 = vmatprep.subr.bf16.mxu0 0
  %1319 = vmatpush1.bf16.msra.mxu0 %v956
  %1320 = vmatprep.subr.bf16.mxu0 0
  %1321 = vmatpush1.bf16.msra.mxu0 %v957
  %1322 = vmatprep.subr.bf16.mxu0 0
  %1323 = vmatpush1.bf16.msra.mxu0 %v958
  %1324 = vmatprep.subr.bf16.mxu0 0
  %1325 = vmatpush1.bf16.msra.mxu0 %v959
  %1326 = vmatprep.subr.bf16.mxu0 0
  %1327 = vmatpush1.bf16.msra.mxu0 %v960
  %1328 = vmatprep.subr.bf16.mxu0 0
  %1329 = vmatpush1.bf16.msra.mxu0 %v961
  %1330 = vmatprep.subr.bf16.mxu0 0
  %1331 = vmatpush1.bf16.msra.mxu0 %v962
  %1332 = vmatprep.subr.bf16.mxu0 0
  %1333 = vmatpush1.bf16.msra.mxu0 %v963
  %1334 = vmatprep.subr.bf16.mxu0 0
  %1335 = vmatpush1.bf16.msra.mxu0 %v964
  %1336 = vmatprep.subr.bf16.mxu0 0
  %1337 = vmatpush1.bf16.msra.mxu0 %v965
  %1338 = vmatprep.mubr.bf16.mxu0 %v351
  %1339 = vmatmul.mubr.bf16.gmra.mrb[0].mxu0 %v350
  %v1340 = vpop.f32.mrb[0].mxu0
  %v1341 = vadd.f32 %v1300, %v1340
  %v1342 = vpop.f32.mrb[0].mxu0
  %v1343 = vpop.f32.mrb[0].mxu0
  %v1344 = vadd.f32 %v1303, %v1343
  %v1345 = vpop.f32.mrb[0].mxu0
  %1346 = vdwg.mxu0
  %1347 = vmatprep.subr.bf16.mxu0 0
  %1348 = vmatpush1.bf16.msra.mxu0 %v966
  %1349 = vmatprep.subr.bf16.mxu0 0
  %1350 = vmatpush1.bf16.msra.mxu0 %v967
  %1351 = vmatprep.subr.bf16.mxu0 0
  %1352 = vmatpush1.bf16.msra.mxu0 %v968
  %1353 = vmatprep.subr.bf16.mxu0 0
  %1354 = vmatpush1.bf16.msra.mxu0 %v969
  %1355 = vmatprep.subr.bf16.mxu0 0
  %1356 = vmatpush1.bf16.msra.mxu0 %v970
  %1357 = vmatprep.subr.bf16.mxu0 0
  %1358 = vmatpush1.bf16.msra.mxu0 %v971
  %1359 = vmatprep.subr.bf16.mxu0 0
  %1360 = vmatpush1.bf16.msra.mxu0 %v972
  %1361 = vmatprep.subr.bf16.mxu0 0
  %1362 = vmatpush1.bf16.msra.mxu0 %v973
  %1363 = vmatprep.subr.bf16.mxu0 0
  %1364 = vmatpush1.bf16.msra.mxu0 %v974
  %1365 = vmatprep.subr.bf16.mxu0 0
  %1366 = vmatpush1.bf16.msra.mxu0 %v975
  %1367 = vmatprep.subr.bf16.mxu0 0
  %1368 = vmatpush1.bf16.msra.mxu0 %v976
  %1369 = vmatprep.subr.bf16.mxu0 0
  %1370 = vmatpush1.bf16.msra.mxu0 %v977
  %1371 = vmatprep.subr.bf16.mxu0 0
  %1372 = vmatpush1.bf16.msra.mxu0 %v978
  %1373 = vmatprep.subr.bf16.mxu0 0
  %1374 = vmatpush1.bf16.msra.mxu0 %v979
  %1375 = vmatprep.subr.bf16.mxu0 0
  %1376 = vmatpush1.bf16.msra.mxu0 %v980
  %1377 = vmatprep.subr.bf16.mxu0 0
  %1378 = vmatpush1.bf16.msra.mxu0 %v981
  %1379 = vmatprep.mubr.bf16.mxu0 %v353
  %1380 = vmatmul.mubr.bf16.gmra.mrb[0].mxu0 %v352
  %v1381 = vpop.f32.mrb[0].mxu0
  %v1382 = vadd.f32 %v1341, %v1381
  %v1383 = vpop.f32.mrb[0].mxu0
  %v1384 = vpop.f32.mrb[0].mxu0
  %v1385 = vadd.f32 %v1344, %v1384
  %v1386 = vpop.f32.mrb[0].mxu0
  %1387 = vdwg.mxu0
  %1388 = vmatprep.subr.bf16.mxu0 0
  %1389 = vmatpush1.bf16.msra.mxu0 %v982
  %1390 = vmatprep.subr.bf16.mxu0 0
  %1391 = vmatpush1.bf16.msra.mxu0 %v983
  %1392 = vmatprep.subr.bf16.mxu0 0
  %1393 = vmatpush1.bf16.msra.mxu0 %v984
  %1394 = vmatprep.subr.bf16.mxu0 0
  %1395 = vmatpush1.bf16.msra.mxu0 %v985
  %1396 = vmatprep.subr.bf16.mxu0 0
  %1397 = vmatpush1.bf16.msra.mxu0 %v986
  %1398 = vmatprep.subr.bf16.mxu0 0
  %1399 = vmatpush1.bf16.msra.mxu0 %v987
  %1400 = vmatprep.subr.bf16.mxu0 0
  %1401 = vmatpush1.bf16.msra.mxu0 %v988
  %1402 = vmatprep.subr.bf16.mxu0 0
  %1403 = vmatpush1.bf16.msra.mxu0 %v989
  %1404 = vmatprep.subr.bf16.mxu0 0
  %1405 = vmatpush1.bf16.msra.mxu0 %v990
  %1406 = vmatprep.subr.bf16.mxu0 0
  %1407 = vmatpush1.bf16.msra.mxu0 %v991
  %1408 = vmatprep.subr.bf16.mxu0 0
  %1409 = vmatpush1.bf16.msra.mxu0 %v992
  %1410 = vmatprep.subr.bf16.mxu0 0
  %1411 = vmatpush1.bf16.msra.mxu0 %v993
  %1412 = vmatprep.subr.bf16.mxu0 0
  %1413 = vmatpush1.bf16.msra.mxu0 %v994
  %1414 = vmatprep.subr.bf16.mxu0 0
  %1415 = vmatpush1.bf16.msra.mxu0 %v995
  %1416 = vmatprep.subr.bf16.mxu0 0
  %1417 = vmatpush1.bf16.msra.mxu0 %v996
  %1418 = vmatprep.subr.bf16.mxu0 0
  %1419 = vmatpush1.bf16.msra.mxu0 %v997
  %1420 = vmatprep.mubr.bf16.mxu0 %v355
  %1421 = vmatmul.mubr.bf16.gmra.mrb[0].mxu0 %v354
  %v1422 = vpop.f32.mrb[0].mxu0
  %v1423 = vadd.f32 %v1382, %v1422
  %v1424 = vpop.f32.mrb[0].mxu0
  %v1425 = vpop.f32.mrb[0].mxu0
  %v1426 = vadd.f32 %v1385, %v1425
  %v1427 = vpop.f32.mrb[0].mxu0
  %1428 = vdwg.mxu0
  %1429 = vmatprep.subr.bf16.mxu0 0
  %1430 = vmatpush1.bf16.msra.mxu0 %v998
  %1431 = vmatprep.subr.bf16.mxu0 0
  %1432 = vmatpush1.bf16.msra.mxu0 %v999
  %1433 = vmatprep.subr.bf16.mxu0 0
  %1434 = vmatpush1.bf16.msra.mxu0 %v1000
  %1435 = vmatprep.subr.bf16.mxu0 0
  %1436 = vmatpush1.bf16.msra.mxu0 %v1001
  %1437 = vmatprep.subr.bf16.mxu0 0
  %1438 = vmatpush1.bf16.msra.mxu0 %v1002
  %1439 = vmatprep.subr.bf16.mxu0 0
  %1440 = vmatpush1.bf16.msra.mxu0 %v1003
  %1441 = vmatprep.subr.bf16.mxu0 0
  %1442 = vmatpush1.bf16.msra.mxu0 %v1004
  %1443 = vmatprep.subr.bf16.mxu0 0
  %1444 = vmatpush1.bf16.msra.mxu0 %v1005
  %1445 = vmatprep.subr.bf16.mxu0 0
  %1446 = vmatpush1.bf16.msra.mxu0 %v1006
  %1447 = vmatprep.subr.bf16.mxu0 0
  %1448 = vmatpush1.bf16.msra.mxu0 %v1007
  %1449 = vmatprep.subr.bf16.mxu0 0
  %1450 = vmatpush1.bf16.msra.mxu0 %v1008
  %1451 = vmatprep.subr.bf16.mxu0 0
  %1452 = vmatpush1.bf16.msra.mxu0 %v1009
  %1453 = vmatprep.subr.bf16.mxu0 0
  %1454 = vmatpush1.bf16.msra.mxu0 %v1010
  %1455 = vmatprep.subr.bf16.mxu0 0
  %1456 = vmatpush1.bf16.msra.mxu0 %v1011
  %1457 = vmatprep.subr.bf16.mxu0 0
  %1458 = vmatpush1.bf16.msra.mxu0 %v1012
  %1459 = vmatprep.subr.bf16.mxu0 0
  %1460 = vmatpush1.bf16.msra.mxu0 %v1013
  %1461 = vmatprep.mubr.bf16.mxu0 %v357
  %1462 = vmatmul.mubr.bf16.gmra.mrb[0].mxu0 %v356
  %v1463 = vpop.f32.mrb[0].mxu0
  %v1464 = vadd.f32 %v1423, %v1463
  %v1465 = vpop.f32.mrb[0].mxu0
  %v1466 = vpop.f32.mrb[0].mxu0
  %v1467 = vadd.f32 %v1426, %v1466
  %v1468 = vpop.f32.mrb[0].mxu0
  %1469 = vdwg.mxu0
  %1470 = vst [vmem:[%s3] sm:$0xff] %v1464
  %1471 = vst [vmem:[%s3 + $0x8] sm:$0xff] %v1467
  // Predicated region
  $region14: #{simple_discriminator_forward.7} parent=0 // pred_check
    _
  $region15: #{simple_discriminator_forward.7} parent=0 // pred_check_branch
    %1473 = sbr.rel (0) target = $region17
  $region16: #{simple_discriminator_forward.7} parent=0 // pred_region
    _
  $region17: #{simple_discriminator_forward.7} parent=0 // pred_fallthru
    _
  // Predicated region
  $region18: #{simple_discriminator_forward.7} parent=0 // pred_check
    _
  $region19: #{simple_discriminator_forward.7} parent=0 // pred_check_branch
    %1475 = sbr.rel (0) target = $region21
  $region20: #{simple_discriminator_forward.7} parent=0 // pred_region
    _
  $region21: #{simple_discriminator_forward.7} parent=0 // pred_fallthru
    _

</llo_original>
